<compile_context>
chip_gen: v7x
topology: tpu7x:2x2x1
jax: 0.10.0
libtpu: 0.0.40
codegen_flags: <defaults>
</compile_context>

<pallas_src>
import math

import numpy as np
import jax
import jax.numpy as jnp
from jax.experimental import pallas as pl
from jax.experimental.pallas import tpu as pltpu


# ----------------------------------------------------------------------------
# Scaled-down model configuration (structurally identical to the module)
# ----------------------------------------------------------------------------
H = 16
W = 16
POOL = 4
HP, WP = H // POOL, W // POOL        # 4, 4
NWIN = HP * WP                       # 16 pooling windows (encoder 4x4 grid)
WINSZ = POOL * POOL                  # 16 elements per pooling window
HW = H * W                           # 256
K1 = 9                               # conv1 3x3 taps
C1 = 32                              # conv1 output channels
CH = C1 + 1                          # 33 channels after concat with fourier
LATENT = 10
ZPAD = 128                           # latent lane dim padded 2*LATENT -> 128
DEC_C = 16                           # decoder Unflatten channels
DEC_FEAT = DEC_C * HP * WP           # 256 decoder-linear output features


# ----------------------------------------------------------------------------
# Fused Pallas kernel: TB batch elements per grid step
# ----------------------------------------------------------------------------
def fused_forward_kernel(p_ref, xt_ref, w1_ref, bias_ref, mft_ref,
                         wenc_ref, wf_ref, wdl_ref, m2_ref, out_ref):
    """Whole HybridAutoencoder_2 forward; all intermediates stay in VMEM."""
    f32 = jnp.float32
    bf16 = jnp.bfloat16
    TB = xt_ref.shape[1]

    # ---------------- encoder: ComplexConv2d(1->32, k3, p1) -----------------
    # Patch rows are (r, b) pairs (r = position inside the 4x4 pooling window).
    # The conv weight is block-diagonal over the 16 windows, so output lanes
    # are already q*64 + [32 real ch | 32 imag ch] -- no lane reshuffle later.
    patches = p_ref[...].reshape(WINSZ * TB, NWIN * 2 * K1)          # (16*TB, 288) bf16
    conv = jnp.dot(patches, w1_ref[...], preferred_element_type=f32)  # (16*TB, 1024)
    # ComplexMaxPool2d(4,4): single max over the in-window position axis.
    # (per-channel bias add and leaky_relu commute with this max, so they are
    #  applied once on the pooled tensor.)
    conv = jnp.max(conv.reshape(WINSZ, TB, NWIN * 2 * C1), axis=0)    # (TB, 1024)
    conv = conv + bias_ref[0:1, :]                                    # real_bias on both parts
    conv = jnp.where(conv >= 0.0, conv, 0.01 * conv)                  # ComplexReLU
    pc = conv.astype(bf16)

    # ---------------- encoder: FourierLayer (folded linear operator) --------
    xt = xt_ref[...].reshape(2 * TB, 2 * HW)          # TB rows [xr|-xi], TB rows [xi|xr]
    four = jnp.dot(xt, mft_ref[...], preferred_element_type=f32)      # (2*TB, 256)
    # 4x4 maxpool as a 4-step balanced lane fold: mft's output columns are
    # ordered NWIN*r + q, so each halving fold reduces over the window
    # position r and the final 16 lanes are the 16 window ids q.
    for width in (128, 64, 32, 16):
        four = jnp.maximum(four[:, :width], four[:, width:2 * width])
    four = jnp.where(four >= 0.0, four, 0.01 * four)                  # (2*TB, 16) ComplexReLU
    pf_r = four[0:TB, :].astype(bf16)                                 # pooled fourier, real part
    pf_i = four[TB:2 * TB, :].astype(bf16)                            # pooled fourier, imag part

    # ---------------- encoder ComplexLinear(33*4*4 -> 10), lane-padded ------
    # One dense (TB,1024)@(1024,128) matmul + two tiny fourier-channel matmuls.
    # Columns 2*LATENT..127 of z are exactly zero (weights/bias zero-padded).
    z = (jnp.dot(pc, wenc_ref[...], preferred_element_type=f32)
         + jnp.dot(pf_r, wf_ref[0], preferred_element_type=f32)
         + jnp.dot(pf_i, wf_ref[1], preferred_element_type=f32)
         + bias_ref[1:2, 0:ZPAD])                                     # (TB, 128)

    # ---------------- decoder ComplexLinear(10 -> 256) + ComplexReLU --------
    d = jnp.dot(z.astype(bf16), wdl_ref[...], preferred_element_type=f32) \
        + bias_ref[2:3, 0:2 * DEC_FEAT]                               # (TB, 512)
    d = jnp.where(d >= 0.0, d, 0.01 * d)

    # ------- Unflatten + Upsample(nearest,4) + ComplexConv2d(16->1,k5,p2) ---
    # Folded at init into one lane-dense (512,512) block-real matrix.
    y = jnp.dot(d.astype(bf16), m2_ref[...], preferred_element_type=f32) \
        + bias_ref[3:4, 0:2 * HW]                                     # (TB, 512) = [re | im]

    # ---------------- complex Sigmoid 1/(1 + exp(-z)), stable ---------------
    a = y[:, 0:HW]
    b = y[:, HW:2 * HW]
    t = jnp.exp(-jnp.abs(a))                                          # in (0, 1]
    cb = jnp.cos(b)
    sb = jnp.sin(b)
    inv = 1.0 / (1.0 + 2.0 * t * cb + t * t)
    num_r = jnp.where(a >= 0.0, 1.0 + t * cb, t * (cb + t))
    out_ref[:, 0:HW] = num_r * inv
    out_ref[:, HW:2 * HW] = (t * sb) * inv


# ----------------------------------------------------------------------------
# Parameter init (mirrors the PyTorch module's init, scaled down)
# ----------------------------------------------------------------------------
def init_params(key):
    ks = jax.random.split(key, 12)

    def uni(k, shape, bound):
        return jax.random.uniform(k, shape, jnp.float32, -bound, bound)

    p = {}
    # HybridLayer: ComplexConv2d(1, 32, 3, padding=1)   (weights ~ randn)
    p['c1_wr'] = jax.random.normal(ks[0], (C1, 1, 3, 3), jnp.float32)
    p['c1_wi'] = jax.random.normal(ks[1], (C1, 1, 3, 3), jnp.float32)
    p['c1_br'] = jnp.zeros((C1,), jnp.float32)
    # FourierLayer(H, W)
    p['f_wr'] = jax.random.normal(ks[2], (H, W), jnp.float32)
    p['f_wi'] = jax.random.normal(ks[3], (H, W), jnp.float32)
    # encoder ComplexLinear(33*4*4, latent)
    enc_in = CH * NWIN
    b1 = 1.0 / math.sqrt(enc_in)
    p['el_wr'] = uni(ks[4], (LATENT, enc_in), b1)
    p['el_wi'] = uni(ks[5], (LATENT, enc_in), b1)
    p['el_br'] = uni(ks[6], (LATENT,), b1)
    # decoder ComplexLinear(latent, 16*4*4)
    b2 = 1.0 / math.sqrt(LATENT)
    p['dl_wr'] = uni(ks[7], (DEC_FEAT, LATENT), b2)
    p['dl_wi'] = uni(ks[8], (DEC_FEAT, LATENT), b2)
    p['dl_br'] = uni(ks[9], (DEC_FEAT,), b2)
    # decoder ComplexConv2d(16, 1, 5, padding=2)
    p['c2_wr'] = jax.random.normal(ks[10], (1, DEC_C, 5, 5), jnp.float32)
    p['c2_wi'] = jax.random.normal(ks[11], (1, DEC_C, 5, 5), jnp.float32)
    p['c2_br'] = jnp.zeros((1,), jnp.float32)
    return p


def _pool_perm():
    """perm[NWIN*r + q] -> natural flat index W*y + x, where
       r = POOL*(y%POOL) + (x%POOL)   (position inside the 4x4 pooling window)
       q = WP*(y//POOL) + (x//POOL)   (window id == PyTorch pooled index py*4+px).
    With r-major lane ordering, the 4x4 maxpool is 4 contiguous halving folds."""
    perm = np.zeros(HW, dtype=np.int64)
    for r in range(WINSZ):
        i, j = r // POOL, r % POOL
        for q in range(NWIN):
            py, px = q // WP, q % WP
            y, x = POOL * py + i, POOL * px + j
            perm[NWIN * r + q] = W * y + x
    return perm


def build_kernel_constants(p):
    """One-time packing of the module weights into kernel-friendly operands."""
    bf16 = jnp.bfloat16

    # conv1 block-real weight (18, 64): patches [9 re | 9 im] -> [32 re | 32 im].
    w1r = p['c1_wr'].reshape(C1, K1).T            # (9, 32)
    w1i = p['c1_wi'].reshape(C1, K1).T
    w1b = jnp.concatenate(
        [jnp.concatenate([w1r, w1i], axis=1),
         jnp.concatenate([-w1i, w1r], axis=1)], axis=0)                    # (18, 64)
    # Block-diagonal over the 16 pooling windows: conv output lanes become
    # q*64 + channel directly (no in-kernel lane reshuffle before the encoder
    # matmul).  MXU flops grow 16x but stay negligible at this size.
    w1bd = jnp.kron(jnp.eye(NWIN, dtype=jnp.float32), w1b).astype(bf16)    # (288, 1024)

    # FourierLayer ifft2(fft2(x) * W) folded into one (HW x HW) operator:
    #   out_flat = x_flat @ (F2 @ diag(w) @ conj(F2)/HW)
    def dft(n):
        k = jnp.arange(n, dtype=jnp.float32)
        return jnp.exp(-2j * jnp.pi * jnp.outer(k, k) / n)

    F2 = jnp.kron(dft(H), dft(W))                                          # (HW, HW) complex
    G2 = jnp.conj(F2) / (H * W)
    wf = (p['f_wr'] + 1j * p['f_wi']).reshape(HW)
    MF = (F2 * wf[None, :]) @ G2                                           # (HW, HW) complex
    perm = _pool_perm()                                                    # lane = NWIN*r + q
    mft = jnp.concatenate([jnp.real(MF), jnp.imag(MF)], axis=0)
    mft = mft[:, perm].astype(bf16)                                        # (512, 256)

    # encoder ComplexLinear(33*16 -> 10): flat block-real weight, lane-padded.
    Wr = p['el_wr'].reshape(LATENT, CH, NWIN)                              # [o, c, q]
    Wi = p['el_wi'].reshape(LATENT, CH, NWIN)
    Wrc = jnp.transpose(Wr[:, :C1, :], (2, 1, 0))                          # (16, 32, 10)
    Wic = jnp.transpose(Wi[:, :C1, :], (2, 1, 0))
    welc = jnp.concatenate(
        [jnp.concatenate([Wrc, Wic], axis=2),
         jnp.concatenate([-Wic, Wrc], axis=2)], axis=1)                    # (16, 64, 20)
    wenc = jnp.pad(welc.reshape(NWIN * 2 * C1, 2 * LATENT),
                   ((0, 0), (0, ZPAD - 2 * LATENT))).astype(bf16)          # (1024, 128)
    Wrf = Wr[:, C1, :].T                                                   # (16, 10) fourier ch
    Wif = Wi[:, C1, :].T
    wfr = jnp.concatenate([Wrf, Wif], axis=1)                              # (16, 20)
    wfi = jnp.concatenate([-Wif, Wrf], axis=1)
    wfb = jnp.pad(jnp.stack([wfr, wfi], axis=0),
                  ((0, 0), (0, 0), (0, ZPAD - 2 * LATENT))).astype(bf16)   # (2, 16, 128)

    # decoder ComplexLinear(10 -> 256): block-real weight, rows padded to 128.
    WrT = p['dl_wr'].T                                                     # (10, 256)
    WiT = p['dl_wi'].T
    wdl = jnp.concatenate(
        [jnp.concatenate([WrT, WiT], axis=1),
         jnp.concatenate([-WiT, WrT], axis=1)], axis=0)                    # (20, 512)
    wdl = jnp.pad(wdl, ((0, ZPAD - 2 * LATENT), (0, 0))).astype(bf16)      # (128, 512)

    # Upsample(nearest,4) + ComplexConv2d(16->1,k5,p2) folded into a
    # (256 x 256) matrix per weight (both maps are linear, nothing in between).
    def conv_up_matrix(w):
        eye = jnp.eye(DEC_FEAT, dtype=jnp.float32).reshape(DEC_FEAT, DEC_C, HP, WP)
        up = jnp.repeat(jnp.repeat(eye, POOL, axis=2), POOL, axis=3)       # (256,16,16,16)
        out = jax.lax.conv_general_dilated(
            up, w, window_strides=(1, 1), padding=((2, 2), (2, 2)),
            dimension_numbers=('NCHW', 'OIHW', 'NCHW'))                    # (256,1,H,W)
        return out.reshape(DEC_FEAT, HW)

    M2r = conv_up_matrix(p['c2_wr'])
    M2i = conv_up_matrix(p['c2_wi'])
    m2b = jnp.concatenate(
        [jnp.concatenate([M2r, M2i], axis=1),
         jnp.concatenate([-M2i, M2r], axis=1)], axis=0).astype(bf16)       # (512, 512)

    # All small biases packed into ONE (4, 1024) f32 constant (fewer streams).
    # NB: real_bias is applied to both real and imag parts, as in the module.
    c1b = jnp.tile(jnp.concatenate([p['c1_br'], p['c1_br']]), NWIN)        # (1024,)
    elb = jnp.pad(jnp.concatenate([p['el_br'], p['el_br']]), (0, 1024 - 2 * LATENT))
    dlb = jnp.pad(jnp.concatenate([p['dl_br'], p['dl_br']]), (0, 1024 - 2 * DEC_FEAT))
    c2b = jnp.pad(jnp.full((2 * HW,), p['c2_br'][0], jnp.float32), (0, 1024 - 2 * HW))
    bias = jnp.stack([c1b, elb, dlb, c2b], axis=0).astype(jnp.float32)     # (4, 1024)

    return (w1bd, bias, mft, wenc, wfb, wdl, m2b)


# ----------------------------------------------------------------------------
# Forward wrapper
# ----------------------------------------------------------------------------
def _prepare_inputs(x_real, x_imag):
    """Input-only JAX glue:
      P  : (WINSZ, B, NWIN*18) bf16 conv1 im2col patches; rows (r, b), columns
           q*18 + [9 real | 9 imag taps]  (window-blocked for the block-diag weight).
      XT : (2, B, 2*HW) bf16: plane0 = [xr | -xi], plane1 = [xi | xr]
           feeding the folded FourierLayer operator.
    """
    B = x_real.shape[0]
    xr = x_real.reshape(B, H, W)
    xi = x_imag.reshape(B, H, W)

    def patches(x):
        xp = jnp.pad(x, ((0, 0), (1, 1), (1, 1)))
        cols = [xp[:, dy:dy + H, dx:dx + W] for dy in range(3) for dx in range(3)]
        pr = jnp.stack(cols, axis=-1)                   # (B, H, W, 9)
        pr = pr.reshape(B, HP, POOL, WP, POOL, K1)      # (B, py, i, px, j, 9)
        pr = pr.transpose(2, 4, 0, 1, 3, 5)             # (i, j, B, py, px, 9)
        return pr.reshape(WINSZ, B, NWIN, K1)           # (r, b, q, 9)

    P = jnp.concatenate([patches(xr), patches(xi)], axis=-1)       # (16, B, 16, 18)
    P = P.reshape(WINSZ, B, NWIN * 2 * K1).astype(jnp.bfloat16)    # (16, B, 288)

    xr_f = xr.reshape(B, HW)
    xi_f = xi.reshape(B, HW)
    XT = jnp.stack([jnp.concatenate([xr_f, -xi_f], axis=-1),
                    jnp.concatenate([xi_f, xr_f], axis=-1)], axis=0)   # (2, B, 512)
    return P, XT.astype(jnp.bfloat16)


def _pick_tb(B):
    """Largest batch-tile (multiple of 8 for sublane alignment) that divides B
    while keeping at least 2 grid steps (both v7x TensorCores busy)."""
    for tb in (64, 32, 16, 8):
        if B % tb == 0 and B // tb >= 2:
            return tb
    return B          # grid=(1,) fallback; block dims == full array dims


def hybrid_autoencoder_forward(x_real, x_imag, consts):
    B = x_real.shape[0]
    TB = _pick_tb(B)
    P, XT = _prepare_inputs(x_real, x_imag)

    # Constant blocks never change across the grid, so Pallas re-uses them
    # (only ~1.8 MiB of bf16 constants; VMEM is not a constraint here).
    in_specs = [
        pl.BlockSpec((WINSZ, TB, NWIN * 2 * K1), lambda i: (0, i, 0)),
        pl.BlockSpec((2, TB, 2 * HW), lambda i: (0, i, 0)),
    ] + [pl.BlockSpec(c.shape, lambda i, n=c.ndim: (0,) * n) for c in consts]

    out = pl.pallas_call(
        fused_forward_kernel,
        grid=(B // TB,),
        in_specs=in_specs,
        out_specs=pl.BlockSpec((TB, 2 * HW), lambda i: (i, 0)),
        out_shape=jax.ShapeDtypeStruct((B, 2 * HW), jnp.float32),
        compiler_params=pltpu.CompilerParams(dimension_semantics=("parallel",)),
    )(P, XT, *consts)

    return jax.lax.complex(out[:, :HW], out[:, HW:]).reshape(B, 1, H, W)


if __name__ == "__main__":
    key = jax.random.PRNGKey(0)
    k_x, k_p = jax.random.split(key)

    B = 16                                   # -> TB=8, grid=(2,)
    params = init_params(k_p)
    consts = build_kernel_constants(params)

    x_real = jax.random.normal(k_x, (B, 1, H, W), jnp.float32)
    x_imag = jnp.zeros_like(x_real)          # torch.complex(x, zeros_like(x))

    fwd = jax.jit(hybrid_autoencoder_forward)
    out = jax.block_until_ready(fwd(x_real, x_imag, consts))

    assert out.shape == (B, 1, H, W), out.shape
    assert jnp.iscomplexobj(out)
    assert bool(jnp.all(jnp.isfinite(out.real)) & jnp.all(jnp.isfinite(out.imag)))
    print("KERNEL_OK")
</pallas_src>

<mosaic_0001>
module attributes {stable_mosaic.version = 11 : i64} {
  func.func @fused_forward_kernel(%arg0: i32, %arg1: memref<16x8x288xbf16, #tpu.memory_space<vmem>>, %arg2: memref<2x8x512xbf16, #tpu.memory_space<vmem>>, %arg3: memref<288x1024xbf16, #tpu.memory_space<vmem>>, %arg4: memref<4x1024xf32, #tpu.memory_space<vmem>>, %arg5: memref<512x256xbf16, #tpu.memory_space<vmem>>, %arg6: memref<1024x128xbf16, #tpu.memory_space<vmem>>, %arg7: memref<2x16x128xbf16, #tpu.memory_space<vmem>>, %arg8: memref<128x512xbf16, #tpu.memory_space<vmem>>, %arg9: memref<512x512xbf16, #tpu.memory_space<vmem>>, %arg10: memref<8x512xf32, #tpu.memory_space<vmem>>) attributes {dimension_semantics = [#tpu.dimension_semantics<parallel>], iteration_bounds = array<i64: 2>, scalar_prefetch = 0 : i64, scratch_operands = 0 : i64, tpu.core_type = #tpu.core_type<tc>, window_params = [{transform_indices = @transform_0, window_bounds = array<i64: 16, 8, 288>}, {transform_indices = @transform_1, window_bounds = array<i64: 2, 8, 512>}, {pipeline_mode = #tpu.pipeline_mode<synchronous>, transform_indices = @transform_2, window_bounds = array<i64: 288, 1024>}, {pipeline_mode = #tpu.pipeline_mode<synchronous>, transform_indices = @transform_3, window_bounds = array<i64: 4, 1024>}, {pipeline_mode = #tpu.pipeline_mode<synchronous>, transform_indices = @transform_4, window_bounds = array<i64: 512, 256>}, {pipeline_mode = #tpu.pipeline_mode<synchronous>, transform_indices = @transform_5, window_bounds = array<i64: 1024, 128>}, {pipeline_mode = #tpu.pipeline_mode<synchronous>, transform_indices = @transform_6, window_bounds = array<i64: 2, 16, 128>}, {pipeline_mode = #tpu.pipeline_mode<synchronous>, transform_indices = @transform_7, window_bounds = array<i64: 128, 512>}, {pipeline_mode = #tpu.pipeline_mode<synchronous>, transform_indices = @transform_8, window_bounds = array<i64: 512, 512>}, {transform_indices = @transform_9, window_bounds = array<i64: 8, 512>}]} {
    %c0 = arith.constant 0 : index
    %c0_0 = arith.constant 0 : index
    %c0_1 = arith.constant 0 : index
    %0 = vector.load %arg1[%c0, %c0_0, %c0_1] : memref<16x8x288xbf16, #tpu.memory_space<vmem>>, vector<16x8x288xbf16>
    %1 = vector.shape_cast %0 : vector<16x8x288xbf16> to vector<128x288xbf16>
    %c0_2 = arith.constant 0 : index
    %c0_3 = arith.constant 0 : index
    %2 = vector.load %arg3[%c0_2, %c0_3] : memref<288x1024xbf16, #tpu.memory_space<vmem>>, vector<288x1024xbf16>
    %cst = arith.constant dense<0.000000e+00> : vector<128x1024xf32>
    %3 = tpu.matmul %1, %2, %cst {dimension_numbers = #tpu.dot_dimension_numbers<[1], [0], [0], [1], [0, 0, 1, 1], [], []>} : vector<128x288xbf16>, vector<288x1024xbf16>, vector<128x1024xf32> -> vector<128x1024xf32>
    %4 = vector.shape_cast %3 : vector<128x1024xf32> to vector<16x8x1024xf32>
    %cst_4 = arith.constant dense<0xFF800000> : vector<8x1024xf32>
    %5 = vector.multi_reduction <maximumf>, %4, %cst_4 [0] : vector<16x8x1024xf32> to vector<8x1024xf32>
    %c0_5 = arith.constant 0 : index
    %c0_6 = arith.constant 0 : index
    %6 = vector.load %arg4[%c0_5, %c0_6] : memref<4x1024xf32, #tpu.memory_space<vmem>>, vector<1x1024xf32>
    %7 = vector.broadcast %6 : vector<1x1024xf32> to vector<8x1024xf32>
    %8 = arith.addf %5, %7 : vector<8x1024xf32>
    %cst_7 = arith.constant 0.000000e+00 : f32
    %9 = vector.broadcast %cst_7 : f32 to vector<8x1024xf32>
    %10 = arith.cmpf oge, %8, %9 : vector<8x1024xf32>
    %cst_8 = arith.constant 0.00999999977 : f32
    %11 = vector.broadcast %cst_8 : f32 to vector<8x1024xf32>
    %12 = arith.mulf %11, %8 : vector<8x1024xf32>
    %13 = arith.select %10, %8, %12 : vector<8x1024xi1>, vector<8x1024xf32>
    %14 = arith.truncf %13 : vector<8x1024xf32> to vector<8x1024xbf16>
    %c0_9 = arith.constant 0 : index
    %c0_10 = arith.constant 0 : index
    %c0_11 = arith.constant 0 : index
    %15 = vector.load %arg2[%c0_9, %c0_10, %c0_11] : memref<2x8x512xbf16, #tpu.memory_space<vmem>>, vector<2x8x512xbf16>
    %16 = vector.shape_cast %15 : vector<2x8x512xbf16> to vector<16x512xbf16>
    %c0_12 = arith.constant 0 : index
    %c0_13 = arith.constant 0 : index
    %17 = vector.load %arg5[%c0_12, %c0_13] : memref<512x256xbf16, #tpu.memory_space<vmem>>, vector<512x256xbf16>
    %cst_14 = arith.constant dense<0.000000e+00> : vector<16x256xf32>
    %18 = tpu.matmul %16, %17, %cst_14 {dimension_numbers = #tpu.dot_dimension_numbers<[1], [0], [0], [1], [0, 0, 1, 1], [], []>} : vector<16x512xbf16>, vector<512x256xbf16>, vector<16x256xf32> -> vector<16x256xf32>
    %19 = vector.extract_strided_slice %18 {offsets = [0, 0], sizes = [16, 128], strides = [1, 1]} : vector<16x256xf32> to vector<16x128xf32>
    %20 = vector.extract_strided_slice %18 {offsets = [0, 128], sizes = [16, 128], strides = [1, 1]} : vector<16x256xf32> to vector<16x128xf32>
    %21 = arith.maximumf %19, %20 : vector<16x128xf32>
    %22 = vector.extract_strided_slice %21 {offsets = [0, 0], sizes = [16, 64], strides = [1, 1]} : vector<16x128xf32> to vector<16x64xf32>
    %23 = vector.extract_strided_slice %21 {offsets = [0, 64], sizes = [16, 64], strides = [1, 1]} : vector<16x128xf32> to vector<16x64xf32>
    %24 = arith.maximumf %22, %23 : vector<16x64xf32>
    %25 = vector.extract_strided_slice %24 {offsets = [0, 0], sizes = [16, 32], strides = [1, 1]} : vector<16x64xf32> to vector<16x32xf32>
    %26 = vector.extract_strided_slice %24 {offsets = [0, 32], sizes = [16, 32], strides = [1, 1]} : vector<16x64xf32> to vector<16x32xf32>
    %27 = arith.maximumf %25, %26 : vector<16x32xf32>
    %28 = vector.extract_strided_slice %27 {offsets = [0, 0], sizes = [16, 16], strides = [1, 1]} : vector<16x32xf32> to vector<16x16xf32>
    %29 = vector.extract_strided_slice %27 {offsets = [0, 16], sizes = [16, 16], strides = [1, 1]} : vector<16x32xf32> to vector<16x16xf32>
    %30 = arith.maximumf %28, %29 : vector<16x16xf32>
    %cst_15 = arith.constant 0.000000e+00 : f32
    %31 = vector.broadcast %cst_15 : f32 to vector<16x16xf32>
    %32 = arith.cmpf oge, %30, %31 : vector<16x16xf32>
    %cst_16 = arith.constant 0.00999999977 : f32
    %33 = vector.broadcast %cst_16 : f32 to vector<16x16xf32>
    %34 = arith.mulf %33, %30 : vector<16x16xf32>
    %35 = arith.select %32, %30, %34 : vector<16x16xi1>, vector<16x16xf32>
    %36 = vector.extract_strided_slice %35 {offsets = [0, 0], sizes = [8, 16], strides = [1, 1]} : vector<16x16xf32> to vector<8x16xf32>
    %37 = arith.truncf %36 : vector<8x16xf32> to vector<8x16xbf16>
    %38 = vector.extract_strided_slice %35 {offsets = [8, 0], sizes = [8, 16], strides = [1, 1]} : vector<16x16xf32> to vector<8x16xf32>
    %39 = arith.truncf %38 : vector<8x16xf32> to vector<8x16xbf16>
    %c0_17 = arith.constant 0 : index
    %c0_18 = arith.constant 0 : index
    %40 = vector.load %arg6[%c0_17, %c0_18] : memref<1024x128xbf16, #tpu.memory_space<vmem>>, vector<1024x128xbf16>
    %cst_19 = arith.constant dense<0.000000e+00> : vector<8x128xf32>
    %41 = tpu.matmul %14, %40, %cst_19 {dimension_numbers = #tpu.dot_dimension_numbers<[1], [0], [0], [1], [0, 0, 1, 1], [], []>} : vector<8x1024xbf16>, vector<1024x128xbf16>, vector<8x128xf32> -> vector<8x128xf32>
    %c0_20 = arith.constant 0 : index
    %c0_21 = arith.constant 0 : index
    %c0_22 = arith.constant 0 : index
    %42 = vector.load %arg7[%c0_20, %c0_21, %c0_22] : memref<2x16x128xbf16, #tpu.memory_space<vmem>>, vector<1x16x128xbf16>
    %43 = vector.shape_cast %42 : vector<1x16x128xbf16> to vector<16x128xbf16>
    %cst_23 = arith.constant dense<0.000000e+00> : vector<8x128xf32>
    %44 = tpu.matmul %37, %43, %cst_23 {dimension_numbers = #tpu.dot_dimension_numbers<[1], [0], [0], [1], [0, 0, 1, 1], [], []>} : vector<8x16xbf16>, vector<16x128xbf16>, vector<8x128xf32> -> vector<8x128xf32>
    %45 = arith.addf %41, %44 : vector<8x128xf32>
    %c1 = arith.constant 1 : index
    %c0_24 = arith.constant 0 : index
    %c0_25 = arith.constant 0 : index
    %46 = vector.load %arg7[%c1, %c0_24, %c0_25] : memref<2x16x128xbf16, #tpu.memory_space<vmem>>, vector<1x16x128xbf16>
    %47 = vector.shape_cast %46 : vector<1x16x128xbf16> to vector<16x128xbf16>
    %cst_26 = arith.constant dense<0.000000e+00> : vector<8x128xf32>
    %48 = tpu.matmul %39, %47, %cst_26 {dimension_numbers = #tpu.dot_dimension_numbers<[1], [0], [0], [1], [0, 0, 1, 1], [], []>} : vector<8x16xbf16>, vector<16x128xbf16>, vector<8x128xf32> -> vector<8x128xf32>
    %49 = arith.addf %45, %48 : vector<8x128xf32>
    %c1_27 = arith.constant 1 : index
    %c0_28 = arith.constant 0 : index
    %50 = vector.load %arg4[%c1_27, %c0_28] : memref<4x1024xf32, #tpu.memory_space<vmem>>, vector<1x128xf32>
    %51 = vector.broadcast %50 : vector<1x128xf32> to vector<8x128xf32>
    %52 = arith.addf %49, %51 : vector<8x128xf32>
    %53 = arith.truncf %52 : vector<8x128xf32> to vector<8x128xbf16>
    %c0_29 = arith.constant 0 : index
    %c0_30 = arith.constant 0 : index
    %54 = vector.load %arg8[%c0_29, %c0_30] : memref<128x512xbf16, #tpu.memory_space<vmem>>, vector<128x512xbf16>
    %cst_31 = arith.constant dense<0.000000e+00> : vector<8x512xf32>
    %55 = tpu.matmul %53, %54, %cst_31 {dimension_numbers = #tpu.dot_dimension_numbers<[1], [0], [0], [1], [0, 0, 1, 1], [], []>} : vector<8x128xbf16>, vector<128x512xbf16>, vector<8x512xf32> -> vector<8x512xf32>
    %c2 = arith.constant 2 : index
    %c0_32 = arith.constant 0 : index
    %56 = vector.load %arg4[%c2, %c0_32] : memref<4x1024xf32, #tpu.memory_space<vmem>>, vector<1x512xf32>
    %57 = vector.broadcast %56 : vector<1x512xf32> to vector<8x512xf32>
    %58 = arith.addf %55, %57 : vector<8x512xf32>
    %cst_33 = arith.constant 0.000000e+00 : f32
    %59 = vector.broadcast %cst_33 : f32 to vector<8x512xf32>
    %60 = arith.cmpf oge, %58, %59 : vector<8x512xf32>
    %cst_34 = arith.constant 0.00999999977 : f32
    %61 = vector.broadcast %cst_34 : f32 to vector<8x512xf32>
    %62 = arith.mulf %61, %58 : vector<8x512xf32>
    %63 = arith.select %60, %58, %62 : vector<8x512xi1>, vector<8x512xf32>
    %64 = arith.truncf %63 : vector<8x512xf32> to vector<8x512xbf16>
    %c0_35 = arith.constant 0 : index
    %c0_36 = arith.constant 0 : index
    %65 = vector.load %arg9[%c0_35, %c0_36] : memref<512x512xbf16, #tpu.memory_space<vmem>>, vector<512x512xbf16>
    %cst_37 = arith.constant dense<0.000000e+00> : vector<8x512xf32>
    %66 = tpu.matmul %64, %65, %cst_37 {dimension_numbers = #tpu.dot_dimension_numbers<[1], [0], [0], [1], [0, 0, 1, 1], [], []>} : vector<8x512xbf16>, vector<512x512xbf16>, vector<8x512xf32> -> vector<8x512xf32>
    %c3 = arith.constant 3 : index
    %c0_38 = arith.constant 0 : index
    %67 = vector.load %arg4[%c3, %c0_38] : memref<4x1024xf32, #tpu.memory_space<vmem>>, vector<1x512xf32>
    %68 = vector.broadcast %67 : vector<1x512xf32> to vector<8x512xf32>
    %69 = arith.addf %66, %68 : vector<8x512xf32>
    %70 = vector.extract_strided_slice %69 {offsets = [0, 0], sizes = [8, 256], strides = [1, 1]} : vector<8x512xf32> to vector<8x256xf32>
    %71 = vector.extract_strided_slice %69 {offsets = [0, 256], sizes = [8, 256], strides = [1, 1]} : vector<8x512xf32> to vector<8x256xf32>
    %72 = math.absf %70 : vector<8x256xf32>
    %cst_39 = arith.constant 0.000000e+00 : f32
    %73 = vector.broadcast %cst_39 : f32 to vector<8x256xf32>
    %74 = arith.subf %73, %72 : vector<8x256xf32>
    %75 = math.exp %74 : vector<8x256xf32>
    %76 = math.cos %71 : vector<8x256xf32>
    %77 = math.sin %71 : vector<8x256xf32>
    %cst_40 = arith.constant 2.000000e+00 : f32
    %78 = vector.broadcast %cst_40 : f32 to vector<8x256xf32>
    %79 = arith.mulf %78, %75 : vector<8x256xf32>
    %80 = arith.mulf %79, %76 : vector<8x256xf32>
    %cst_41 = arith.constant 1.000000e+00 : f32
    %81 = vector.broadcast %cst_41 : f32 to vector<8x256xf32>
    %82 = arith.addf %81, %80 : vector<8x256xf32>
    %83 = arith.mulf %75, %75 : vector<8x256xf32>
    %84 = arith.addf %82, %83 : vector<8x256xf32>
    %cst_42 = arith.constant 1.000000e+00 : f32
    %85 = vector.broadcast %cst_42 : f32 to vector<8x256xf32>
    %86 = arith.divf %85, %84 : vector<8x256xf32>
    %cst_43 = arith.constant 0.000000e+00 : f32
    %87 = vector.broadcast %cst_43 : f32 to vector<8x256xf32>
    %88 = arith.cmpf oge, %70, %87 : vector<8x256xf32>
    %89 = arith.mulf %75, %76 : vector<8x256xf32>
    %cst_44 = arith.constant 1.000000e+00 : f32
    %90 = vector.broadcast %cst_44 : f32 to vector<8x256xf32>
    %91 = arith.addf %90, %89 : vector<8x256xf32>
    %92 = arith.addf %76, %75 : vector<8x256xf32>
    %93 = arith.mulf %75, %92 : vector<8x256xf32>
    %94 = arith.select %88, %91, %93 : vector<8x256xi1>, vector<8x256xf32>
    %95 = arith.mulf %94, %86 : vector<8x256xf32>
    %c0_45 = arith.constant 0 : index
    %c0_46 = arith.constant 0 : index
    %96 = vector.load %arg10[%c0_45, %c0_46] : memref<8x512xf32, #tpu.memory_space<vmem>>, vector<8x256xf32>
    tpu.vector_store %arg10[%c0_45, %c0_46], %95 {strides = array<i32>} : memref<8x512xf32, #tpu.memory_space<vmem>>, vector<8x256xf32>,
    %97 = arith.mulf %75, %77 : vector<8x256xf32>
    %98 = arith.mulf %97, %86 : vector<8x256xf32>
    %c0_47 = arith.constant 0 : index
    %c256 = arith.constant 256 : index
    %99 = vector.load %arg10[%c0_47, %c256] : memref<8x512xf32, #tpu.memory_space<vmem>>, vector<8x256xf32>
    tpu.vector_store %arg10[%c0_47, %c256], %98 {strides = array<i32>} : memref<8x512xf32, #tpu.memory_space<vmem>>, vector<8x256xf32>,
    return
  }
  func.func @transform_0(%arg0: i32) -> (i32, i32, i32) {
    %c0_i32 = arith.constant 0 : i32
    %c0_i32_0 = arith.constant 0 : i32
    %c0_i32_1 = arith.constant 0 : i32
    return %c0_i32, %arg0, %c0_i32_0 : i32, i32, i32
  }
  func.func @transform_1(%arg0: i32) -> (i32, i32, i32) {
    %c0_i32 = arith.constant 0 : i32
    %c0_i32_0 = arith.constant 0 : i32
    %c0_i32_1 = arith.constant 0 : i32
    return %c0_i32, %arg0, %c0_i32_0 : i32, i32, i32
  }
  func.func @transform_2(%arg0: i32) -> (i32, i32) {
    %c0_i32 = arith.constant 0 : i32
    %c0_i32_0 = arith.constant 0 : i32
    %c0_i32_1 = arith.constant 0 : i32
    return %c0_i32, %c0_i32_0 : i32, i32
  }
  func.func @transform_3(%arg0: i32) -> (i32, i32) {
    %c0_i32 = arith.constant 0 : i32
    %c0_i32_0 = arith.constant 0 : i32
    %c0_i32_1 = arith.constant 0 : i32
    return %c0_i32, %c0_i32_0 : i32, i32
  }
  func.func @transform_4(%arg0: i32) -> (i32, i32) {
    %c0_i32 = arith.constant 0 : i32
    %c0_i32_0 = arith.constant 0 : i32
    %c0_i32_1 = arith.constant 0 : i32
    return %c0_i32, %c0_i32_0 : i32, i32
  }
  func.func @transform_5(%arg0: i32) -> (i32, i32) {
    %c0_i32 = arith.constant 0 : i32
    %c0_i32_0 = arith.constant 0 : i32
    %c0_i32_1 = arith.constant 0 : i32
    return %c0_i32, %c0_i32_0 : i32, i32
  }
  func.func @transform_6(%arg0: i32) -> (i32, i32, i32) {
    %c0_i32 = arith.constant 0 : i32
    %c0_i32_0 = arith.constant 0 : i32
    %c0_i32_1 = arith.constant 0 : i32
    %c0_i32_2 = arith.constant 0 : i32
    return %c0_i32, %c0_i32_0, %c0_i32_1 : i32, i32, i32
  }
  func.func @transform_7(%arg0: i32) -> (i32, i32) {
    %c0_i32 = arith.constant 0 : i32
    %c0_i32_0 = arith.constant 0 : i32
    %c0_i32_1 = arith.constant 0 : i32
    return %c0_i32, %c0_i32_0 : i32, i32
  }
  func.func @transform_8(%arg0: i32) -> (i32, i32) {
    %c0_i32 = arith.constant 0 : i32
    %c0_i32_0 = arith.constant 0 : i32
    %c0_i32_1 = arith.constant 0 : i32
    return %c0_i32, %c0_i32_0 : i32, i32
  }
  func.func @transform_9(%arg0: i32) -> (i32, i32) {
    %c0_i32 = arith.constant 0 : i32
    %c0_i32_0 = arith.constant 0 : i32
    return %arg0, %c0_i32 : i32, i32
  }
}

</mosaic_0001>

<llo_original>
// kernel: custom-call
$region0: #{custom-call}
  %s0 = inlined_call_operand.vmem [shape: f32[16,1,16,16], index: 0, kind: input, shape index: {}]
  %s1 = inlined_call_operand.vmem [shape: f32[16,1,16,16], index: 1, kind: input, shape index: {}]
  %s2 = inlined_call_operand.hbm [shape: c64[16,1,16,16], index: 2, kind: output, shape index: {}]
  %s3 = scalar_lea.hbm %s2, 4096
  $region1: #{custom-call} parent=0
    #allocation0 [shape = 's32[1]{0}', space=sflag, size = 0x4, scoped, tag = 'scoped memory for custom-call']
    %4 = vsyncpa [#allocation0], 0
    %s5 = sshll.u32 %s0, 4
    %s6 = int_to_ptr.vmem [resolvable:$true] %s5
    %8 = dma.vmem_to_hbm [thread:$0]  %s6, 4096, %s2, [#allocation0]
    %9 = dma.done [#allocation0], 4096
    %10 = vsyncpa [#allocation0], 1
  $region2: #{custom-call} parent=0
    #allocation1 [shape = 's32[1]{0}', space=sflag, size = 0x4, scoped, tag = 'scoped memory for custom-call']
    %11 = vsyncpa [#allocation1], 0
    %s12 = sshll.u32 %s1, 4
    %s13 = int_to_ptr.vmem [resolvable:$true] %s12
    %15 = dma.vmem_to_hbm [thread:$0]  %s13, 4096, %s3, [#allocation1]
    %16 = dma.done [#allocation1], 4096
    %17 = vsyncpa [#allocation1], 1

// kernel: hybrid_autoencoder_forward.1
$region0: #{hybrid_autoencoder_forward.1}
  #allocation0 [shape = 'u32[]', space=smem, size = 0x4, offset = 0x4, fixed_abs, tag = 'smem constant byte address 0x4 - core index']
  #allocation1 [shape = 'u32[144,128]{1,0:T(1,128)}', space=vmem, size = 0x12000, scoped, tag = 'internal scratch']
  %s0 = inlined_call_operand.vmem [shape: bf16[16,16,288], index: 0, kind: input, shape index: {}]
  %s1 = inlined_call_operand.vmem [shape: bf16[2,16,512], index: 1, kind: input, shape index: {}]
  %s2 = inlined_call_operand.vmem [shape: bf16[288,1024], index: 2, kind: input, shape index: {}]
  %s3 = inlined_call_operand.vmem [shape: f32[4,1024], index: 3, kind: input, shape index: {}]
  %s4 = inlined_call_operand.vmem [shape: bf16[512,256], index: 4, kind: input, shape index: {}]
  %s5 = inlined_call_operand.vmem [shape: bf16[1024,128], index: 5, kind: input, shape index: {}]
  %s6 = inlined_call_operand.vmem [shape: bf16[2,16,128], index: 6, kind: input, shape index: {}]
  %s7 = inlined_call_operand.vmem [shape: bf16[128,512], index: 7, kind: input, shape index: {}]
  %s8 = inlined_call_operand.vmem [shape: bf16[512,512], index: 8, kind: input, shape index: {}]
  %s9 = inlined_call_operand.vmem [shape: f32[16,512], index: 9, kind: output, shape index: {}]
  %s10 = sld [smem:[#allocation0]]
  $region118: #{hybrid_autoencoder_forward.1} parent=0
    _
  %s12 = ssub.s32 1, %s10
  %s13 = scalar_select 0, %s12, %s10
  $region1: #{hybrid_autoencoder_forward.1} parent=0
    #allocation2 [shape = 'u8[196608]{0}', space=vmem, size = 0x30000, scoped, tag = 'input window, operand 0']
    #allocation3 [shape = 'u8[32768]{0}', space=vmem, size = 0x8000, scoped, tag = 'input window, operand 1']
    loop: start=0, step=1, limit=4
    $region2: #{hybrid_autoencoder_forward.1} parent=1 // loop_pre_header
      _
    $region3: #{hybrid_autoencoder_forward.1} parent=1 // loop_header
      %s15 = sphi 0, %s19
      %p16 = scmp.ge.s32.totalorder %s15, 4
      %s25 = sphi 0, %s27
      %s28 = sphi 0, %s25
      %s29 = sphi 0, %s28
      %s45 = sphi 0, %s29
      %s51 = sphi 0, %s53
      %s54 = sphi 0, %s51
      %s55 = sphi 0, %s54
      %s71 = sphi 0, %s55
      %s75 = sphi 0, %s75
      %s77 = sphi 0, %s75
      %s78 = sphi 0, %s77
      %s92 = sphi 0, %s78
      %s96 = sphi 0, %s96
      %s98 = sphi 0, %s96
      %s99 = sphi 0, %s98
      %s113 = sphi 0, %s99
      %s117 = sphi 0, %s117
      %s119 = sphi 0, %s117
      %s120 = sphi 0, %s119
      %s134 = sphi 0, %s120
      %s138 = sphi 0, %s138
      %s140 = sphi 0, %s138
      %s141 = sphi 0, %s140
      %s155 = sphi 0, %s141
      %s159 = sphi 0, %s159
      %s161 = sphi 0, %s159
      %s162 = sphi 0, %s161
      %s176 = sphi 0, %s162
      %s180 = sphi 0, %s180
      %s182 = sphi 0, %s180
      %s183 = sphi 0, %s182
      %s197 = sphi 0, %s183
      %s201 = sphi 0, %s201
      %s203 = sphi 0, %s201
      %s204 = sphi 0, %s203
      %s218 = sphi 0, %s204
      %s224 = sphi 0, %s226
      %s227 = sphi 0, %s224
      %s228 = sphi 0, %s227
      %s244 = sphi 0, %s228
    $region4: #{hybrid_autoencoder_forward.1} parent=1 // loop_header_branch
      %18 = sbr.rel (%p16) target = $region8
    $region5: #{hybrid_autoencoder_forward.1} parent=1 // loop_body
      %s20 = ssub.s32 %s15, 1
      %s21 = ssub.s32 %s15, 2
      %s22 = sadd.s32 %s15, 1
      %s23 = ssub.s32 %s15, %s22
      %p24 = scmp.eq.s32.totalorder %s23, 0
      %s26 = sadd.s32 %s25, 1
      %s27 = scalar_select %p24, %s25, %s26
      %p30 = pneg %p24
      %p31 = scmp.eq.s32.totalorder %s15, 1
      %p32 = por %p30, %p31
      %p33 = scmp.ne.s32.totalorder %s25, %s28
      %p34 = scmp.eq.s32.totalorder %s15, 0
      %p35 = por %p33, %p34
      %p36 = scmp.ne.s32.totalorder %s25, %s28
      %p37 = scmp.eq.s32.totalorder %s20, 1
      %p38 = por %p36, %p37
      %p39 = scmp.ne.s32.totalorder %s28, %s29
      %p40 = scmp.eq.s32.totalorder %s20, 0
      %p41 = por %p39, %p40
      %p42 = scmp.ne.s32.totalorder %s28, %s29
      %p43 = scmp.eq.s32.totalorder %s21, 1
      %p44 = por %p42, %p43
      %p46 = scmp.ne.s32.totalorder %s29, %s45
      %p47 = scmp.eq.s32.totalorder %s21, 0
      %p48 = por %p46, %p47
      %s49 = ssub.s32 %s15, %s22
      %p50 = scmp.eq.s32.totalorder %s49, 0
      %s52 = sadd.s32 %s51, 1
      %s53 = scalar_select %p50, %s51, %s52
      %p56 = pneg %p50
      %p57 = scmp.eq.s32.totalorder %s15, 1
      %p58 = por %p56, %p57
      %p59 = scmp.ne.s32.totalorder %s51, %s54
      %p60 = scmp.eq.s32.totalorder %s15, 0
      %p61 = por %p59, %p60
      %p62 = scmp.ne.s32.totalorder %s51, %s54
      %p63 = scmp.eq.s32.totalorder %s20, 1
      %p64 = por %p62, %p63
      %p65 = scmp.ne.s32.totalorder %s54, %s55
      %p66 = scmp.eq.s32.totalorder %s20, 0
      %p67 = por %p65, %p66
      %p68 = scmp.ne.s32.totalorder %s54, %s55
      %p69 = scmp.eq.s32.totalorder %s21, 1
      %p70 = por %p68, %p69
      %p72 = scmp.ne.s32.totalorder %s55, %s71
      %p73 = scmp.eq.s32.totalorder %s21, 0
      %p74 = por %p72, %p73
      %s76 = sadd.s32 %s75, 1
      %p79 = scmp.eq.s32.totalorder %s15, 1
      %p80 = scmp.ne.s32.totalorder %s75, %s77
      %p81 = scmp.eq.s32.totalorder %s15, 0
      %p82 = por %p80, %p81
      %p83 = scmp.ne.s32.totalorder %s75, %s77
      %p84 = scmp.eq.s32.totalorder %s20, 1
      %p85 = por %p83, %p84
      %p86 = scmp.ne.s32.totalorder %s77, %s78
      %p87 = scmp.eq.s32.totalorder %s20, 0
      %p88 = por %p86, %p87
      %p89 = scmp.ne.s32.totalorder %s77, %s78
      %p90 = scmp.eq.s32.totalorder %s21, 1
      %p91 = por %p89, %p90
      %p93 = scmp.ne.s32.totalorder %s78, %s92
      %p94 = scmp.eq.s32.totalorder %s21, 0
      %p95 = por %p93, %p94
      %s97 = sadd.s32 %s96, 1
      %p100 = scmp.eq.s32.totalorder %s15, 1
      %p101 = scmp.ne.s32.totalorder %s96, %s98
      %p102 = scmp.eq.s32.totalorder %s15, 0
      %p103 = por %p101, %p102
      %p104 = scmp.ne.s32.totalorder %s96, %s98
      %p105 = scmp.eq.s32.totalorder %s20, 1
      %p106 = por %p104, %p105
      %p107 = scmp.ne.s32.totalorder %s98, %s99
      %p108 = scmp.eq.s32.totalorder %s20, 0
      %p109 = por %p107, %p108
      %p110 = scmp.ne.s32.totalorder %s98, %s99
      %p111 = scmp.eq.s32.totalorder %s21, 1
      %p112 = por %p110, %p111
      %p114 = scmp.ne.s32.totalorder %s99, %s113
      %p115 = scmp.eq.s32.totalorder %s21, 0
      %p116 = por %p114, %p115
      %s118 = sadd.s32 %s117, 1
      %p121 = scmp.eq.s32.totalorder %s15, 1
      %p122 = scmp.ne.s32.totalorder %s117, %s119
      %p123 = scmp.eq.s32.totalorder %s15, 0
      %p124 = por %p122, %p123
      %p125 = scmp.ne.s32.totalorder %s117, %s119
      %p126 = scmp.eq.s32.totalorder %s20, 1
      %p127 = por %p125, %p126
      %p128 = scmp.ne.s32.totalorder %s119, %s120
      %p129 = scmp.eq.s32.totalorder %s20, 0
      %p130 = por %p128, %p129
      %p131 = scmp.ne.s32.totalorder %s119, %s120
      %p132 = scmp.eq.s32.totalorder %s21, 1
      %p133 = por %p131, %p132
      %p135 = scmp.ne.s32.totalorder %s120, %s134
      %p136 = scmp.eq.s32.totalorder %s21, 0
      %p137 = por %p135, %p136
      %s139 = sadd.s32 %s138, 1
      %p142 = scmp.eq.s32.totalorder %s15, 1
      %p143 = scmp.ne.s32.totalorder %s138, %s140
      %p144 = scmp.eq.s32.totalorder %s15, 0
      %p145 = por %p143, %p144
      %p146 = scmp.ne.s32.totalorder %s138, %s140
      %p147 = scmp.eq.s32.totalorder %s20, 1
      %p148 = por %p146, %p147
      %p149 = scmp.ne.s32.totalorder %s140, %s141
      %p150 = scmp.eq.s32.totalorder %s20, 0
      %p151 = por %p149, %p150
      %p152 = scmp.ne.s32.totalorder %s140, %s141
      %p153 = scmp.eq.s32.totalorder %s21, 1
      %p154 = por %p152, %p153
      %p156 = scmp.ne.s32.totalorder %s141, %s155
      %p157 = scmp.eq.s32.totalorder %s21, 0
      %p158 = por %p156, %p157
      %s160 = sadd.s32 %s159, 1
      %p163 = scmp.eq.s32.totalorder %s15, 1
      %p164 = scmp.ne.s32.totalorder %s159, %s161
      %p165 = scmp.eq.s32.totalorder %s15, 0
      %p166 = por %p164, %p165
      %p167 = scmp.ne.s32.totalorder %s159, %s161
      %p168 = scmp.eq.s32.totalorder %s20, 1
      %p169 = por %p167, %p168
      %p170 = scmp.ne.s32.totalorder %s161, %s162
      %p171 = scmp.eq.s32.totalorder %s20, 0
      %p172 = por %p170, %p171
      %p173 = scmp.ne.s32.totalorder %s161, %s162
      %p174 = scmp.eq.s32.totalorder %s21, 1
      %p175 = por %p173, %p174
      %p177 = scmp.ne.s32.totalorder %s162, %s176
      %p178 = scmp.eq.s32.totalorder %s21, 0
      %p179 = por %p177, %p178
      %s181 = sadd.s32 %s180, 1
      %p184 = scmp.eq.s32.totalorder %s15, 1
      %p185 = scmp.ne.s32.totalorder %s180, %s182
      %p186 = scmp.eq.s32.totalorder %s15, 0
      %p187 = por %p185, %p186
      %p188 = scmp.ne.s32.totalorder %s180, %s182
      %p189 = scmp.eq.s32.totalorder %s20, 1
      %p190 = por %p188, %p189
      %p191 = scmp.ne.s32.totalorder %s182, %s183
      %p192 = scmp.eq.s32.totalorder %s20, 0
      %p193 = por %p191, %p192
      %p194 = scmp.ne.s32.totalorder %s182, %s183
      %p195 = scmp.eq.s32.totalorder %s21, 1
      %p196 = por %p194, %p195
      %p198 = scmp.ne.s32.totalorder %s183, %s197
      %p199 = scmp.eq.s32.totalorder %s21, 0
      %p200 = por %p198, %p199
      %s202 = sadd.s32 %s201, 1
      %p205 = scmp.eq.s32.totalorder %s15, 1
      %p206 = scmp.ne.s32.totalorder %s201, %s203
      %p207 = scmp.eq.s32.totalorder %s15, 0
      %p208 = por %p206, %p207
      %p209 = scmp.ne.s32.totalorder %s201, %s203
      %p210 = scmp.eq.s32.totalorder %s20, 1
      %p211 = por %p209, %p210
      %p212 = scmp.ne.s32.totalorder %s203, %s204
      %p213 = scmp.eq.s32.totalorder %s20, 0
      %p214 = por %p212, %p213
      %p215 = scmp.ne.s32.totalorder %s203, %s204
      %p216 = scmp.eq.s32.totalorder %s21, 1
      %p217 = por %p215, %p216
      %p219 = scmp.ne.s32.totalorder %s204, %s218
      %p220 = scmp.eq.s32.totalorder %s21, 0
      %p221 = por %p219, %p220
      %s222 = ssub.s32 %s15, %s22
      %p223 = scmp.eq.s32.totalorder %s222, 0
      %s225 = sadd.s32 %s224, 1
      %s226 = scalar_select %p223, %s224, %s225
      %p229 = pneg %p223
      %p230 = scmp.eq.s32.totalorder %s15, 1
      %p231 = por %p229, %p230
      %p232 = scmp.ne.s32.totalorder %s224, %s227
      %p233 = scmp.eq.s32.totalorder %s15, 0
      %p234 = por %p232, %p233
      %p235 = scmp.ne.s32.totalorder %s224, %s227
      %p236 = scmp.eq.s32.totalorder %s20, 1
      %p237 = por %p235, %p236
      %p238 = scmp.ne.s32.totalorder %s227, %s228
      %p239 = scmp.eq.s32.totalorder %s20, 0
      %p240 = por %p238, %p239
      %p241 = scmp.ne.s32.totalorder %s227, %s228
      %p242 = scmp.eq.s32.totalorder %s21, 1
      %p243 = por %p241, %p242
      %p245 = scmp.ne.s32.totalorder %s228, %s244
      %p246 = scmp.eq.s32.totalorder %s21, 0
      %p247 = por %p245, %p246
      %p248 = scmp.le.s32.totalorder 1, %s15
      %p249 = scmp.lt.s32.totalorder %s15, 3
      %p250 = pnand %p248, %p249
      %p251 = pneg %p250
      // Predicated region
      $region9: #{hybrid_autoencoder_forward.1} parent=5 // pred_check
        _
      $region10: #{hybrid_autoencoder_forward.1} parent=5 // pred_check_branch
        %253 = sbr.rel (%p250) target = $region12
      $region11: #{hybrid_autoencoder_forward.1} parent=5 // pred_region
        %s254 = ssub.s32 %s15, 1
        // Predicated region
        $region13: #{hybrid_autoencoder_forward.1} parent=11 // pred_check
          %p255 = pneg %p88
        $region14: #{hybrid_autoencoder_forward.1} parent=11 // pred_check_branch
          %257 = sbr.rel (%p255) target = $region16
        $region15: #{hybrid_autoencoder_forward.1} parent=11 // pred_region
          _
        $region16: #{hybrid_autoencoder_forward.1} parent=11 // pred_fallthru
          _
        // Predicated region
        $region17: #{hybrid_autoencoder_forward.1} parent=11 // pred_check
          %p258 = pneg %p109
        $region18: #{hybrid_autoencoder_forward.1} parent=11 // pred_check_branch
          %260 = sbr.rel (%p258) target = $region20
        $region19: #{hybrid_autoencoder_forward.1} parent=11 // pred_region
          _
        $region20: #{hybrid_autoencoder_forward.1} parent=11 // pred_fallthru
          _
        // Predicated region
        $region21: #{hybrid_autoencoder_forward.1} parent=11 // pred_check
          %p261 = pneg %p130
        $region22: #{hybrid_autoencoder_forward.1} parent=11 // pred_check_branch
          %263 = sbr.rel (%p261) target = $region24
        $region23: #{hybrid_autoencoder_forward.1} parent=11 // pred_region
          _
        $region24: #{hybrid_autoencoder_forward.1} parent=11 // pred_fallthru
          _
        // Predicated region
        $region25: #{hybrid_autoencoder_forward.1} parent=11 // pred_check
          %p264 = pneg %p151
        $region26: #{hybrid_autoencoder_forward.1} parent=11 // pred_check_branch
          %266 = sbr.rel (%p264) target = $region28
        $region27: #{hybrid_autoencoder_forward.1} parent=11 // pred_region
          _
        $region28: #{hybrid_autoencoder_forward.1} parent=11 // pred_fallthru
          _
        // Predicated region
        $region29: #{hybrid_autoencoder_forward.1} parent=11 // pred_check
          %p267 = pneg %p172
        $region30: #{hybrid_autoencoder_forward.1} parent=11 // pred_check_branch
          %269 = sbr.rel (%p267) target = $region32
        $region31: #{hybrid_autoencoder_forward.1} parent=11 // pred_region
          _
        $region32: #{hybrid_autoencoder_forward.1} parent=11 // pred_fallthru
          _
        // Predicated region
        $region33: #{hybrid_autoencoder_forward.1} parent=11 // pred_check
          %p270 = pneg %p193
        $region34: #{hybrid_autoencoder_forward.1} parent=11 // pred_check_branch
          %272 = sbr.rel (%p270) target = $region36
        $region35: #{hybrid_autoencoder_forward.1} parent=11 // pred_region
          _
        $region36: #{hybrid_autoencoder_forward.1} parent=11 // pred_fallthru
          _
        // Predicated region
        $region37: #{hybrid_autoencoder_forward.1} parent=11 // pred_check
          %p273 = pneg %p214
        $region38: #{hybrid_autoencoder_forward.1} parent=11 // pred_check_branch
          %275 = sbr.rel (%p273) target = $region40
        $region39: #{hybrid_autoencoder_forward.1} parent=11 // pred_region
          _
        $region40: #{hybrid_autoencoder_forward.1} parent=11 // pred_fallthru
          _
      $region12: #{hybrid_autoencoder_forward.1} parent=5 // pred_fallthru
        _
      %p276 = scmp.lt.s32.totalorder %s15, 2
      // Predicated region
      $region41: #{hybrid_autoencoder_forward.1} parent=5 // pred_check
        %p277 = pneg %p276
      $region42: #{hybrid_autoencoder_forward.1} parent=5 // pred_check_branch
        %279 = sbr.rel (%p277) target = $region44
      $region43: #{hybrid_autoencoder_forward.1} parent=5 // pred_region
        // Predicated region
        $region45: #{hybrid_autoencoder_forward.1} parent=43 // pred_check
          %p280 = pneg %p35
        $region46: #{hybrid_autoencoder_forward.1} parent=43 // pred_check_branch
          %282 = sbr.rel (%p280) target = $region48
        $region47: #{hybrid_autoencoder_forward.1} parent=43 // pred_region
          %s283 = sand.u32 %s25, 1
          %s284 = sand.u32 %s25, 1
          %s285 = smul.addr %s284, 192
          %s286 = scalar_lea.vmem [#allocation2], %s285
          %s287 = smul.addr %s15, 3
          %s288 = smul.addr %s287, 4
          %s289 = scalar_lea.vmem %s0, %s288
          // Predicated region
          $region49: #{hybrid_autoencoder_forward.1} parent=47 // pred_check
            _
          $region50: #{hybrid_autoencoder_forward.1} parent=47 // pred_check_branch
            %291 = sbr.rel (0) target = $region52
          $region51: #{hybrid_autoencoder_forward.1} parent=47 // pred_region
            // Predicated region
            $region53: #{hybrid_autoencoder_forward.1} parent=51 // pred_check
              _
            $region54: #{hybrid_autoencoder_forward.1} parent=51 // pred_check_branch
              %293 = sbr.rel (0) target = $region56
            $region55: #{hybrid_autoencoder_forward.1} parent=51 // pred_region
              %s294 = scalar_lea.vmem %s289, 8
              %s295 = scalar_lea.vmem %s286, 8 [#allocation2]
              loop: start=0, step=1, limit=1
              $region57: #{hybrid_autoencoder_forward.1} parent=55 // loop_pre_header
                _
              $region58: #{hybrid_autoencoder_forward.1} parent=55 // loop_header
                %s297 = sphi 0, %s301
                %p298 = scmp.ge.s32.totalorder %s297, 1
                %s302 = sphi %s289, %s289
                %s303 = sphi %s286, %s286
              $region59: #{hybrid_autoencoder_forward.1} parent=55 // loop_header_branch
                %300 = sbr.rel (%p298) target = $region63
              $region60: #{hybrid_autoencoder_forward.1} parent=55 // loop_body
                %v304 = vld [vmem:[%s302] sm:$0xff]
                %305 = vst [vmem:[%s303] sm:$0xff] %v304
                %v306 = vld [vmem:[%s302 + $0x18] sm:$0xff]
                %307 = vst [vmem:[%s303 + $0xc] sm:$0xff] %v306
                %v308 = vld [vmem:[%s302 + $0x30] sm:$0xff]
                %309 = vst [vmem:[%s303 + $0x18] sm:$0xff] %v308
                %v310 = vld [vmem:[%s302 + $0x48] sm:$0xff]
                %311 = vst [vmem:[%s303 + $0x24] sm:$0xff] %v310
                %v312 = vld [vmem:[%s302 + $0x60] sm:$0xff]
                %313 = vst [vmem:[%s303 + $0x30] sm:$0xff] %v312
                %v314 = vld [vmem:[%s302 + $0x78] sm:$0xff]
                %315 = vst [vmem:[%s303 + $0x3c] sm:$0xff] %v314
                %v316 = vld [vmem:[%s302 + $0x90] sm:$0xff]
                %317 = vst [vmem:[%s303 + $0x48] sm:$0xff] %v316
                %v318 = vld [vmem:[%s302 + $0xa8] sm:$0xff]
                %319 = vst [vmem:[%s303 + $0x54] sm:$0xff] %v318
                %v320 = vld [vmem:[%s302 + $0xc0] sm:$0xff]
                %321 = vst [vmem:[%s303 + $0x60] sm:$0xff] %v320
                %v322 = vld [vmem:[%s302 + $0xd8] sm:$0xff]
                %323 = vst [vmem:[%s303 + $0x6c] sm:$0xff] %v322
                %v324 = vld [vmem:[%s302 + $0xf0] sm:$0xff]
                %325 = vst [vmem:[%s303 + $0x78] sm:$0xff] %v324
                %v326 = vld [vmem:[%s302 + $0x108] sm:$0xff]
                %327 = vst [vmem:[%s303 + $0x84] sm:$0xff] %v326
                %v328 = vld [vmem:[%s302 + $0x120] sm:$0xff]
                %329 = vst [vmem:[%s303 + $0x90] sm:$0xff] %v328
                %v330 = vld [vmem:[%s302 + $0x138] sm:$0xff]
                %331 = vst [vmem:[%s303 + $0x9c] sm:$0xff] %v330
                %v332 = vld [vmem:[%s302 + $0x150] sm:$0xff]
                %333 = vst [vmem:[%s303 + $0xa8] sm:$0xff] %v332
                %v334 = vld [vmem:[%s302 + $0x168] sm:$0xff]
                %335 = vst [vmem:[%s303 + $0xb4] sm:$0xff] %v334
              $region61: #{hybrid_autoencoder_forward.1} parent=55 // loop_footer
                %s301 = sadd.s32 1, %s297
              $region62: #{hybrid_autoencoder_forward.1} parent=55 // loop_footer_branch
                %296 = sbr.rel target = $region58
              $region63: #{hybrid_autoencoder_forward.1} parent=55 // loop_exit
                _
              loop: start=0, step=1, limit=1
              $region64: #{hybrid_autoencoder_forward.1} parent=55 // loop_pre_header
                _
              $region65: #{hybrid_autoencoder_forward.1} parent=55 // loop_header
                %s338 = sphi 0, %s342
                %p339 = scmp.ge.s32.totalorder %s338, 1
                %s343 = sphi %s294, %s294
                %s344 = sphi %s295, %s295
              $region66: #{hybrid_autoencoder_forward.1} parent=55 // loop_header_branch
                %341 = sbr.rel (%p339) target = $region70
              $region67: #{hybrid_autoencoder_forward.1} parent=55 // loop_body
                %v345 = vld [vmem:[%s343] sm:$0xf]
                %346 = vst [vmem:[%s344] sm:$0xf] %v345
                %v347 = vld [vmem:[%s343 + $0x18] sm:$0xf]
                %348 = vst [vmem:[%s344 + $0xc] sm:$0xf] %v347
                %v349 = vld [vmem:[%s343 + $0x30] sm:$0xf]
                %350 = vst [vmem:[%s344 + $0x18] sm:$0xf] %v349
                %v351 = vld [vmem:[%s343 + $0x48] sm:$0xf]
                %352 = vst [vmem:[%s344 + $0x24] sm:$0xf] %v351
                %v353 = vld [vmem:[%s343 + $0x60] sm:$0xf]
                %354 = vst [vmem:[%s344 + $0x30] sm:$0xf] %v353
                %v355 = vld [vmem:[%s343 + $0x78] sm:$0xf]
                %356 = vst [vmem:[%s344 + $0x3c] sm:$0xf] %v355
                %v357 = vld [vmem:[%s343 + $0x90] sm:$0xf]
                %358 = vst [vmem:[%s344 + $0x48] sm:$0xf] %v357
                %v359 = vld [vmem:[%s343 + $0xa8] sm:$0xf]
                %360 = vst [vmem:[%s344 + $0x54] sm:$0xf] %v359
                %v361 = vld [vmem:[%s343 + $0xc0] sm:$0xf]
                %362 = vst [vmem:[%s344 + $0x60] sm:$0xf] %v361
                %v363 = vld [vmem:[%s343 + $0xd8] sm:$0xf]
                %364 = vst [vmem:[%s344 + $0x6c] sm:$0xf] %v363
                %v365 = vld [vmem:[%s343 + $0xf0] sm:$0xf]
                %366 = vst [vmem:[%s344 + $0x78] sm:$0xf] %v365
                %v367 = vld [vmem:[%s343 + $0x108] sm:$0xf]
                %368 = vst [vmem:[%s344 + $0x84] sm:$0xf] %v367
                %v369 = vld [vmem:[%s343 + $0x120] sm:$0xf]
                %370 = vst [vmem:[%s344 + $0x90] sm:$0xf] %v369
                %v371 = vld [vmem:[%s343 + $0x138] sm:$0xf]
                %372 = vst [vmem:[%s344 + $0x9c] sm:$0xf] %v371
                %v373 = vld [vmem:[%s343 + $0x150] sm:$0xf]
                %374 = vst [vmem:[%s344 + $0xa8] sm:$0xf] %v373
                %v375 = vld [vmem:[%s343 + $0x168] sm:$0xf]
                %376 = vst [vmem:[%s344 + $0xb4] sm:$0xf] %v375
              $region68: #{hybrid_autoencoder_forward.1} parent=55 // loop_footer
                %s342 = sadd.s32 1, %s338
              $region69: #{hybrid_autoencoder_forward.1} parent=55 // loop_footer_branch
                %337 = sbr.rel target = $region65
              $region70: #{hybrid_autoencoder_forward.1} parent=55 // loop_exit
                _
            $region56: #{hybrid_autoencoder_forward.1} parent=51 // pred_fallthru
              _
          $region52: #{hybrid_autoencoder_forward.1} parent=47 // pred_fallthru
            _
          %377 = vnop
        $region48: #{hybrid_autoencoder_forward.1} parent=43 // pred_fallthru
          _
        // Predicated region
        $region71: #{hybrid_autoencoder_forward.1} parent=43 // pred_check
          %p378 = pneg %p61
        $region72: #{hybrid_autoencoder_forward.1} parent=43 // pred_check_branch
          %380 = sbr.rel (%p378) target = $region74
        $region73: #{hybrid_autoencoder_forward.1} parent=43 // pred_region
          %s381 = sand.u32 %s51, 1
          %s382 = sand.u32 %s51, 1
          %s383 = smul.addr %s382, 32
          %s384 = scalar_lea.vmem [#allocation3], %s383
          %s385 = smul.addr %s15, 4
          %s386 = smul.addr %s385, 4
          %s387 = scalar_lea.vmem %s1, %s386
          // Predicated region
          $region75: #{hybrid_autoencoder_forward.1} parent=73 // pred_check
            _
          $region76: #{hybrid_autoencoder_forward.1} parent=73 // pred_check_branch
            %389 = sbr.rel (0) target = $region78
          $region77: #{hybrid_autoencoder_forward.1} parent=73 // pred_region
            // Predicated region
            $region79: #{hybrid_autoencoder_forward.1} parent=77 // pred_check
              _
            $region80: #{hybrid_autoencoder_forward.1} parent=77 // pred_check_branch
              %391 = sbr.rel (0) target = $region82
            $region81: #{hybrid_autoencoder_forward.1} parent=77 // pred_region
              loop: start=0, step=1, limit=1
              $region83: #{hybrid_autoencoder_forward.1} parent=81 // loop_pre_header
                _
              $region84: #{hybrid_autoencoder_forward.1} parent=81 // loop_header
                %s393 = sphi 0, %s397
                %p394 = scmp.ge.s32.totalorder %s393, 1
                %s398 = sphi %s387, %s387
                %s399 = sphi %s384, %s384
              $region85: #{hybrid_autoencoder_forward.1} parent=81 // loop_header_branch
                %396 = sbr.rel (%p394) target = $region89
              $region86: #{hybrid_autoencoder_forward.1} parent=81 // loop_body
                %v400 = vld [vmem:[%s398] sm:$0xff]
                %401 = vst [vmem:[%s399] sm:$0xff] %v400
                %v402 = vld [vmem:[%s398 + $0x8] sm:$0xff]
                %403 = vst [vmem:[%s399 + $0x8] sm:$0xff] %v402
                %v404 = vld [vmem:[%s398 + $0x20] sm:$0xff]
                %405 = vst [vmem:[%s399 + $0x10] sm:$0xff] %v404
                %v406 = vld [vmem:[%s398 + $0x28] sm:$0xff]
                %407 = vst [vmem:[%s399 + $0x18] sm:$0xff] %v406
              $region87: #{hybrid_autoencoder_forward.1} parent=81 // loop_footer
                %s397 = sadd.s32 1, %s393
              $region88: #{hybrid_autoencoder_forward.1} parent=81 // loop_footer_branch
                %392 = sbr.rel target = $region84
              $region89: #{hybrid_autoencoder_forward.1} parent=81 // loop_exit
                _
            $region82: #{hybrid_autoencoder_forward.1} parent=77 // pred_fallthru
              _
            // Predicated region
            $region90: #{hybrid_autoencoder_forward.1} parent=77 // pred_check
              _
            $region91: #{hybrid_autoencoder_forward.1} parent=77 // pred_check_branch
              %409 = sbr.rel target = $region93
            $region92: #{hybrid_autoencoder_forward.1} parent=77 // pred_region
              _
            $region93: #{hybrid_autoencoder_forward.1} parent=77 // pred_fallthru
              _
          $region78: #{hybrid_autoencoder_forward.1} parent=73 // pred_fallthru
            _
          %410 = vnop
        $region74: #{hybrid_autoencoder_forward.1} parent=43 // pred_fallthru
          _
      $region44: #{hybrid_autoencoder_forward.1} parent=5 // pred_fallthru
        _
      %p411 = scmp.le.s32.totalorder 1, %s15
      %p412 = scmp.lt.s32.totalorder %s15, 3
      %p413 = pnand %p411, %p412
      %p414 = pneg %p413
      // Predicated region
      $region94: #{hybrid_autoencoder_forward.1} parent=5 // pred_check
        _
      $region95: #{hybrid_autoencoder_forward.1} parent=5 // pred_check_branch
        %416 = sbr.rel (%p413) target = $region97
      $region96: #{hybrid_autoencoder_forward.1} parent=5 // pred_region
        %s417 = ssub.s32 %s15, 1
        %s418 = sand.u32 %s28, 1
        %s419 = sand.u32 %s28, 1
        %s420 = smul.addr %s419, 192
        %s421 = scalar_lea.vmem [#allocation2], %s420
        // Predicated region
        $region98: #{hybrid_autoencoder_forward.1} parent=96 // pred_check
          %p422 = pneg %p41
        $region99: #{hybrid_autoencoder_forward.1} parent=96 // pred_check_branch
          %424 = sbr.rel (%p422) target = $region101
        $region100: #{hybrid_autoencoder_forward.1} parent=96 // pred_region
          _
        $region101: #{hybrid_autoencoder_forward.1} parent=96 // pred_fallthru
          _
        %s425 = sand.u32 %s54, 1
        %s426 = sand.u32 %s54, 1
        %s427 = smul.addr %s426, 32
        %s428 = scalar_lea.vmem [#allocation3], %s427
        // Predicated region
        $region102: #{hybrid_autoencoder_forward.1} parent=96 // pred_check
          %p429 = pneg %p67
        $region103: #{hybrid_autoencoder_forward.1} parent=96 // pred_check_branch
          %431 = sbr.rel (%p429) target = $region105
        $region104: #{hybrid_autoencoder_forward.1} parent=96 // pred_region
          _
        $region105: #{hybrid_autoencoder_forward.1} parent=96 // pred_fallthru
          _
        %s432 = sand.u32 %s28, 1
        %s433 = sand.u32 %s28, 1
        %s434 = smul.addr %s433, 192
        %s435 = scalar_lea.vmem [#allocation2], %s434
        %p436 = pneg %p41
        %p437 = pneg %p38
        %s438 = sand.u32 %s54, 1
        %s439 = sand.u32 %s54, 1
        %s440 = smul.addr %s439, 32
        %s441 = scalar_lea.vmem [#allocation3], %s440
        %p442 = pneg %p67
        %p443 = pneg %p64
        %p444 = pneg %p88
        %p445 = pneg %p85
        %p446 = pneg %p109
        %p447 = pneg %p106
        %p448 = pneg %p130
        %p449 = pneg %p127
        %p450 = pneg %p151
        %p451 = pneg %p148
        %p452 = pneg %p172
        %p453 = pneg %p169
        %p454 = pneg %p193
        %p455 = pneg %p190
        %p456 = pneg %p214
        %p457 = pneg %p211
        %p458 = pneg %p240
        %p459 = pneg %p237
        %p460 = scmp.lt.s32.totalorder %s20, 1
        %s461 = scalar_select %p460, %s20, 1
        %s462 = smul.addr %s461, 4
        %s463 = smul.addr %s462, 8
        %s464 = scalar_lea.vmem %s9, %s463
        %p465 = scmp.lt.s32.totalorder %s20, 1
        %s466 = scalar_select %p465, %s20, 1
        %s467 = smul.addr %s466, 4
        %s468 = smul.addr %s467, 8
        %s469 = scalar_lea.vmem %s9, %s468
        %v471 = vld [vmem:[%s421] sm:$0xff]
        %v472 = vld [vmem:[%s421 + $0x8] sm:$0xf]
        %v473 = vld [vmem:[%s421 + $0xc] sm:$0xff]
        %v474 = vld [vmem:[%s421 + $0x14] sm:$0xf]
        %v475 = vld [vmem:[%s421 + $0x18] sm:$0xff]
        %v476 = vld [vmem:[%s421 + $0x20] sm:$0xf]
        %v477 = vld [vmem:[%s421 + $0x24] sm:$0xff]
        %v478 = vld [vmem:[%s421 + $0x2c] sm:$0xf]
        %v479 = vld [vmem:[%s421 + $0x30] sm:$0xff]
        %v480 = vld [vmem:[%s421 + $0x38] sm:$0xf]
        %v481 = vld [vmem:[%s421 + $0x3c] sm:$0xff]
        %v482 = vld [vmem:[%s421 + $0x44] sm:$0xf]
        %v483 = vld [vmem:[%s421 + $0x48] sm:$0xff]
        %v484 = vld [vmem:[%s421 + $0x50] sm:$0xf]
        %v485 = vld [vmem:[%s421 + $0x54] sm:$0xff]
        %v486 = vld [vmem:[%s421 + $0x5c] sm:$0xf]
        %v487 = vld [vmem:[%s421 + $0x60] sm:$0xff]
        %v488 = vld [vmem:[%s421 + $0x68] sm:$0xf]
        %v489 = vld [vmem:[%s421 + $0x6c] sm:$0xff]
        %v490 = vld [vmem:[%s421 + $0x74] sm:$0xf]
        %v491 = vld [vmem:[%s421 + $0x78] sm:$0xff]
        %v492 = vld [vmem:[%s421 + $0x80] sm:$0xf]
        %v493 = vld [vmem:[%s421 + $0x84] sm:$0xff]
        %v494 = vld [vmem:[%s421 + $0x8c] sm:$0xf]
        %v495 = vld [vmem:[%s421 + $0x90] sm:$0xff]
        %v496 = vld [vmem:[%s421 + $0x98] sm:$0xf]
        %v497 = vld [vmem:[%s421 + $0x9c] sm:$0xff]
        %v498 = vld [vmem:[%s421 + $0xa4] sm:$0xf]
        %v499 = vld [vmem:[%s421 + $0xa8] sm:$0xff]
        %v500 = vld [vmem:[%s421 + $0xb0] sm:$0xf]
        %v501 = vld [vmem:[%s421 + $0xb4] sm:$0xff]
        %v502 = vld [vmem:[%s421 + $0xbc] sm:$0xf]
        %v503 = vld [vmem:[%s2] sm:$0xff]
        %v504 = vld [vmem:[%s2 + $0x8] sm:$0xff]
        %v505 = vld [vmem:[%s2 + $0x10] sm:$0xff]
        %v506 = vld [vmem:[%s2 + $0x18] sm:$0xff]
        %v507 = vld [vmem:[%s2 + $0x20] sm:$0xff]
        %v508 = vld [vmem:[%s2 + $0x28] sm:$0xff]
        %v509 = vld [vmem:[%s2 + $0x30] sm:$0xff]
        %v510 = vld [vmem:[%s2 + $0x38] sm:$0xff]
        %v511 = vld [vmem:[%s2 + $0x40] sm:$0xff]
        %v512 = vld [vmem:[%s2 + $0x48] sm:$0xff]
        %v513 = vld [vmem:[%s2 + $0x50] sm:$0xff]
        %v514 = vld [vmem:[%s2 + $0x58] sm:$0xff]
        %v515 = vld [vmem:[%s2 + $0x60] sm:$0xff]
        %v516 = vld [vmem:[%s2 + $0x68] sm:$0xff]
        %v517 = vld [vmem:[%s2 + $0x70] sm:$0xff]
        %v518 = vld [vmem:[%s2 + $0x78] sm:$0xff]
        %v519 = vld [vmem:[%s2 + $0x80] sm:$0xff]
        %v520 = vld [vmem:[%s2 + $0x88] sm:$0xff]
        %v521 = vld [vmem:[%s2 + $0x90] sm:$0xff]
        %v522 = vld [vmem:[%s2 + $0x98] sm:$0xff]
        %v523 = vld [vmem:[%s2 + $0xa0] sm:$0xff]
        %v524 = vld [vmem:[%s2 + $0xa8] sm:$0xff]
        %v525 = vld [vmem:[%s2 + $0xb0] sm:$0xff]
        %v526 = vld [vmem:[%s2 + $0xb8] sm:$0xff]
        %v527 = vld [vmem:[%s2 + $0xc0] sm:$0xff]
        %v528 = vld [vmem:[%s2 + $0xc8] sm:$0xff]
        %v529 = vld [vmem:[%s2 + $0xd0] sm:$0xff]
        %v530 = vld [vmem:[%s2 + $0xd8] sm:$0xff]
        %v531 = vld [vmem:[%s2 + $0xe0] sm:$0xff]
        %v532 = vld [vmem:[%s2 + $0xe8] sm:$0xff]
        %v533 = vld [vmem:[%s2 + $0xf0] sm:$0xff]
        %v534 = vld [vmem:[%s2 + $0xf8] sm:$0xff]
        %v535 = vld [vmem:[%s2 + $0x100] sm:$0xff]
        %v536 = vld [vmem:[%s2 + $0x108] sm:$0xff]
        %v537 = vld [vmem:[%s2 + $0x110] sm:$0xff]
        %v538 = vld [vmem:[%s2 + $0x118] sm:$0xff]
        %v539 = vld [vmem:[%s2 + $0x120] sm:$0xff]
        %v540 = vld [vmem:[%s2 + $0x128] sm:$0xff]
        %v541 = vld [vmem:[%s2 + $0x130] sm:$0xff]
        %v542 = vld [vmem:[%s2 + $0x138] sm:$0xff]
        %v543 = vld [vmem:[%s2 + $0x140] sm:$0xff]
        %v544 = vld [vmem:[%s2 + $0x148] sm:$0xff]
        %v545 = vld [vmem:[%s2 + $0x150] sm:$0xff]
        %v546 = vld [vmem:[%s2 + $0x158] sm:$0xff]
        %v547 = vld [vmem:[%s2 + $0x160] sm:$0xff]
        %v548 = vld [vmem:[%s2 + $0x168] sm:$0xff]
        %v549 = vld [vmem:[%s2 + $0x170] sm:$0xff]
        %v550 = vld [vmem:[%s2 + $0x178] sm:$0xff]
        %v551 = vld [vmem:[%s2 + $0x180] sm:$0xff]
        %v552 = vld [vmem:[%s2 + $0x188] sm:$0xff]
        %v553 = vld [vmem:[%s2 + $0x190] sm:$0xff]
        %v554 = vld [vmem:[%s2 + $0x198] sm:$0xff]
        %v555 = vld [vmem:[%s2 + $0x1a0] sm:$0xff]
        %v556 = vld [vmem:[%s2 + $0x1a8] sm:$0xff]
        %v557 = vld [vmem:[%s2 + $0x1b0] sm:$0xff]
        %v558 = vld [vmem:[%s2 + $0x1b8] sm:$0xff]
        %v559 = vld [vmem:[%s2 + $0x1c0] sm:$0xff]
        %v560 = vld [vmem:[%s2 + $0x1c8] sm:$0xff]
        %v561 = vld [vmem:[%s2 + $0x1d0] sm:$0xff]
        %v562 = vld [vmem:[%s2 + $0x1d8] sm:$0xff]
        %v563 = vld [vmem:[%s2 + $0x1e0] sm:$0xff]
        %v564 = vld [vmem:[%s2 + $0x1e8] sm:$0xff]
        %v565 = vld [vmem:[%s2 + $0x1f0] sm:$0xff]
        %v566 = vld [vmem:[%s2 + $0x1f8] sm:$0xff]
        %v567 = vld [vmem:[%s2 + $0x200] sm:$0xff]
        %v568 = vld [vmem:[%s2 + $0x208] sm:$0xff]
        %v569 = vld [vmem:[%s2 + $0x210] sm:$0xff]
        %v570 = vld [vmem:[%s2 + $0x218] sm:$0xff]
        %v571 = vld [vmem:[%s2 + $0x220] sm:$0xff]
        %v572 = vld [vmem:[%s2 + $0x228] sm:$0xff]
        %v573 = vld [vmem:[%s2 + $0x230] sm:$0xff]
        %v574 = vld [vmem:[%s2 + $0x238] sm:$0xff]
        %v575 = vld [vmem:[%s2 + $0x240] sm:$0xff]
        %v576 = vld [vmem:[%s2 + $0x248] sm:$0xff]
        %v577 = vld [vmem:[%s2 + $0x250] sm:$0xff]
        %v578 = vld [vmem:[%s2 + $0x258] sm:$0xff]
        %v579 = vld [vmem:[%s2 + $0x260] sm:$0xff]
        %v580 = vld [vmem:[%s2 + $0x268] sm:$0xff]
        %v581 = vld [vmem:[%s2 + $0x270] sm:$0xff]
        %v582 = vld [vmem:[%s2 + $0x278] sm:$0xff]
        %v583 = vld [vmem:[%s2 + $0x280] sm:$0xff]
        %v584 = vld [vmem:[%s2 + $0x288] sm:$0xff]
        %v585 = vld [vmem:[%s2 + $0x290] sm:$0xff]
        %v586 = vld [vmem:[%s2 + $0x298] sm:$0xff]
        %v587 = vld [vmem:[%s2 + $0x2a0] sm:$0xff]
        %v588 = vld [vmem:[%s2 + $0x2a8] sm:$0xff]
        %v589 = vld [vmem:[%s2 + $0x2b0] sm:$0xff]
        %v590 = vld [vmem:[%s2 + $0x2b8] sm:$0xff]
        %v591 = vld [vmem:[%s2 + $0x2c0] sm:$0xff]
        %v592 = vld [vmem:[%s2 + $0x2c8] sm:$0xff]
        %v593 = vld [vmem:[%s2 + $0x2d0] sm:$0xff]
        %v594 = vld [vmem:[%s2 + $0x2d8] sm:$0xff]
        %v595 = vld [vmem:[%s2 + $0x2e0] sm:$0xff]
        %v596 = vld [vmem:[%s2 + $0x2e8] sm:$0xff]
        %v597 = vld [vmem:[%s2 + $0x2f0] sm:$0xff]
        %v598 = vld [vmem:[%s2 + $0x2f8] sm:$0xff]
        %v599 = vld [vmem:[%s2 + $0x300] sm:$0xff]
        %v600 = vld [vmem:[%s2 + $0x308] sm:$0xff]
        %v601 = vld [vmem:[%s2 + $0x310] sm:$0xff]
        %v602 = vld [vmem:[%s2 + $0x318] sm:$0xff]
        %v603 = vld [vmem:[%s2 + $0x320] sm:$0xff]
        %v604 = vld [vmem:[%s2 + $0x328] sm:$0xff]
        %v605 = vld [vmem:[%s2 + $0x330] sm:$0xff]
        %v606 = vld [vmem:[%s2 + $0x338] sm:$0xff]
        %v607 = vld [vmem:[%s2 + $0x340] sm:$0xff]
        %v608 = vld [vmem:[%s2 + $0x348] sm:$0xff]
        %v609 = vld [vmem:[%s2 + $0x350] sm:$0xff]
        %v610 = vld [vmem:[%s2 + $0x358] sm:$0xff]
        %v611 = vld [vmem:[%s2 + $0x360] sm:$0xff]
        %v612 = vld [vmem:[%s2 + $0x368] sm:$0xff]
        %v613 = vld [vmem:[%s2 + $0x370] sm:$0xff]
        %v614 = vld [vmem:[%s2 + $0x378] sm:$0xff]
        %v615 = vld [vmem:[%s2 + $0x380] sm:$0xff]
        %v616 = vld [vmem:[%s2 + $0x388] sm:$0xff]
        %v617 = vld [vmem:[%s2 + $0x390] sm:$0xff]
        %v618 = vld [vmem:[%s2 + $0x398] sm:$0xff]
        %v619 = vld [vmem:[%s2 + $0x3a0] sm:$0xff]
        %v620 = vld [vmem:[%s2 + $0x3a8] sm:$0xff]
        %v621 = vld [vmem:[%s2 + $0x3b0] sm:$0xff]
        %v622 = vld [vmem:[%s2 + $0x3b8] sm:$0xff]
        %v623 = vld [vmem:[%s2 + $0x3c0] sm:$0xff]
        %v624 = vld [vmem:[%s2 + $0x3c8] sm:$0xff]
        %v625 = vld [vmem:[%s2 + $0x3d0] sm:$0xff]
        %v626 = vld [vmem:[%s2 + $0x3d8] sm:$0xff]
        %v627 = vld [vmem:[%s2 + $0x3e0] sm:$0xff]
        %v628 = vld [vmem:[%s2 + $0x3e8] sm:$0xff]
        %v629 = vld [vmem:[%s2 + $0x3f0] sm:$0xff]
        %v630 = vld [vmem:[%s2 + $0x3f8] sm:$0xff]
        %v631 = vld [vmem:[%s2 + $0x400] sm:$0xff]
        %v632 = vld [vmem:[%s2 + $0x408] sm:$0xff]
        %v633 = vld [vmem:[%s2 + $0x410] sm:$0xff]
        %v634 = vld [vmem:[%s2 + $0x418] sm:$0xff]
        %v635 = vld [vmem:[%s2 + $0x420] sm:$0xff]
        %v636 = vld [vmem:[%s2 + $0x428] sm:$0xff]
        %v637 = vld [vmem:[%s2 + $0x430] sm:$0xff]
        %v638 = vld [vmem:[%s2 + $0x438] sm:$0xff]
        %v639 = vld [vmem:[%s2 + $0x440] sm:$0xff]
        %v640 = vld [vmem:[%s2 + $0x448] sm:$0xff]
        %v641 = vld [vmem:[%s2 + $0x450] sm:$0xff]
        %v642 = vld [vmem:[%s2 + $0x458] sm:$0xff]
        %v643 = vld [vmem:[%s2 + $0x460] sm:$0xff]
        %v644 = vld [vmem:[%s2 + $0x468] sm:$0xff]
        %v645 = vld [vmem:[%s2 + $0x470] sm:$0xff]
        %v646 = vld [vmem:[%s2 + $0x478] sm:$0xff]
        %v679 = vunpack.c.l.b16 %v471
        %v680 = vunpack.c.h.b16 %v471
        %v681 = vunpack.c.l.b16 %v472
        %v682 = vunpack.c.l.b16 %v473
        %v683 = vunpack.c.h.b16 %v473
        %v684 = vunpack.c.l.b16 %v474
        %v685 = vunpack.c.l.b16 %v475
        %v686 = vunpack.c.h.b16 %v475
        %v687 = vunpack.c.l.b16 %v476
        %v688 = vunpack.c.l.b16 %v477
        %v689 = vunpack.c.h.b16 %v477
        %v690 = vunpack.c.l.b16 %v478
        %v691 = vunpack.c.l.b16 %v479
        %v692 = vunpack.c.h.b16 %v479
        %v693 = vunpack.c.l.b16 %v480
        %v694 = vunpack.c.l.b16 %v481
        %v695 = vunpack.c.h.b16 %v481
        %v696 = vunpack.c.l.b16 %v482
        %v697 = vunpack.c.l.b16 %v483
        %v698 = vunpack.c.h.b16 %v483
        %v699 = vunpack.c.l.b16 %v484
        %v700 = vunpack.c.l.b16 %v485
        %v701 = vunpack.c.h.b16 %v485
        %v702 = vunpack.c.l.b16 %v486
        %v703 = vunpack.c.l.b16 %v487
        %v704 = vunpack.c.h.b16 %v487
        %v705 = vunpack.c.l.b16 %v488
        %v706 = vunpack.c.l.b16 %v489
        %v707 = vunpack.c.h.b16 %v489
        %v708 = vunpack.c.l.b16 %v490
        %v709 = vunpack.c.l.b16 %v491
        %v710 = vunpack.c.h.b16 %v491
        %v711 = vunpack.c.l.b16 %v492
        %v712 = vunpack.c.l.b16 %v493
        %v713 = vunpack.c.h.b16 %v493
        %v714 = vunpack.c.l.b16 %v494
        %v715 = vunpack.c.l.b16 %v495
        %v716 = vunpack.c.h.b16 %v495
        %v717 = vunpack.c.l.b16 %v496
        %v718 = vunpack.c.l.b16 %v497
        %v719 = vunpack.c.h.b16 %v497
        %v720 = vunpack.c.l.b16 %v498
        %v721 = vunpack.c.l.b16 %v499
        %v722 = vunpack.c.h.b16 %v499
        %v723 = vunpack.c.l.b16 %v500
        %v724 = vunpack.c.l.b16 %v501
        %v725 = vunpack.c.h.b16 %v501
        %v726 = vunpack.c.l.b16 %v502
        %v727 = vpack.c.b16 %v682, %v679
        %v728 = vpack.c.b16 %v683, %v680
        %v729 = vpack.c.b16 %v684, %v681
        %v730 = vpack.c.b16 %v688, %v685
        %v731 = vpack.c.b16 %v689, %v686
        %v732 = vpack.c.b16 %v690, %v687
        %v733 = vpack.c.b16 %v694, %v691
        %v734 = vpack.c.b16 %v695, %v692
        %v735 = vpack.c.b16 %v696, %v693
        %v736 = vpack.c.b16 %v700, %v697
        %v737 = vpack.c.b16 %v701, %v698
        %v738 = vpack.c.b16 %v702, %v699
        %v739 = vpack.c.b16 %v706, %v703
        %v740 = vpack.c.b16 %v707, %v704
        %v741 = vpack.c.b16 %v708, %v705
        %v742 = vpack.c.b16 %v712, %v709
        %v743 = vpack.c.b16 %v713, %v710
        %v744 = vpack.c.b16 %v714, %v711
        %v745 = vpack.c.b16 %v718, %v715
        %v746 = vpack.c.b16 %v719, %v716
        %v747 = vpack.c.b16 %v720, %v717
        %v748 = vpack.c.b16 %v724, %v721
        %v749 = vpack.c.b16 %v725, %v722
        %v750 = vpack.c.b16 %v726, %v723
        %v911 = vunpack.c.l.b16 %v503
        %v912 = vunpack.c.h.b16 %v503
        %v913 = vunpack.c.l.b16 %v504
        %v914 = vunpack.c.h.b16 %v504
        %v915 = vunpack.c.l.b16 %v505
        %v916 = vunpack.c.h.b16 %v505
        %v917 = vunpack.c.l.b16 %v506
        %v918 = vunpack.c.h.b16 %v506
        %v919 = vunpack.c.l.b16 %v507
        %v920 = vunpack.c.h.b16 %v507
        %v921 = vunpack.c.l.b16 %v508
        %v922 = vunpack.c.h.b16 %v508
        %v923 = vunpack.c.l.b16 %v509
        %v924 = vunpack.c.h.b16 %v509
        %v925 = vunpack.c.l.b16 %v510
        %v926 = vunpack.c.h.b16 %v510
        %v927 = vunpack.c.l.b16 %v511
        %v928 = vunpack.c.h.b16 %v511
        %v929 = vunpack.c.l.b16 %v512
        %v930 = vunpack.c.h.b16 %v512
        %v931 = vunpack.c.l.b16 %v513
        %v932 = vunpack.c.h.b16 %v513
        %v933 = vunpack.c.l.b16 %v514
        %v934 = vunpack.c.h.b16 %v514
        %v935 = vunpack.c.l.b16 %v515
        %v936 = vunpack.c.h.b16 %v515
        %v937 = vunpack.c.l.b16 %v516
        %v938 = vunpack.c.h.b16 %v516
        %v939 = vunpack.c.l.b16 %v517
        %v940 = vunpack.c.h.b16 %v517
        %v941 = vunpack.c.l.b16 %v518
        %v942 = vunpack.c.h.b16 %v518
        %v943 = vunpack.c.l.b16 %v519
        %v944 = vunpack.c.h.b16 %v519
        %v945 = vunpack.c.l.b16 %v520
        %v946 = vunpack.c.h.b16 %v520
        %v947 = vunpack.c.l.b16 %v521
        %v948 = vunpack.c.h.b16 %v521
        %v949 = vunpack.c.l.b16 %v522
        %v950 = vunpack.c.h.b16 %v522
        %v951 = vunpack.c.l.b16 %v523
        %v952 = vunpack.c.h.b16 %v523
        %v953 = vunpack.c.l.b16 %v524
        %v954 = vunpack.c.h.b16 %v524
        %v955 = vunpack.c.l.b16 %v525
        %v956 = vunpack.c.h.b16 %v525
        %v957 = vunpack.c.l.b16 %v526
        %v958 = vunpack.c.h.b16 %v526
        %v959 = vunpack.c.l.b16 %v527
        %v960 = vunpack.c.h.b16 %v527
        %v961 = vunpack.c.l.b16 %v528
        %v962 = vunpack.c.h.b16 %v528
        %v963 = vunpack.c.l.b16 %v529
        %v964 = vunpack.c.h.b16 %v529
        %v965 = vunpack.c.l.b16 %v530
        %v966 = vunpack.c.h.b16 %v530
        %v967 = vunpack.c.l.b16 %v531
        %v968 = vunpack.c.h.b16 %v531
        %v969 = vunpack.c.l.b16 %v532
        %v970 = vunpack.c.h.b16 %v532
        %v971 = vunpack.c.l.b16 %v533
        %v972 = vunpack.c.h.b16 %v533
        %v973 = vunpack.c.l.b16 %v534
        %v974 = vunpack.c.h.b16 %v534
        %v975 = vunpack.c.l.b16 %v535
        %v976 = vunpack.c.h.b16 %v535
        %v977 = vunpack.c.l.b16 %v536
        %v978 = vunpack.c.h.b16 %v536
        %v979 = vunpack.c.l.b16 %v537
        %v980 = vunpack.c.h.b16 %v537
        %v981 = vunpack.c.l.b16 %v538
        %v982 = vunpack.c.h.b16 %v538
        %v983 = vunpack.c.l.b16 %v539
        %v984 = vunpack.c.h.b16 %v539
        %v985 = vunpack.c.l.b16 %v540
        %v986 = vunpack.c.h.b16 %v540
        %v987 = vunpack.c.l.b16 %v541
        %v988 = vunpack.c.h.b16 %v541
        %v989 = vunpack.c.l.b16 %v542
        %v990 = vunpack.c.h.b16 %v542
        %v991 = vunpack.c.l.b16 %v543
        %v992 = vunpack.c.h.b16 %v543
        %v993 = vunpack.c.l.b16 %v544
        %v994 = vunpack.c.h.b16 %v544
        %v995 = vunpack.c.l.b16 %v545
        %v996 = vunpack.c.h.b16 %v545
        %v997 = vunpack.c.l.b16 %v546
        %v998 = vunpack.c.h.b16 %v546
        %v999 = vunpack.c.l.b16 %v547
        %v1000 = vunpack.c.h.b16 %v547
        %v1001 = vunpack.c.l.b16 %v548
        %v1002 = vunpack.c.h.b16 %v548
        %v1003 = vunpack.c.l.b16 %v549
        %v1004 = vunpack.c.h.b16 %v549
        %v1005 = vunpack.c.l.b16 %v550
        %v1006 = vunpack.c.h.b16 %v550
        %v1007 = vunpack.c.l.b16 %v551
        %v1008 = vunpack.c.h.b16 %v551
        %v1009 = vunpack.c.l.b16 %v552
        %v1010 = vunpack.c.h.b16 %v552
        %v1011 = vunpack.c.l.b16 %v553
        %v1012 = vunpack.c.h.b16 %v553
        %v1013 = vunpack.c.l.b16 %v554
        %v1014 = vunpack.c.h.b16 %v554
        %v1015 = vunpack.c.l.b16 %v555
        %v1016 = vunpack.c.h.b16 %v555
        %v1017 = vunpack.c.l.b16 %v556
        %v1018 = vunpack.c.h.b16 %v556
        %v1019 = vunpack.c.l.b16 %v557
        %v1020 = vunpack.c.h.b16 %v557
        %v1021 = vunpack.c.l.b16 %v558
        %v1022 = vunpack.c.h.b16 %v558
        %v1023 = vunpack.c.l.b16 %v559
        %v1024 = vunpack.c.h.b16 %v559
        %v1025 = vunpack.c.l.b16 %v560
        %v1026 = vunpack.c.h.b16 %v560
        %v1027 = vunpack.c.l.b16 %v561
        %v1028 = vunpack.c.h.b16 %v561
        %v1029 = vunpack.c.l.b16 %v562
        %v1030 = vunpack.c.h.b16 %v562
        %v1031 = vunpack.c.l.b16 %v563
        %v1032 = vunpack.c.h.b16 %v563
        %v1033 = vunpack.c.l.b16 %v564
        %v1034 = vunpack.c.h.b16 %v564
        %v1035 = vunpack.c.l.b16 %v565
        %v1036 = vunpack.c.h.b16 %v565
        %v1037 = vunpack.c.l.b16 %v566
        %v1038 = vunpack.c.h.b16 %v566
        %v1039 = vunpack.c.l.b16 %v567
        %v1040 = vunpack.c.h.b16 %v567
        %v1041 = vunpack.c.l.b16 %v568
        %v1042 = vunpack.c.h.b16 %v568
        %v1043 = vunpack.c.l.b16 %v569
        %v1044 = vunpack.c.h.b16 %v569
        %v1045 = vunpack.c.l.b16 %v570
        %v1046 = vunpack.c.h.b16 %v570
        %v1047 = vunpack.c.l.b16 %v571
        %v1048 = vunpack.c.h.b16 %v571
        %v1049 = vunpack.c.l.b16 %v572
        %v1050 = vunpack.c.h.b16 %v572
        %v1051 = vunpack.c.l.b16 %v573
        %v1052 = vunpack.c.h.b16 %v573
        %v1053 = vunpack.c.l.b16 %v574
        %v1054 = vunpack.c.h.b16 %v574
        %v1055 = vunpack.c.l.b16 %v575
        %v1056 = vunpack.c.h.b16 %v575
        %v1057 = vunpack.c.l.b16 %v576
        %v1058 = vunpack.c.h.b16 %v576
        %v1059 = vunpack.c.l.b16 %v577
        %v1060 = vunpack.c.h.b16 %v577
        %v1061 = vunpack.c.l.b16 %v578
        %v1062 = vunpack.c.h.b16 %v578
        %v1063 = vunpack.c.l.b16 %v579
        %v1064 = vunpack.c.h.b16 %v579
        %v1065 = vunpack.c.l.b16 %v580
        %v1066 = vunpack.c.h.b16 %v580
        %v1067 = vunpack.c.l.b16 %v581
        %v1068 = vunpack.c.h.b16 %v581
        %v1069 = vunpack.c.l.b16 %v582
        %v1070 = vunpack.c.h.b16 %v582
        %v1071 = vunpack.c.l.b16 %v583
        %v1072 = vunpack.c.h.b16 %v583
        %v1073 = vunpack.c.l.b16 %v584
        %v1074 = vunpack.c.h.b16 %v584
        %v1075 = vunpack.c.l.b16 %v585
        %v1076 = vunpack.c.h.b16 %v585
        %v1077 = vunpack.c.l.b16 %v586
        %v1078 = vunpack.c.h.b16 %v586
        %v1079 = vunpack.c.l.b16 %v587
        %v1080 = vunpack.c.h.b16 %v587
        %v1081 = vunpack.c.l.b16 %v588
        %v1082 = vunpack.c.h.b16 %v588
        %v1083 = vunpack.c.l.b16 %v589
        %v1084 = vunpack.c.h.b16 %v589
        %v1085 = vunpack.c.l.b16 %v590
        %v1086 = vunpack.c.h.b16 %v590
        %v1087 = vunpack.c.l.b16 %v591
        %v1088 = vunpack.c.h.b16 %v591
        %v1089 = vunpack.c.l.b16 %v592
        %v1090 = vunpack.c.h.b16 %v592
        %v1091 = vunpack.c.l.b16 %v593
        %v1092 = vunpack.c.h.b16 %v593
        %v1093 = vunpack.c.l.b16 %v594
        %v1094 = vunpack.c.h.b16 %v594
        %v1095 = vunpack.c.l.b16 %v595
        %v1096 = vunpack.c.h.b16 %v595
        %v1097 = vunpack.c.l.b16 %v596
        %v1098 = vunpack.c.h.b16 %v596
        %v1099 = vunpack.c.l.b16 %v597
        %v1100 = vunpack.c.h.b16 %v597
        %v1101 = vunpack.c.l.b16 %v598
        %v1102 = vunpack.c.h.b16 %v598
        %v1103 = vunpack.c.l.b16 %v599
        %v1104 = vunpack.c.h.b16 %v599
        %v1105 = vunpack.c.l.b16 %v600
        %v1106 = vunpack.c.h.b16 %v600
        %v1107 = vunpack.c.l.b16 %v601
        %v1108 = vunpack.c.h.b16 %v601
        %v1109 = vunpack.c.l.b16 %v602
        %v1110 = vunpack.c.h.b16 %v602
        %v1111 = vunpack.c.l.b16 %v603
        %v1112 = vunpack.c.h.b16 %v603
        %v1113 = vunpack.c.l.b16 %v604
        %v1114 = vunpack.c.h.b16 %v604
        %v1115 = vunpack.c.l.b16 %v605
        %v1116 = vunpack.c.h.b16 %v605
        %v1117 = vunpack.c.l.b16 %v606
        %v1118 = vunpack.c.h.b16 %v606
        %v1119 = vunpack.c.l.b16 %v607
        %v1120 = vunpack.c.h.b16 %v607
        %v1121 = vunpack.c.l.b16 %v608
        %v1122 = vunpack.c.h.b16 %v608
        %v1123 = vunpack.c.l.b16 %v609
        %v1124 = vunpack.c.h.b16 %v609
        %v1125 = vunpack.c.l.b16 %v610
        %v1126 = vunpack.c.h.b16 %v610
        %v1127 = vunpack.c.l.b16 %v611
        %v1128 = vunpack.c.h.b16 %v611
        %v1129 = vunpack.c.l.b16 %v612
        %v1130 = vunpack.c.h.b16 %v612
        %v1131 = vunpack.c.l.b16 %v613
        %v1132 = vunpack.c.h.b16 %v613
        %v1133 = vunpack.c.l.b16 %v614
        %v1134 = vunpack.c.h.b16 %v614
        %v1135 = vunpack.c.l.b16 %v615
        %v1136 = vunpack.c.h.b16 %v615
        %v1137 = vunpack.c.l.b16 %v616
        %v1138 = vunpack.c.h.b16 %v616
        %v1139 = vunpack.c.l.b16 %v617
        %v1140 = vunpack.c.h.b16 %v617
        %v1141 = vunpack.c.l.b16 %v618
        %v1142 = vunpack.c.h.b16 %v618
        %v1143 = vunpack.c.l.b16 %v619
        %v1144 = vunpack.c.h.b16 %v619
        %v1145 = vunpack.c.l.b16 %v620
        %v1146 = vunpack.c.h.b16 %v620
        %v1147 = vunpack.c.l.b16 %v621
        %v1148 = vunpack.c.h.b16 %v621
        %v1149 = vunpack.c.l.b16 %v622
        %v1150 = vunpack.c.h.b16 %v622
        %v1151 = vunpack.c.l.b16 %v623
        %v1152 = vunpack.c.h.b16 %v623
        %v1153 = vunpack.c.l.b16 %v624
        %v1154 = vunpack.c.h.b16 %v624
        %v1155 = vunpack.c.l.b16 %v625
        %v1156 = vunpack.c.h.b16 %v625
        %v1157 = vunpack.c.l.b16 %v626
        %v1158 = vunpack.c.h.b16 %v626
        %v1159 = vunpack.c.l.b16 %v627
        %v1160 = vunpack.c.h.b16 %v627
        %v1161 = vunpack.c.l.b16 %v628
        %v1162 = vunpack.c.h.b16 %v628
        %v1163 = vunpack.c.l.b16 %v629
        %v1164 = vunpack.c.h.b16 %v629
        %v1165 = vunpack.c.l.b16 %v630
        %v1166 = vunpack.c.h.b16 %v630
        %v1167 = vunpack.c.l.b16 %v631
        %v1168 = vunpack.c.h.b16 %v631
        %v1169 = vunpack.c.l.b16 %v632
        %v1170 = vunpack.c.h.b16 %v632
        %v1171 = vunpack.c.l.b16 %v633
        %v1172 = vunpack.c.h.b16 %v633
        %v1173 = vunpack.c.l.b16 %v634
        %v1174 = vunpack.c.h.b16 %v634
        %v1175 = vunpack.c.l.b16 %v635
        %v1176 = vunpack.c.h.b16 %v635
        %v1177 = vunpack.c.l.b16 %v636
        %v1178 = vunpack.c.h.b16 %v636
        %v1179 = vunpack.c.l.b16 %v637
        %v1180 = vunpack.c.h.b16 %v637
        %v1181 = vunpack.c.l.b16 %v638
        %v1182 = vunpack.c.h.b16 %v638
        %v1183 = vunpack.c.l.b16 %v639
        %v1184 = vunpack.c.h.b16 %v639
        %v1185 = vunpack.c.l.b16 %v640
        %v1186 = vunpack.c.h.b16 %v640
        %v1187 = vunpack.c.l.b16 %v641
        %v1188 = vunpack.c.h.b16 %v641
        %v1189 = vunpack.c.l.b16 %v642
        %v1190 = vunpack.c.h.b16 %v642
        %v1191 = vunpack.c.l.b16 %v643
        %v1192 = vunpack.c.h.b16 %v643
        %v1193 = vunpack.c.l.b16 %v644
        %v1194 = vunpack.c.h.b16 %v644
        %v1195 = vunpack.c.l.b16 %v645
        %v1196 = vunpack.c.h.b16 %v645
        %v1197 = vunpack.c.l.b16 %v646
        %v1198 = vunpack.c.h.b16 %v646
        %v1199 = vpack.c.b16 %v919, %v911
        %v1200 = vpack.c.b16 %v920, %v912
        %v1201 = vpack.c.b16 %v921, %v913
        %v1202 = vpack.c.b16 %v922, %v914
        %v1203 = vpack.c.b16 %v923, %v915
        %v1204 = vpack.c.b16 %v924, %v916
        %v1205 = vpack.c.b16 %v925, %v917
        %v1206 = vpack.c.b16 %v926, %v918
        %v1207 = vpack.c.b16 %v935, %v927
        %v1208 = vpack.c.b16 %v936, %v928
        %v1209 = vpack.c.b16 %v937, %v929
        %v1210 = vpack.c.b16 %v938, %v930
        %v1211 = vpack.c.b16 %v939, %v931
        %v1212 = vpack.c.b16 %v940, %v932
        %v1213 = vpack.c.b16 %v941, %v933
        %v1214 = vpack.c.b16 %v942, %v934
        %v1215 = vpack.c.b16 %v951, %v943
        %v1216 = vpack.c.b16 %v952, %v944
        %v1217 = vpack.c.b16 %v953, %v945
        %v1218 = vpack.c.b16 %v954, %v946
        %v1219 = vpack.c.b16 %v955, %v947
        %v1220 = vpack.c.b16 %v956, %v948
        %v1221 = vpack.c.b16 %v957, %v949
        %v1222 = vpack.c.b16 %v958, %v950
        %v1223 = vpack.c.b16 %v967, %v959
        %v1224 = vpack.c.b16 %v968, %v960
        %v1225 = vpack.c.b16 %v969, %v961
        %v1226 = vpack.c.b16 %v970, %v962
        %v1227 = vpack.c.b16 %v971, %v963
        %v1228 = vpack.c.b16 %v972, %v964
        %v1229 = vpack.c.b16 %v973, %v965
        %v1230 = vpack.c.b16 %v974, %v966
        %v1231 = vpack.c.b16 %v983, %v975
        %v1232 = vpack.c.b16 %v984, %v976
        %v1233 = vpack.c.b16 %v985, %v977
        %v1234 = vpack.c.b16 %v986, %v978
        %v1235 = vpack.c.b16 %v987, %v979
        %v1236 = vpack.c.b16 %v988, %v980
        %v1237 = vpack.c.b16 %v989, %v981
        %v1238 = vpack.c.b16 %v990, %v982
        %v1239 = vpack.c.b16 %v999, %v991
        %v1240 = vpack.c.b16 %v1000, %v992
        %v1241 = vpack.c.b16 %v1001, %v993
        %v1242 = vpack.c.b16 %v1002, %v994
        %v1243 = vpack.c.b16 %v1003, %v995
        %v1244 = vpack.c.b16 %v1004, %v996
        %v1245 = vpack.c.b16 %v1005, %v997
        %v1246 = vpack.c.b16 %v1006, %v998
        %v1247 = vpack.c.b16 %v1015, %v1007
        %v1248 = vpack.c.b16 %v1016, %v1008
        %v1249 = vpack.c.b16 %v1017, %v1009
        %v1250 = vpack.c.b16 %v1018, %v1010
        %v1251 = vpack.c.b16 %v1019, %v1011
        %v1252 = vpack.c.b16 %v1020, %v1012
        %v1253 = vpack.c.b16 %v1021, %v1013
        %v1254 = vpack.c.b16 %v1022, %v1014
        %v1255 = vpack.c.b16 %v1031, %v1023
        %v1256 = vpack.c.b16 %v1032, %v1024
        %v1257 = vpack.c.b16 %v1033, %v1025
        %v1258 = vpack.c.b16 %v1034, %v1026
        %v1259 = vpack.c.b16 %v1035, %v1027
        %v1260 = vpack.c.b16 %v1036, %v1028
        %v1261 = vpack.c.b16 %v1037, %v1029
        %v1262 = vpack.c.b16 %v1038, %v1030
        %v1263 = vpack.c.b16 %v1047, %v1039
        %v1264 = vpack.c.b16 %v1048, %v1040
        %v1265 = vpack.c.b16 %v1049, %v1041
        %v1266 = vpack.c.b16 %v1050, %v1042
        %v1267 = vpack.c.b16 %v1051, %v1043
        %v1268 = vpack.c.b16 %v1052, %v1044
        %v1269 = vpack.c.b16 %v1053, %v1045
        %v1270 = vpack.c.b16 %v1054, %v1046
        %v1271 = vpack.c.b16 %v1063, %v1055
        %v1272 = vpack.c.b16 %v1064, %v1056
        %v1273 = vpack.c.b16 %v1065, %v1057
        %v1274 = vpack.c.b16 %v1066, %v1058
        %v1275 = vpack.c.b16 %v1067, %v1059
        %v1276 = vpack.c.b16 %v1068, %v1060
        %v1277 = vpack.c.b16 %v1069, %v1061
        %v1278 = vpack.c.b16 %v1070, %v1062
        %v1279 = vpack.c.b16 %v1079, %v1071
        %v1280 = vpack.c.b16 %v1080, %v1072
        %v1281 = vpack.c.b16 %v1081, %v1073
        %v1282 = vpack.c.b16 %v1082, %v1074
        %v1283 = vpack.c.b16 %v1083, %v1075
        %v1284 = vpack.c.b16 %v1084, %v1076
        %v1285 = vpack.c.b16 %v1085, %v1077
        %v1286 = vpack.c.b16 %v1086, %v1078
        %v1287 = vpack.c.b16 %v1095, %v1087
        %v1288 = vpack.c.b16 %v1096, %v1088
        %v1289 = vpack.c.b16 %v1097, %v1089
        %v1290 = vpack.c.b16 %v1098, %v1090
        %v1291 = vpack.c.b16 %v1099, %v1091
        %v1292 = vpack.c.b16 %v1100, %v1092
        %v1293 = vpack.c.b16 %v1101, %v1093
        %v1294 = vpack.c.b16 %v1102, %v1094
        %v1295 = vpack.c.b16 %v1111, %v1103
        %v1296 = vpack.c.b16 %v1112, %v1104
        %v1297 = vpack.c.b16 %v1113, %v1105
        %v1298 = vpack.c.b16 %v1114, %v1106
        %v1299 = vpack.c.b16 %v1115, %v1107
        %v1300 = vpack.c.b16 %v1116, %v1108
        %v1301 = vpack.c.b16 %v1117, %v1109
        %v1302 = vpack.c.b16 %v1118, %v1110
        %v1303 = vpack.c.b16 %v1127, %v1119
        %v1304 = vpack.c.b16 %v1128, %v1120
        %v1305 = vpack.c.b16 %v1129, %v1121
        %v1306 = vpack.c.b16 %v1130, %v1122
        %v1307 = vpack.c.b16 %v1131, %v1123
        %v1308 = vpack.c.b16 %v1132, %v1124
        %v1309 = vpack.c.b16 %v1133, %v1125
        %v1310 = vpack.c.b16 %v1134, %v1126
        %v1311 = vpack.c.b16 %v1143, %v1135
        %v1312 = vpack.c.b16 %v1144, %v1136
        %v1313 = vpack.c.b16 %v1145, %v1137
        %v1314 = vpack.c.b16 %v1146, %v1138
        %v1315 = vpack.c.b16 %v1147, %v1139
        %v1316 = vpack.c.b16 %v1148, %v1140
        %v1317 = vpack.c.b16 %v1149, %v1141
        %v1318 = vpack.c.b16 %v1150, %v1142
        %v1319 = vpack.c.b16 %v1159, %v1151
        %v1320 = vpack.c.b16 %v1160, %v1152
        %v1321 = vpack.c.b16 %v1161, %v1153
        %v1322 = vpack.c.b16 %v1162, %v1154
        %v1323 = vpack.c.b16 %v1163, %v1155
        %v1324 = vpack.c.b16 %v1164, %v1156
        %v1325 = vpack.c.b16 %v1165, %v1157
        %v1326 = vpack.c.b16 %v1166, %v1158
        %v1327 = vpack.c.b16 %v1175, %v1167
        %v1328 = vpack.c.b16 %v1176, %v1168
        %v1329 = vpack.c.b16 %v1177, %v1169
        %v1330 = vpack.c.b16 %v1178, %v1170
        %v1331 = vpack.c.b16 %v1179, %v1171
        %v1332 = vpack.c.b16 %v1180, %v1172
        %v1333 = vpack.c.b16 %v1181, %v1173
        %v1334 = vpack.c.b16 %v1182, %v1174
        %v1335 = vpack.c.b16 %v1191, %v1183
        %v1336 = vpack.c.b16 %v1192, %v1184
        %v1337 = vpack.c.b16 %v1193, %v1185
        %v1338 = vpack.c.b16 %v1194, %v1186
        %v1339 = vpack.c.b16 %v1195, %v1187
        %v1340 = vpack.c.b16 %v1196, %v1188
        %v1341 = vpack.c.b16 %v1197, %v1189
        %v1342 = vpack.c.b16 %v1198, %v1190
        %vm1487 = vcmask 261120
        %v1489 = vsel %vm1487, %v729, 0
        %v1492 = vsel %vm1487, %v732, 0
        %v1495 = vsel %vm1487, %v735, 0
        %v1498 = vsel %vm1487, %v738, 0
        %v1501 = vsel %vm1487, %v741, 0
        %v1504 = vsel %vm1487, %v744, 0
        %v1507 = vsel %vm1487, %v747, 0
        %v1510 = vsel %vm1487, %v750, 0
        %1512 = vmatprep.subr.bf16.mxu0 %v1200
        %1513 = vmatpush1.bf16.msra.mxu0 %v1199
        %1514 = vmatprep.subr.bf16.mxu0 %v1208
        %1515 = vmatpush1.bf16.msra.mxu0 %v1207
        %1516 = vmatprep.subr.bf16.mxu0 %v1216
        %1517 = vmatpush1.bf16.msra.mxu0 %v1215
        %1518 = vmatprep.subr.bf16.mxu0 %v1224
        %1519 = vmatpush1.bf16.msra.mxu0 %v1223
        %1520 = vmatprep.subr.bf16.mxu0 %v1232
        %1521 = vmatpush1.bf16.msra.mxu0 %v1231
        %1522 = vmatprep.subr.bf16.mxu0 %v1240
        %1523 = vmatpush1.bf16.msra.mxu0 %v1239
        %1524 = vmatprep.subr.bf16.mxu0 %v1248
        %1525 = vmatpush1.bf16.msra.mxu0 %v1247
        %1526 = vmatprep.subr.bf16.mxu0 %v1256
        %1527 = vmatpush1.bf16.msra.mxu0 %v1255
        %1528 = vmatprep.subr.bf16.mxu0 %v1264
        %1529 = vmatpush1.bf16.msra.mxu0 %v1263
        %1530 = vmatprep.subr.bf16.mxu0 %v1272
        %1531 = vmatpush1.bf16.msra.mxu0 %v1271
        %1532 = vmatprep.subr.bf16.mxu0 %v1280
        %1533 = vmatpush1.bf16.msra.mxu0 %v1279
        %1534 = vmatprep.subr.bf16.mxu0 %v1288
        %1535 = vmatpush1.bf16.msra.mxu0 %v1287
        %1536 = vmatprep.subr.bf16.mxu0 %v1296
        %1537 = vmatpush1.bf16.msra.mxu0 %v1295
        %1538 = vmatprep.subr.bf16.mxu0 %v1304
        %1539 = vmatpush1.bf16.msra.mxu0 %v1303
        %1540 = vmatprep.subr.bf16.mxu0 %v1312
        %1541 = vmatpush1.bf16.msra.mxu0 %v1311
        %1542 = vmatprep.subr.bf16.mxu0 %v1320
        %1543 = vmatpush1.bf16.msra.mxu0 %v1319
        %1544 = vmatprep.mubr.bf16.mxu0 %v728
        %1545 = vmatmul.mubr.bf16.gmra.mrb[0].mxu0 %v727
        %v1546 = vpop.f32.mrb[0].mxu0
        %v1547 = vadd.f32 0.0, %v1546
        %v1548 = vpop.f32.mrb[0].mxu0
        %v1549 = vadd.f32 0.0, %v1548
        %v1550 = vpop.f32.mrb[0].mxu0
        %v1551 = vadd.f32 0.0, %v1550
        %v1552 = vpop.f32.mrb[0].mxu0
        %v1553 = vadd.f32 0.0, %v1552
        %1554 = vmatprep.mubr.bf16.mxu0 %v731
        %1555 = vmatmul.mubr.bf16.gmra.mrb[0].mxu0 %v730
        %v1556 = vpop.f32.mrb[0].mxu0
        %v1557 = vadd.f32 0.0, %v1556
        %v1558 = vpop.f32.mrb[0].mxu0
        %v1559 = vadd.f32 0.0, %v1558
        %v1560 = vpop.f32.mrb[0].mxu0
        %v1561 = vadd.f32 0.0, %v1560
        %v1562 = vpop.f32.mrb[0].mxu0
        %v1563 = vadd.f32 0.0, %v1562
        %1564 = vmatprep.mubr.bf16.mxu0 %v734
        %1565 = vmatmul.mubr.bf16.gmra.mrb[0].mxu0 %v733
        %v1566 = vpop.f32.mrb[0].mxu0
        %v1567 = vadd.f32 0.0, %v1566
        %v1568 = vpop.f32.mrb[0].mxu0
        %v1569 = vadd.f32 0.0, %v1568
        %v1570 = vpop.f32.mrb[0].mxu0
        %v1571 = vadd.f32 0.0, %v1570
        %v1572 = vpop.f32.mrb[0].mxu0
        %v1573 = vadd.f32 0.0, %v1572
        %1574 = vmatprep.mubr.bf16.mxu0 %v737
        %1575 = vmatmul.mubr.bf16.gmra.mrb[0].mxu0 %v736
        %v1576 = vpop.f32.mrb[0].mxu0
        %v1577 = vadd.f32 0.0, %v1576
        %v1578 = vpop.f32.mrb[0].mxu0
        %v1579 = vadd.f32 0.0, %v1578
        %v1580 = vpop.f32.mrb[0].mxu0
        %v1581 = vadd.f32 0.0, %v1580
        %v1582 = vpop.f32.mrb[0].mxu0
        %v1583 = vadd.f32 0.0, %v1582
        %1584 = vmatprep.mubr.bf16.mxu0 %v740
        %1585 = vmatmul.mubr.bf16.gmra.mrb[0].mxu0 %v739
        %v1586 = vpop.f32.mrb[0].mxu0
        %v1587 = vadd.f32 0.0, %v1586
        %v1588 = vpop.f32.mrb[0].mxu0
        %v1589 = vadd.f32 0.0, %v1588
        %v1590 = vpop.f32.mrb[0].mxu0
        %v1591 = vadd.f32 0.0, %v1590
        %v1592 = vpop.f32.mrb[0].mxu0
        %v1593 = vadd.f32 0.0, %v1592
        %1594 = vmatprep.mubr.bf16.mxu0 %v743
        %1595 = vmatmul.mubr.bf16.gmra.mrb[0].mxu0 %v742
        %v1596 = vpop.f32.mrb[0].mxu0
        %v1597 = vadd.f32 0.0, %v1596
        %v1598 = vpop.f32.mrb[0].mxu0
        %v1599 = vadd.f32 0.0, %v1598
        %v1600 = vpop.f32.mrb[0].mxu0
        %v1601 = vadd.f32 0.0, %v1600
        %v1602 = vpop.f32.mrb[0].mxu0
        %v1603 = vadd.f32 0.0, %v1602
        %1604 = vmatprep.mubr.bf16.mxu0 %v746
        %1605 = vmatmul.mubr.bf16.gmra.mrb[0].mxu0 %v745
        %v1606 = vpop.f32.mrb[0].mxu0
        %v1607 = vadd.f32 0.0, %v1606
        %v1608 = vpop.f32.mrb[0].mxu0
        %v1609 = vadd.f32 0.0, %v1608
        %v1610 = vpop.f32.mrb[0].mxu0
        %v1611 = vadd.f32 0.0, %v1610
        %v1612 = vpop.f32.mrb[0].mxu0
        %v1613 = vadd.f32 0.0, %v1612
        %1614 = vmatprep.mubr.bf16.mxu0 %v749
        %1615 = vmatmul.mubr.bf16.gmra.mrb[0].mxu0 %v748
        %v1616 = vpop.f32.mrb[0].mxu0
        %v1617 = vadd.f32 0.0, %v1616
        %v1618 = vpop.f32.mrb[0].mxu0
        %v1619 = vadd.f32 0.0, %v1618
        %v1620 = vpop.f32.mrb[0].mxu0
        %v1621 = vadd.f32 0.0, %v1620
        %v1622 = vpop.f32.mrb[0].mxu0
        %v1623 = vadd.f32 0.0, %v1622
        %1624 = vdwg.mxu0
        %1625 = vmatprep.subr.bf16.mxu0 %v1328
        %1626 = vmatpush1.bf16.msra.mxu0 %v1327
        %1627 = vmatprep.subr.bf16.mxu0 %v1336
        %1628 = vmatpush1.bf16.msra.mxu0 %v1335
        %1629 = vmatprep.subr.bf16.mxu0 0
        %1630 = vmatpush1.bf16.msra.mxu0 0
        %1631 = vmatprep.subr.bf16.mxu0 0
        %1632 = vmatpush1.bf16.msra.mxu0 0
        %1633 = vmatprep.subr.bf16.mxu0 0
        %1634 = vmatpush1.bf16.msra.mxu0 0
        %1635 = vmatprep.subr.bf16.mxu0 0
        %1636 = vmatpush1.bf16.msra.mxu0 0
        %1637 = vmatprep.subr.bf16.mxu0 0
        %1638 = vmatpush1.bf16.msra.mxu0 0
        %1639 = vmatprep.subr.bf16.mxu0 0
        %1640 = vmatpush1.bf16.msra.mxu0 0
        %1641 = vmatprep.subr.bf16.mxu0 0
        %1642 = vmatpush1.bf16.msra.mxu0 0
        %1643 = vmatprep.subr.bf16.mxu0 0
        %1644 = vmatpush1.bf16.msra.mxu0 0
        %1645 = vmatprep.subr.bf16.mxu0 0
        %1646 = vmatpush1.bf16.msra.mxu0 0
        %1647 = vmatprep.subr.bf16.mxu0 0
        %1648 = vmatpush1.bf16.msra.mxu0 0
        %1649 = vmatprep.subr.bf16.mxu0 0
        %1650 = vmatpush1.bf16.msra.mxu0 0
        %1651 = vmatprep.subr.bf16.mxu0 0
        %1652 = vmatpush1.bf16.msra.mxu0 0
        %1653 = vmatprep.subr.bf16.mxu0 0
        %1654 = vmatpush1.bf16.msra.mxu0 0
        %1655 = vmatprep.subr.bf16.mxu0 0
        %1656 = vmatpush1.bf16.msra.mxu0 0
        %1657 = vmatprep.mubr.bf16.mxu0 0
        %1658 = vmatmul.mubr.bf16.gmra.mrb[0].mxu0 %v1489
        %v1659 = vpop.f32.mrb[0].mxu0
        %v1660 = vadd.f32 %v1547, %v1659
        %v1661 = vpop.f32.mrb[0].mxu0
        %v1662 = vadd.f32 %v1549, %v1661
        %v1663 = vpop.f32.mrb[0].mxu0
        %v1664 = vadd.f32 %v1551, %v1663
        %v1665 = vpop.f32.mrb[0].mxu0
        %v1666 = vadd.f32 %v1553, %v1665
        %1667 = vmatprep.mubr.bf16.mxu0 0
        %1668 = vmatmul.mubr.bf16.gmra.mrb[0].mxu0 %v1492
        %v1669 = vpop.f32.mrb[0].mxu0
        %v1670 = vadd.f32 %v1557, %v1669
        %v1671 = vpop.f32.mrb[0].mxu0
        %v1672 = vadd.f32 %v1559, %v1671
        %v1673 = vpop.f32.mrb[0].mxu0
        %v1674 = vadd.f32 %v1561, %v1673
        %v1675 = vpop.f32.mrb[0].mxu0
        %v1676 = vadd.f32 %v1563, %v1675
        %1677 = vmatprep.mubr.bf16.mxu0 0
        %1678 = vmatmul.mubr.bf16.gmra.mrb[0].mxu0 %v1495
        %v1679 = vpop.f32.mrb[0].mxu0
        %v1680 = vadd.f32 %v1567, %v1679
        %v1681 = vpop.f32.mrb[0].mxu0
        %v1682 = vadd.f32 %v1569, %v1681
        %v1683 = vpop.f32.mrb[0].mxu0
        %v1684 = vadd.f32 %v1571, %v1683
        %v1685 = vpop.f32.mrb[0].mxu0
        %v1686 = vadd.f32 %v1573, %v1685
        %1687 = vmatprep.mubr.bf16.mxu0 0
        %1688 = vmatmul.mubr.bf16.gmra.mrb[0].mxu0 %v1498
        %v1689 = vpop.f32.mrb[0].mxu0
        %v1690 = vadd.f32 %v1577, %v1689
        %v1691 = vpop.f32.mrb[0].mxu0
        %v1692 = vadd.f32 %v1579, %v1691
        %v1693 = vpop.f32.mrb[0].mxu0
        %v1694 = vadd.f32 %v1581, %v1693
        %v1695 = vpop.f32.mrb[0].mxu0
        %v1696 = vadd.f32 %v1583, %v1695
        %1697 = vmatprep.mubr.bf16.mxu0 0
        %1698 = vmatmul.mubr.bf16.gmra.mrb[0].mxu0 %v1501
        %v1699 = vpop.f32.mrb[0].mxu0
        %v1700 = vadd.f32 %v1587, %v1699
        %v1701 = vpop.f32.mrb[0].mxu0
        %v1702 = vadd.f32 %v1589, %v1701
        %v1703 = vpop.f32.mrb[0].mxu0
        %v1704 = vadd.f32 %v1591, %v1703
        %v1705 = vpop.f32.mrb[0].mxu0
        %v1706 = vadd.f32 %v1593, %v1705
        %1707 = vmatprep.mubr.bf16.mxu0 0
        %1708 = vmatmul.mubr.bf16.gmra.mrb[0].mxu0 %v1504
        %v1709 = vpop.f32.mrb[0].mxu0
        %v1710 = vadd.f32 %v1597, %v1709
        %v1711 = vpop.f32.mrb[0].mxu0
        %v1712 = vadd.f32 %v1599, %v1711
        %v1713 = vpop.f32.mrb[0].mxu0
        %v1714 = vadd.f32 %v1601, %v1713
        %v1715 = vpop.f32.mrb[0].mxu0
        %v1716 = vadd.f32 %v1603, %v1715
        %1717 = vmatprep.mubr.bf16.mxu0 0
        %1718 = vmatmul.mubr.bf16.gmra.mrb[0].mxu0 %v1507
        %v1719 = vpop.f32.mrb[0].mxu0
        %v1720 = vadd.f32 %v1607, %v1719
        %v1721 = vpop.f32.mrb[0].mxu0
        %v1722 = vadd.f32 %v1609, %v1721
        %v1723 = vpop.f32.mrb[0].mxu0
        %v1724 = vadd.f32 %v1611, %v1723
        %v1725 = vpop.f32.mrb[0].mxu0
        %v1726 = vadd.f32 %v1613, %v1725
        %1727 = vmatprep.mubr.bf16.mxu0 0
        %1728 = vmatmul.mubr.bf16.gmra.mrb[0].mxu0 %v1510
        %v1729 = vpop.f32.mrb[0].mxu0
        %v1730 = vadd.f32 %v1617, %v1729
        %v1731 = vpop.f32.mrb[0].mxu0
        %v1732 = vadd.f32 %v1619, %v1731
        %v1733 = vpop.f32.mrb[0].mxu0
        %v1734 = vadd.f32 %v1621, %v1733
        %v1735 = vpop.f32.mrb[0].mxu0
        %v1736 = vadd.f32 %v1623, %v1735
        %1737 = vdwg.mxu0
        %1738 = vmatprep.subr.bf16.mxu0 %v1202
        %1739 = vmatpush1.bf16.msra.mxu0 %v1201
        %1740 = vmatprep.subr.bf16.mxu0 %v1210
        %1741 = vmatpush1.bf16.msra.mxu0 %v1209
        %1742 = vmatprep.subr.bf16.mxu0 %v1218
        %1743 = vmatpush1.bf16.msra.mxu0 %v1217
        %1744 = vmatprep.subr.bf16.mxu0 %v1226
        %1745 = vmatpush1.bf16.msra.mxu0 %v1225
        %1746 = vmatprep.subr.bf16.mxu0 %v1234
        %1747 = vmatpush1.bf16.msra.mxu0 %v1233
        %1748 = vmatprep.subr.bf16.mxu0 %v1242
        %1749 = vmatpush1.bf16.msra.mxu0 %v1241
        %1750 = vmatprep.subr.bf16.mxu0 %v1250
        %1751 = vmatpush1.bf16.msra.mxu0 %v1249
        %1752 = vmatprep.subr.bf16.mxu0 %v1258
        %1753 = vmatpush1.bf16.msra.mxu0 %v1257
        %1754 = vmatprep.subr.bf16.mxu0 %v1266
        %1755 = vmatpush1.bf16.msra.mxu0 %v1265
        %1756 = vmatprep.subr.bf16.mxu0 %v1274
        %1757 = vmatpush1.bf16.msra.mxu0 %v1273
        %1758 = vmatprep.subr.bf16.mxu0 %v1282
        %1759 = vmatpush1.bf16.msra.mxu0 %v1281
        %1760 = vmatprep.subr.bf16.mxu0 %v1290
        %1761 = vmatpush1.bf16.msra.mxu0 %v1289
        %1762 = vmatprep.subr.bf16.mxu0 %v1298
        %1763 = vmatpush1.bf16.msra.mxu0 %v1297
        %1764 = vmatprep.subr.bf16.mxu0 %v1306
        %1765 = vmatpush1.bf16.msra.mxu0 %v1305
        %1766 = vmatprep.subr.bf16.mxu0 %v1314
        %1767 = vmatpush1.bf16.msra.mxu0 %v1313
        %1768 = vmatprep.subr.bf16.mxu0 %v1322
        %1769 = vmatpush1.bf16.msra.mxu0 %v1321
        %1770 = vmatprep.mubr.bf16.mxu0 %v728
        %1771 = vmatmul.mubr.bf16.gmra.mrb[0].mxu0 %v727
        %v1772 = vpop.f32.mrb[0].mxu0
        %v1773 = vadd.f32 0.0, %v1772
        %v1774 = vpop.f32.mrb[0].mxu0
        %v1775 = vadd.f32 0.0, %v1774
        %v1776 = vpop.f32.mrb[0].mxu0
        %v1777 = vadd.f32 0.0, %v1776
        %v1778 = vpop.f32.mrb[0].mxu0
        %v1779 = vadd.f32 0.0, %v1778
        %1780 = vmatprep.mubr.bf16.mxu0 %v731
        %1781 = vmatmul.mubr.bf16.gmra.mrb[0].mxu0 %v730
        %v1782 = vpop.f32.mrb[0].mxu0
        %v1783 = vadd.f32 0.0, %v1782
        %v1784 = vpop.f32.mrb[0].mxu0
        %v1785 = vadd.f32 0.0, %v1784
        %v1786 = vpop.f32.mrb[0].mxu0
        %v1787 = vadd.f32 0.0, %v1786
        %v1788 = vpop.f32.mrb[0].mxu0
        %v1789 = vadd.f32 0.0, %v1788
        %1790 = vmatprep.mubr.bf16.mxu0 %v734
        %1791 = vmatmul.mubr.bf16.gmra.mrb[0].mxu0 %v733
        %v1792 = vpop.f32.mrb[0].mxu0
        %v1793 = vadd.f32 0.0, %v1792
        %v1794 = vpop.f32.mrb[0].mxu0
        %v1795 = vadd.f32 0.0, %v1794
        %v1796 = vpop.f32.mrb[0].mxu0
        %v1797 = vadd.f32 0.0, %v1796
        %v1798 = vpop.f32.mrb[0].mxu0
        %v1799 = vadd.f32 0.0, %v1798
        %1800 = vmatprep.mubr.bf16.mxu0 %v737
        %1801 = vmatmul.mubr.bf16.gmra.mrb[0].mxu0 %v736
        %v1802 = vpop.f32.mrb[0].mxu0
        %v1803 = vadd.f32 0.0, %v1802
        %v1804 = vpop.f32.mrb[0].mxu0
        %v1805 = vadd.f32 0.0, %v1804
        %v1806 = vpop.f32.mrb[0].mxu0
        %v1807 = vadd.f32 0.0, %v1806
        %v1808 = vpop.f32.mrb[0].mxu0
        %v1809 = vadd.f32 0.0, %v1808
        %1810 = vmatprep.mubr.bf16.mxu0 %v740
        %1811 = vmatmul.mubr.bf16.gmra.mrb[0].mxu0 %v739
        %v1812 = vpop.f32.mrb[0].mxu0
        %v1813 = vadd.f32 0.0, %v1812
        %v1814 = vpop.f32.mrb[0].mxu0
        %v1815 = vadd.f32 0.0, %v1814
        %v1816 = vpop.f32.mrb[0].mxu0
        %v1817 = vadd.f32 0.0, %v1816
        %v1818 = vpop.f32.mrb[0].mxu0
        %v1819 = vadd.f32 0.0, %v1818
        %1820 = vmatprep.mubr.bf16.mxu0 %v743
        %1821 = vmatmul.mubr.bf16.gmra.mrb[0].mxu0 %v742
        %v1822 = vpop.f32.mrb[0].mxu0
        %v1823 = vadd.f32 0.0, %v1822
        %v1824 = vpop.f32.mrb[0].mxu0
        %v1825 = vadd.f32 0.0, %v1824
        %v1826 = vpop.f32.mrb[0].mxu0
        %v1827 = vadd.f32 0.0, %v1826
        %v1828 = vpop.f32.mrb[0].mxu0
        %v1829 = vadd.f32 0.0, %v1828
        %1830 = vmatprep.mubr.bf16.mxu0 %v746
        %1831 = vmatmul.mubr.bf16.gmra.mrb[0].mxu0 %v745
        %v1832 = vpop.f32.mrb[0].mxu0
        %v1833 = vadd.f32 0.0, %v1832
        %v1834 = vpop.f32.mrb[0].mxu0
        %v1835 = vadd.f32 0.0, %v1834
        %v1836 = vpop.f32.mrb[0].mxu0
        %v1837 = vadd.f32 0.0, %v1836
        %v1838 = vpop.f32.mrb[0].mxu0
        %v1839 = vadd.f32 0.0, %v1838
        %1840 = vmatprep.mubr.bf16.mxu0 %v749
        %1841 = vmatmul.mubr.bf16.gmra.mrb[0].mxu0 %v748
        %v1842 = vpop.f32.mrb[0].mxu0
        %v1843 = vadd.f32 0.0, %v1842
        %v1844 = vpop.f32.mrb[0].mxu0
        %v1845 = vadd.f32 0.0, %v1844
        %v1846 = vpop.f32.mrb[0].mxu0
        %v1847 = vadd.f32 0.0, %v1846
        %v1848 = vpop.f32.mrb[0].mxu0
        %v1849 = vadd.f32 0.0, %v1848
        %1850 = vdwg.mxu0
        %1851 = vmatprep.subr.bf16.mxu0 %v1330
        %1852 = vmatpush1.bf16.msra.mxu0 %v1329
        %1853 = vmatprep.subr.bf16.mxu0 %v1338
        %1854 = vmatpush1.bf16.msra.mxu0 %v1337
        %1855 = vmatprep.subr.bf16.mxu0 0
        %1856 = vmatpush1.bf16.msra.mxu0 0
        %1857 = vmatprep.subr.bf16.mxu0 0
        %1858 = vmatpush1.bf16.msra.mxu0 0
        %1859 = vmatprep.subr.bf16.mxu0 0
        %1860 = vmatpush1.bf16.msra.mxu0 0
        %1861 = vmatprep.subr.bf16.mxu0 0
        %1862 = vmatpush1.bf16.msra.mxu0 0
        %1863 = vmatprep.subr.bf16.mxu0 0
        %1864 = vmatpush1.bf16.msra.mxu0 0
        %1865 = vmatprep.subr.bf16.mxu0 0
        %1866 = vmatpush1.bf16.msra.mxu0 0
        %1867 = vmatprep.subr.bf16.mxu0 0
        %1868 = vmatpush1.bf16.msra.mxu0 0
        %1869 = vmatprep.subr.bf16.mxu0 0
        %1870 = vmatpush1.bf16.msra.mxu0 0
        %1871 = vmatprep.subr.bf16.mxu0 0
        %1872 = vmatpush1.bf16.msra.mxu0 0
        %1873 = vmatprep.subr.bf16.mxu0 0
        %1874 = vmatpush1.bf16.msra.mxu0 0
        %1875 = vmatprep.subr.bf16.mxu0 0
        %1876 = vmatpush1.bf16.msra.mxu0 0
        %1877 = vmatprep.subr.bf16.mxu0 0
        %1878 = vmatpush1.bf16.msra.mxu0 0
        %1879 = vmatprep.subr.bf16.mxu0 0
        %1880 = vmatpush1.bf16.msra.mxu0 0
        %1881 = vmatprep.subr.bf16.mxu0 0
        %1882 = vmatpush1.bf16.msra.mxu0 0
        %1883 = vmatprep.mubr.bf16.mxu0 0
        %1884 = vmatmul.mubr.bf16.gmra.mrb[0].mxu0 %v1489
        %v1885 = vpop.f32.mrb[0].mxu0
        %v1886 = vadd.f32 %v1773, %v1885
        %v1887 = vpop.f32.mrb[0].mxu0
        %v1888 = vadd.f32 %v1775, %v1887
        %v1889 = vpop.f32.mrb[0].mxu0
        %v1890 = vadd.f32 %v1777, %v1889
        %v1891 = vpop.f32.mrb[0].mxu0
        %v1892 = vadd.f32 %v1779, %v1891
        %1893 = vmatprep.mubr.bf16.mxu0 0
        %1894 = vmatmul.mubr.bf16.gmra.mrb[0].mxu0 %v1492
        %v1895 = vpop.f32.mrb[0].mxu0
        %v1896 = vadd.f32 %v1783, %v1895
        %v1897 = vpop.f32.mrb[0].mxu0
        %v1898 = vadd.f32 %v1785, %v1897
        %v1899 = vpop.f32.mrb[0].mxu0
        %v1900 = vadd.f32 %v1787, %v1899
        %v1901 = vpop.f32.mrb[0].mxu0
        %v1902 = vadd.f32 %v1789, %v1901
        %1903 = vmatprep.mubr.bf16.mxu0 0
        %1904 = vmatmul.mubr.bf16.gmra.mrb[0].mxu0 %v1495
        %v1905 = vpop.f32.mrb[0].mxu0
        %v1906 = vadd.f32 %v1793, %v1905
        %v1907 = vpop.f32.mrb[0].mxu0
        %v1908 = vadd.f32 %v1795, %v1907
        %v1909 = vpop.f32.mrb[0].mxu0
        %v1910 = vadd.f32 %v1797, %v1909
        %v1911 = vpop.f32.mrb[0].mxu0
        %v1912 = vadd.f32 %v1799, %v1911
        %1913 = vmatprep.mubr.bf16.mxu0 0
        %1914 = vmatmul.mubr.bf16.gmra.mrb[0].mxu0 %v1498
        %v1915 = vpop.f32.mrb[0].mxu0
        %v1916 = vadd.f32 %v1803, %v1915
        %v1917 = vpop.f32.mrb[0].mxu0
        %v1918 = vadd.f32 %v1805, %v1917
        %v1919 = vpop.f32.mrb[0].mxu0
        %v1920 = vadd.f32 %v1807, %v1919
        %v1921 = vpop.f32.mrb[0].mxu0
        %v1922 = vadd.f32 %v1809, %v1921
        %1923 = vmatprep.mubr.bf16.mxu0 0
        %1924 = vmatmul.mubr.bf16.gmra.mrb[0].mxu0 %v1501
        %v1925 = vpop.f32.mrb[0].mxu0
        %v1926 = vadd.f32 %v1813, %v1925
        %v1927 = vpop.f32.mrb[0].mxu0
        %v1928 = vadd.f32 %v1815, %v1927
        %v1929 = vpop.f32.mrb[0].mxu0
        %v1930 = vadd.f32 %v1817, %v1929
        %v1931 = vpop.f32.mrb[0].mxu0
        %v1932 = vadd.f32 %v1819, %v1931
        %1933 = vmatprep.mubr.bf16.mxu0 0
        %1934 = vmatmul.mubr.bf16.gmra.mrb[0].mxu0 %v1504
        %v1935 = vpop.f32.mrb[0].mxu0
        %v1936 = vadd.f32 %v1823, %v1935
        %v1937 = vpop.f32.mrb[0].mxu0
        %v1938 = vadd.f32 %v1825, %v1937
        %v1939 = vpop.f32.mrb[0].mxu0
        %v1940 = vadd.f32 %v1827, %v1939
        %v1941 = vpop.f32.mrb[0].mxu0
        %v1942 = vadd.f32 %v1829, %v1941
        %1943 = vmatprep.mubr.bf16.mxu0 0
        %1944 = vmatmul.mubr.bf16.gmra.mrb[0].mxu0 %v1507
        %v1945 = vpop.f32.mrb[0].mxu0
        %v1946 = vadd.f32 %v1833, %v1945
        %v1947 = vpop.f32.mrb[0].mxu0
        %v1948 = vadd.f32 %v1835, %v1947
        %v1949 = vpop.f32.mrb[0].mxu0
        %v1950 = vadd.f32 %v1837, %v1949
        %v1951 = vpop.f32.mrb[0].mxu0
        %v1952 = vadd.f32 %v1839, %v1951
        %1953 = vmatprep.mubr.bf16.mxu0 0
        %1954 = vmatmul.mubr.bf16.gmra.mrb[0].mxu0 %v1510
        %v1955 = vpop.f32.mrb[0].mxu0
        %v1956 = vadd.f32 %v1843, %v1955
        %v1957 = vpop.f32.mrb[0].mxu0
        %v1958 = vadd.f32 %v1845, %v1957
        %v1959 = vpop.f32.mrb[0].mxu0
        %v1960 = vadd.f32 %v1847, %v1959
        %v1961 = vpop.f32.mrb[0].mxu0
        %v1962 = vadd.f32 %v1849, %v1961
        %1963 = vdwg.mxu0
        %1964 = vmatprep.subr.bf16.mxu0 %v1204
        %1965 = vmatpush1.bf16.msra.mxu0 %v1203
        %1966 = vmatprep.subr.bf16.mxu0 %v1212
        %1967 = vmatpush1.bf16.msra.mxu0 %v1211
        %1968 = vmatprep.subr.bf16.mxu0 %v1220
        %1969 = vmatpush1.bf16.msra.mxu0 %v1219
        %1970 = vmatprep.subr.bf16.mxu0 %v1228
        %1971 = vmatpush1.bf16.msra.mxu0 %v1227
        %1972 = vmatprep.subr.bf16.mxu0 %v1236
        %1973 = vmatpush1.bf16.msra.mxu0 %v1235
        %1974 = vmatprep.subr.bf16.mxu0 %v1244
        %1975 = vmatpush1.bf16.msra.mxu0 %v1243
        %1976 = vmatprep.subr.bf16.mxu0 %v1252
        %1977 = vmatpush1.bf16.msra.mxu0 %v1251
        %1978 = vmatprep.subr.bf16.mxu0 %v1260
        %1979 = vmatpush1.bf16.msra.mxu0 %v1259
        %1980 = vmatprep.subr.bf16.mxu0 %v1268
        %1981 = vmatpush1.bf16.msra.mxu0 %v1267
        %1982 = vmatprep.subr.bf16.mxu0 %v1276
        %1983 = vmatpush1.bf16.msra.mxu0 %v1275
        %1984 = vmatprep.subr.bf16.mxu0 %v1284
        %1985 = vmatpush1.bf16.msra.mxu0 %v1283
        %1986 = vmatprep.subr.bf16.mxu0 %v1292
        %1987 = vmatpush1.bf16.msra.mxu0 %v1291
        %1988 = vmatprep.subr.bf16.mxu0 %v1300
        %1989 = vmatpush1.bf16.msra.mxu0 %v1299
        %1990 = vmatprep.subr.bf16.mxu0 %v1308
        %1991 = vmatpush1.bf16.msra.mxu0 %v1307
        %1992 = vmatprep.subr.bf16.mxu0 %v1316
        %1993 = vmatpush1.bf16.msra.mxu0 %v1315
        %1994 = vmatprep.subr.bf16.mxu0 %v1324
        %1995 = vmatpush1.bf16.msra.mxu0 %v1323
        %1996 = vmatprep.mubr.bf16.mxu0 %v728
        %1997 = vmatmul.mubr.bf16.gmra.mrb[0].mxu0 %v727
        %v1998 = vpop.f32.mrb[0].mxu0
        %v1999 = vadd.f32 0.0, %v1998
        %v2000 = vpop.f32.mrb[0].mxu0
        %v2001 = vadd.f32 0.0, %v2000
        %v2002 = vpop.f32.mrb[0].mxu0
        %v2003 = vadd.f32 0.0, %v2002
        %v2004 = vpop.f32.mrb[0].mxu0
        %v2005 = vadd.f32 0.0, %v2004
        %2006 = vmatprep.mubr.bf16.mxu0 %v731
        %2007 = vmatmul.mubr.bf16.gmra.mrb[0].mxu0 %v730
        %v2008 = vpop.f32.mrb[0].mxu0
        %v2009 = vadd.f32 0.0, %v2008
        %v2010 = vpop.f32.mrb[0].mxu0
        %v2011 = vadd.f32 0.0, %v2010
        %v2012 = vpop.f32.mrb[0].mxu0
        %v2013 = vadd.f32 0.0, %v2012
        %v2014 = vpop.f32.mrb[0].mxu0
        %v2015 = vadd.f32 0.0, %v2014
        %2016 = vmatprep.mubr.bf16.mxu0 %v734
        %2017 = vmatmul.mubr.bf16.gmra.mrb[0].mxu0 %v733
        %v2018 = vpop.f32.mrb[0].mxu0
        %v2019 = vadd.f32 0.0, %v2018
        %v2020 = vpop.f32.mrb[0].mxu0
        %v2021 = vadd.f32 0.0, %v2020
        %v2022 = vpop.f32.mrb[0].mxu0
        %v2023 = vadd.f32 0.0, %v2022
        %v2024 = vpop.f32.mrb[0].mxu0
        %v2025 = vadd.f32 0.0, %v2024
        %2026 = vmatprep.mubr.bf16.mxu0 %v737
        %2027 = vmatmul.mubr.bf16.gmra.mrb[0].mxu0 %v736
        %v2028 = vpop.f32.mrb[0].mxu0
        %v2029 = vadd.f32 0.0, %v2028
        %v2030 = vpop.f32.mrb[0].mxu0
        %v2031 = vadd.f32 0.0, %v2030
        %v2032 = vpop.f32.mrb[0].mxu0
        %v2033 = vadd.f32 0.0, %v2032
        %v2034 = vpop.f32.mrb[0].mxu0
        %v2035 = vadd.f32 0.0, %v2034
        %2036 = vmatprep.mubr.bf16.mxu0 %v740
        %2037 = vmatmul.mubr.bf16.gmra.mrb[0].mxu0 %v739
        %v2038 = vpop.f32.mrb[0].mxu0
        %v2039 = vadd.f32 0.0, %v2038
        %v2040 = vpop.f32.mrb[0].mxu0
        %v2041 = vadd.f32 0.0, %v2040
        %v2042 = vpop.f32.mrb[0].mxu0
        %v2043 = vadd.f32 0.0, %v2042
        %v2044 = vpop.f32.mrb[0].mxu0
        %v2045 = vadd.f32 0.0, %v2044
        %2046 = vmatprep.mubr.bf16.mxu0 %v743
        %2047 = vmatmul.mubr.bf16.gmra.mrb[0].mxu0 %v742
        %v2048 = vpop.f32.mrb[0].mxu0
        %v2049 = vadd.f32 0.0, %v2048
        %v2050 = vpop.f32.mrb[0].mxu0
        %v2051 = vadd.f32 0.0, %v2050
        %v2052 = vpop.f32.mrb[0].mxu0
        %v2053 = vadd.f32 0.0, %v2052
        %v2054 = vpop.f32.mrb[0].mxu0
        %v2055 = vadd.f32 0.0, %v2054
        %2056 = vmatprep.mubr.bf16.mxu0 %v746
        %2057 = vmatmul.mubr.bf16.gmra.mrb[0].mxu0 %v745
        %v2058 = vpop.f32.mrb[0].mxu0
        %v2059 = vadd.f32 0.0, %v2058
        %v2060 = vpop.f32.mrb[0].mxu0
        %v2061 = vadd.f32 0.0, %v2060
        %v2062 = vpop.f32.mrb[0].mxu0
        %v2063 = vadd.f32 0.0, %v2062
        %v2064 = vpop.f32.mrb[0].mxu0
        %v2065 = vadd.f32 0.0, %v2064
        %2066 = vmatprep.mubr.bf16.mxu0 %v749
        %2067 = vmatmul.mubr.bf16.gmra.mrb[0].mxu0 %v748
        %v2068 = vpop.f32.mrb[0].mxu0
        %v2069 = vadd.f32 0.0, %v2068
        %v2070 = vpop.f32.mrb[0].mxu0
        %v2071 = vadd.f32 0.0, %v2070
        %v2072 = vpop.f32.mrb[0].mxu0
        %v2073 = vadd.f32 0.0, %v2072
        %v2074 = vpop.f32.mrb[0].mxu0
        %v2075 = vadd.f32 0.0, %v2074
        %2076 = vdwg.mxu0
        %2077 = vmatprep.subr.bf16.mxu0 %v1332
        %2078 = vmatpush1.bf16.msra.mxu0 %v1331
        %2079 = vmatprep.subr.bf16.mxu0 %v1340
        %2080 = vmatpush1.bf16.msra.mxu0 %v1339
        %2081 = vmatprep.subr.bf16.mxu0 0
        %2082 = vmatpush1.bf16.msra.mxu0 0
        %2083 = vmatprep.subr.bf16.mxu0 0
        %2084 = vmatpush1.bf16.msra.mxu0 0
        %2085 = vmatprep.subr.bf16.mxu0 0
        %2086 = vmatpush1.bf16.msra.mxu0 0
        %2087 = vmatprep.subr.bf16.mxu0 0
        %2088 = vmatpush1.bf16.msra.mxu0 0
        %2089 = vmatprep.subr.bf16.mxu0 0
        %2090 = vmatpush1.bf16.msra.mxu0 0
        %2091 = vmatprep.subr.bf16.mxu0 0
        %2092 = vmatpush1.bf16.msra.mxu0 0
        %2093 = vmatprep.subr.bf16.mxu0 0
        %2094 = vmatpush1.bf16.msra.mxu0 0
        %2095 = vmatprep.subr.bf16.mxu0 0
        %2096 = vmatpush1.bf16.msra.mxu0 0
        %2097 = vmatprep.subr.bf16.mxu0 0
        %2098 = vmatpush1.bf16.msra.mxu0 0
        %2099 = vmatprep.subr.bf16.mxu0 0
        %2100 = vmatpush1.bf16.msra.mxu0 0
        %2101 = vmatprep.subr.bf16.mxu0 0
        %2102 = vmatpush1.bf16.msra.mxu0 0
        %2103 = vmatprep.subr.bf16.mxu0 0
        %2104 = vmatpush1.bf16.msra.mxu0 0
        %2105 = vmatprep.subr.bf16.mxu0 0
        %2106 = vmatpush1.bf16.msra.mxu0 0
        %2107 = vmatprep.subr.bf16.mxu0 0
        %2108 = vmatpush1.bf16.msra.mxu0 0
        %2109 = vmatprep.mubr.bf16.mxu0 0
        %2110 = vmatmul.mubr.bf16.gmra.mrb[0].mxu0 %v1489
        %v2111 = vpop.f32.mrb[0].mxu0
        %v2112 = vadd.f32 %v1999, %v2111
        %v2113 = vpop.f32.mrb[0].mxu0
        %v2114 = vadd.f32 %v2001, %v2113
        %v2115 = vpop.f32.mrb[0].mxu0
        %v2116 = vadd.f32 %v2003, %v2115
        %v2117 = vpop.f32.mrb[0].mxu0
        %v2118 = vadd.f32 %v2005, %v2117
        %2119 = vmatprep.mubr.bf16.mxu0 0
        %2120 = vmatmul.mubr.bf16.gmra.mrb[0].mxu0 %v1492
        %v2121 = vpop.f32.mrb[0].mxu0
        %v2122 = vadd.f32 %v2009, %v2121
        %v2123 = vpop.f32.mrb[0].mxu0
        %v2124 = vadd.f32 %v2011, %v2123
        %v2125 = vpop.f32.mrb[0].mxu0
        %v2126 = vadd.f32 %v2013, %v2125
        %v2127 = vpop.f32.mrb[0].mxu0
        %v2128 = vadd.f32 %v2015, %v2127
        %2129 = vmatprep.mubr.bf16.mxu0 0
        %2130 = vmatmul.mubr.bf16.gmra.mrb[0].mxu0 %v1495
        %v2131 = vpop.f32.mrb[0].mxu0
        %v2132 = vadd.f32 %v2019, %v2131
        %v2133 = vpop.f32.mrb[0].mxu0
        %v2134 = vadd.f32 %v2021, %v2133
        %v2135 = vpop.f32.mrb[0].mxu0
        %v2136 = vadd.f32 %v2023, %v2135
        %v2137 = vpop.f32.mrb[0].mxu0
        %v2138 = vadd.f32 %v2025, %v2137
        %2139 = vmatprep.mubr.bf16.mxu0 0
        %2140 = vmatmul.mubr.bf16.gmra.mrb[0].mxu0 %v1498
        %v2141 = vpop.f32.mrb[0].mxu0
        %v2142 = vadd.f32 %v2029, %v2141
        %v2143 = vpop.f32.mrb[0].mxu0
        %v2144 = vadd.f32 %v2031, %v2143
        %v2145 = vpop.f32.mrb[0].mxu0
        %v2146 = vadd.f32 %v2033, %v2145
        %v2147 = vpop.f32.mrb[0].mxu0
        %v2148 = vadd.f32 %v2035, %v2147
        %2149 = vmatprep.mubr.bf16.mxu0 0
        %2150 = vmatmul.mubr.bf16.gmra.mrb[0].mxu0 %v1501
        %v2151 = vpop.f32.mrb[0].mxu0
        %v2152 = vadd.f32 %v2039, %v2151
        %v2153 = vpop.f32.mrb[0].mxu0
        %v2154 = vadd.f32 %v2041, %v2153
        %v2155 = vpop.f32.mrb[0].mxu0
        %v2156 = vadd.f32 %v2043, %v2155
        %v2157 = vpop.f32.mrb[0].mxu0
        %v2158 = vadd.f32 %v2045, %v2157
        %2159 = vmatprep.mubr.bf16.mxu0 0
        %2160 = vmatmul.mubr.bf16.gmra.mrb[0].mxu0 %v1504
        %v2161 = vpop.f32.mrb[0].mxu0
        %v2162 = vadd.f32 %v2049, %v2161
        %v2163 = vpop.f32.mrb[0].mxu0
        %v2164 = vadd.f32 %v2051, %v2163
        %v2165 = vpop.f32.mrb[0].mxu0
        %v2166 = vadd.f32 %v2053, %v2165
        %v2167 = vpop.f32.mrb[0].mxu0
        %v2168 = vadd.f32 %v2055, %v2167
        %2169 = vmatprep.mubr.bf16.mxu0 0
        %2170 = vmatmul.mubr.bf16.gmra.mrb[0].mxu0 %v1507
        %v2171 = vpop.f32.mrb[0].mxu0
        %v2172 = vadd.f32 %v2059, %v2171
        %v2173 = vpop.f32.mrb[0].mxu0
        %v2174 = vadd.f32 %v2061, %v2173
        %v2175 = vpop.f32.mrb[0].mxu0
        %v2176 = vadd.f32 %v2063, %v2175
        %v2177 = vpop.f32.mrb[0].mxu0
        %v2178 = vadd.f32 %v2065, %v2177
        %2179 = vmatprep.mubr.bf16.mxu0 0
        %2180 = vmatmul.mubr.bf16.gmra.mrb[0].mxu0 %v1510
        %v2181 = vpop.f32.mrb[0].mxu0
        %v2182 = vadd.f32 %v2069, %v2181
        %v2183 = vpop.f32.mrb[0].mxu0
        %v2184 = vadd.f32 %v2071, %v2183
        %v2185 = vpop.f32.mrb[0].mxu0
        %v2186 = vadd.f32 %v2073, %v2185
        %v2187 = vpop.f32.mrb[0].mxu0
        %v2188 = vadd.f32 %v2075, %v2187
        %2189 = vdwg.mxu0
        %2190 = vmatprep.subr.bf16.mxu0 %v1206
        %2191 = vmatpush1.bf16.msra.mxu0 %v1205
        %2192 = vmatprep.subr.bf16.mxu0 %v1214
        %2193 = vmatpush1.bf16.msra.mxu0 %v1213
        %2194 = vmatprep.subr.bf16.mxu0 %v1222
        %2195 = vmatpush1.bf16.msra.mxu0 %v1221
        %2196 = vmatprep.subr.bf16.mxu0 %v1230
        %2197 = vmatpush1.bf16.msra.mxu0 %v1229
        %2198 = vmatprep.subr.bf16.mxu0 %v1238
        %2199 = vmatpush1.bf16.msra.mxu0 %v1237
        %2200 = vmatprep.subr.bf16.mxu0 %v1246
        %2201 = vmatpush1.bf16.msra.mxu0 %v1245
        %2202 = vmatprep.subr.bf16.mxu0 %v1254
        %2203 = vmatpush1.bf16.msra.mxu0 %v1253
        %2204 = vmatprep.subr.bf16.mxu0 %v1262
        %2205 = vmatpush1.bf16.msra.mxu0 %v1261
        %2206 = vmatprep.subr.bf16.mxu0 %v1270
        %2207 = vmatpush1.bf16.msra.mxu0 %v1269
        %2208 = vmatprep.subr.bf16.mxu0 %v1278
        %2209 = vmatpush1.bf16.msra.mxu0 %v1277
        %2210 = vmatprep.subr.bf16.mxu0 %v1286
        %2211 = vmatpush1.bf16.msra.mxu0 %v1285
        %2212 = vmatprep.subr.bf16.mxu0 %v1294
        %2213 = vmatpush1.bf16.msra.mxu0 %v1293
        %2214 = vmatprep.subr.bf16.mxu0 %v1302
        %2215 = vmatpush1.bf16.msra.mxu0 %v1301
        %2216 = vmatprep.subr.bf16.mxu0 %v1310
        %2217 = vmatpush1.bf16.msra.mxu0 %v1309
        %2218 = vmatprep.subr.bf16.mxu0 %v1318
        %2219 = vmatpush1.bf16.msra.mxu0 %v1317
        %2220 = vmatprep.subr.bf16.mxu0 %v1326
        %2221 = vmatpush1.bf16.msra.mxu0 %v1325
        %2222 = vmatprep.mubr.bf16.mxu0 %v728
        %2223 = vmatmul.mubr.bf16.gmra.mrb[0].mxu0 %v727
        %v2224 = vpop.f32.mrb[0].mxu0
        %v2225 = vadd.f32 0.0, %v2224
        %v2226 = vpop.f32.mrb[0].mxu0
        %v2227 = vadd.f32 0.0, %v2226
        %v2228 = vpop.f32.mrb[0].mxu0
        %v2229 = vadd.f32 0.0, %v2228
        %v2230 = vpop.f32.mrb[0].mxu0
        %v2231 = vadd.f32 0.0, %v2230
        %2232 = vmatprep.mubr.bf16.mxu0 %v731
        %2233 = vmatmul.mubr.bf16.gmra.mrb[0].mxu0 %v730
        %v2234 = vpop.f32.mrb[0].mxu0
        %v2235 = vadd.f32 0.0, %v2234
        %v2236 = vpop.f32.mrb[0].mxu0
        %v2237 = vadd.f32 0.0, %v2236
        %v2238 = vpop.f32.mrb[0].mxu0
        %v2239 = vadd.f32 0.0, %v2238
        %v2240 = vpop.f32.mrb[0].mxu0
        %v2241 = vadd.f32 0.0, %v2240
        %2242 = vmatprep.mubr.bf16.mxu0 %v734
        %2243 = vmatmul.mubr.bf16.gmra.mrb[0].mxu0 %v733
        %v2244 = vpop.f32.mrb[0].mxu0
        %v2245 = vadd.f32 0.0, %v2244
        %v2246 = vpop.f32.mrb[0].mxu0
        %v2247 = vadd.f32 0.0, %v2246
        %v2248 = vpop.f32.mrb[0].mxu0
        %v2249 = vadd.f32 0.0, %v2248
        %v2250 = vpop.f32.mrb[0].mxu0
        %v2251 = vadd.f32 0.0, %v2250
        %2252 = vmatprep.mubr.bf16.mxu0 %v737
        %2253 = vmatmul.mubr.bf16.gmra.mrb[0].mxu0 %v736
        %v2254 = vpop.f32.mrb[0].mxu0
        %v2255 = vadd.f32 0.0, %v2254
        %v2256 = vpop.f32.mrb[0].mxu0
        %v2257 = vadd.f32 0.0, %v2256
        %v2258 = vpop.f32.mrb[0].mxu0
        %v2259 = vadd.f32 0.0, %v2258
        %v2260 = vpop.f32.mrb[0].mxu0
        %v2261 = vadd.f32 0.0, %v2260
        %2262 = vmatprep.mubr.bf16.mxu0 %v740
        %2263 = vmatmul.mubr.bf16.gmra.mrb[0].mxu0 %v739
        %v2264 = vpop.f32.mrb[0].mxu0
        %v2265 = vadd.f32 0.0, %v2264
        %v2266 = vpop.f32.mrb[0].mxu0
        %v2267 = vadd.f32 0.0, %v2266
        %v2268 = vpop.f32.mrb[0].mxu0
        %v2269 = vadd.f32 0.0, %v2268
        %v2270 = vpop.f32.mrb[0].mxu0
        %v2271 = vadd.f32 0.0, %v2270
        %2272 = vmatprep.mubr.bf16.mxu0 %v743
        %2273 = vmatmul.mubr.bf16.gmra.mrb[0].mxu0 %v742
        %v2274 = vpop.f32.mrb[0].mxu0
        %v2275 = vadd.f32 0.0, %v2274
        %v2276 = vpop.f32.mrb[0].mxu0
        %v2277 = vadd.f32 0.0, %v2276
        %v2278 = vpop.f32.mrb[0].mxu0
        %v2279 = vadd.f32 0.0, %v2278
        %v2280 = vpop.f32.mrb[0].mxu0
        %v2281 = vadd.f32 0.0, %v2280
        %2282 = vmatprep.mubr.bf16.mxu0 %v746
        %2283 = vmatmul.mubr.bf16.gmra.mrb[0].mxu0 %v745
        %v2284 = vpop.f32.mrb[0].mxu0
        %v2285 = vadd.f32 0.0, %v2284
        %v2286 = vpop.f32.mrb[0].mxu0
        %v2287 = vadd.f32 0.0, %v2286
        %v2288 = vpop.f32.mrb[0].mxu0
        %v2289 = vadd.f32 0.0, %v2288
        %v2290 = vpop.f32.mrb[0].mxu0
        %v2291 = vadd.f32 0.0, %v2290
        %2292 = vmatprep.mubr.bf16.mxu0 %v749
        %2293 = vmatmul.mubr.bf16.gmra.mrb[0].mxu0 %v748
        %v2294 = vpop.f32.mrb[0].mxu0
        %v2295 = vadd.f32 0.0, %v2294
        %v2296 = vpop.f32.mrb[0].mxu0
        %v2297 = vadd.f32 0.0, %v2296
        %v2298 = vpop.f32.mrb[0].mxu0
        %v2299 = vadd.f32 0.0, %v2298
        %v2300 = vpop.f32.mrb[0].mxu0
        %v2301 = vadd.f32 0.0, %v2300
        %2302 = vdwg.mxu0
        %2303 = vmatprep.subr.bf16.mxu0 %v1334
        %2304 = vmatpush1.bf16.msra.mxu0 %v1333
        %2305 = vmatprep.subr.bf16.mxu0 %v1342
        %2306 = vmatpush1.bf16.msra.mxu0 %v1341
        %2307 = vmatprep.subr.bf16.mxu0 0
        %2308 = vmatpush1.bf16.msra.mxu0 0
        %2309 = vmatprep.subr.bf16.mxu0 0
        %2310 = vmatpush1.bf16.msra.mxu0 0
        %2311 = vmatprep.subr.bf16.mxu0 0
        %2312 = vmatpush1.bf16.msra.mxu0 0
        %2313 = vmatprep.subr.bf16.mxu0 0
        %2314 = vmatpush1.bf16.msra.mxu0 0
        %2315 = vmatprep.subr.bf16.mxu0 0
        %2316 = vmatpush1.bf16.msra.mxu0 0
        %2317 = vmatprep.subr.bf16.mxu0 0
        %2318 = vmatpush1.bf16.msra.mxu0 0
        %2319 = vmatprep.subr.bf16.mxu0 0
        %2320 = vmatpush1.bf16.msra.mxu0 0
        %2321 = vmatprep.subr.bf16.mxu0 0
        %2322 = vmatpush1.bf16.msra.mxu0 0
        %2323 = vmatprep.subr.bf16.mxu0 0
        %2324 = vmatpush1.bf16.msra.mxu0 0
        %2325 = vmatprep.subr.bf16.mxu0 0
        %2326 = vmatpush1.bf16.msra.mxu0 0
        %2327 = vmatprep.subr.bf16.mxu0 0
        %2328 = vmatpush1.bf16.msra.mxu0 0
        %2329 = vmatprep.subr.bf16.mxu0 0
        %2330 = vmatpush1.bf16.msra.mxu0 0
        %2331 = vmatprep.subr.bf16.mxu0 0
        %2332 = vmatpush1.bf16.msra.mxu0 0
        %2333 = vmatprep.subr.bf16.mxu0 0
        %2334 = vmatpush1.bf16.msra.mxu0 0
        %2335 = vmatprep.mubr.bf16.mxu0 0
        %2336 = vmatmul.mubr.bf16.gmra.mrb[0].mxu0 %v1489
        %v2337 = vpop.f32.mrb[0].mxu0
        %v2338 = vadd.f32 %v2225, %v2337
        %v2339 = vpop.f32.mrb[0].mxu0
        %v2340 = vadd.f32 %v2227, %v2339
        %v2341 = vpop.f32.mrb[0].mxu0
        %v2342 = vadd.f32 %v2229, %v2341
        %v2343 = vpop.f32.mrb[0].mxu0
        %v2344 = vadd.f32 %v2231, %v2343
        %2345 = vmatprep.mubr.bf16.mxu0 0
        %2346 = vmatmul.mubr.bf16.gmra.mrb[0].mxu0 %v1492
        %v2347 = vpop.f32.mrb[0].mxu0
        %v2348 = vadd.f32 %v2235, %v2347
        %v2349 = vpop.f32.mrb[0].mxu0
        %v2350 = vadd.f32 %v2237, %v2349
        %v2351 = vpop.f32.mrb[0].mxu0
        %v2352 = vadd.f32 %v2239, %v2351
        %v2353 = vpop.f32.mrb[0].mxu0
        %v2354 = vadd.f32 %v2241, %v2353
        %2355 = vmatprep.mubr.bf16.mxu0 0
        %2356 = vmatmul.mubr.bf16.gmra.mrb[0].mxu0 %v1495
        %v2357 = vpop.f32.mrb[0].mxu0
        %v2358 = vadd.f32 %v2245, %v2357
        %v2359 = vpop.f32.mrb[0].mxu0
        %v2360 = vadd.f32 %v2247, %v2359
        %v2361 = vpop.f32.mrb[0].mxu0
        %v2362 = vadd.f32 %v2249, %v2361
        %v2363 = vpop.f32.mrb[0].mxu0
        %v2364 = vadd.f32 %v2251, %v2363
        %2365 = vmatprep.mubr.bf16.mxu0 0
        %2366 = vmatmul.mubr.bf16.gmra.mrb[0].mxu0 %v1498
        %v2367 = vpop.f32.mrb[0].mxu0
        %v2368 = vadd.f32 %v2255, %v2367
        %v2369 = vpop.f32.mrb[0].mxu0
        %v2370 = vadd.f32 %v2257, %v2369
        %v2371 = vpop.f32.mrb[0].mxu0
        %v2372 = vadd.f32 %v2259, %v2371
        %v2373 = vpop.f32.mrb[0].mxu0
        %v2374 = vadd.f32 %v2261, %v2373
        %2375 = vmatprep.mubr.bf16.mxu0 0
        %2376 = vmatmul.mubr.bf16.gmra.mrb[0].mxu0 %v1501
        %v2377 = vpop.f32.mrb[0].mxu0
        %v2378 = vadd.f32 %v2265, %v2377
        %v2379 = vpop.f32.mrb[0].mxu0
        %v2380 = vadd.f32 %v2267, %v2379
        %v2381 = vpop.f32.mrb[0].mxu0
        %v2382 = vadd.f32 %v2269, %v2381
        %v2383 = vpop.f32.mrb[0].mxu0
        %v2384 = vadd.f32 %v2271, %v2383
        %2385 = vmatprep.mubr.bf16.mxu0 0
        %2386 = vmatmul.mubr.bf16.gmra.mrb[0].mxu0 %v1504
        %v2387 = vpop.f32.mrb[0].mxu0
        %v2388 = vadd.f32 %v2275, %v2387
        %v2389 = vpop.f32.mrb[0].mxu0
        %v2390 = vadd.f32 %v2277, %v2389
        %v2391 = vpop.f32.mrb[0].mxu0
        %v2392 = vadd.f32 %v2279, %v2391
        %v2393 = vpop.f32.mrb[0].mxu0
        %v2394 = vadd.f32 %v2281, %v2393
        %2395 = vmatprep.mubr.bf16.mxu0 0
        %2396 = vmatmul.mubr.bf16.gmra.mrb[0].mxu0 %v1507
        %v2397 = vpop.f32.mrb[0].mxu0
        %v2398 = vadd.f32 %v2285, %v2397
        %v2399 = vpop.f32.mrb[0].mxu0
        %v2400 = vadd.f32 %v2287, %v2399
        %v2401 = vpop.f32.mrb[0].mxu0
        %v2402 = vadd.f32 %v2289, %v2401
        %v2403 = vpop.f32.mrb[0].mxu0
        %v2404 = vadd.f32 %v2291, %v2403
        %2405 = vmatprep.mubr.bf16.mxu0 0
        %2406 = vmatmul.mubr.bf16.gmra.mrb[0].mxu0 %v1510
        %v2407 = vpop.f32.mrb[0].mxu0
        %v2408 = vadd.f32 %v2295, %v2407
        %v2409 = vpop.f32.mrb[0].mxu0
        %v2410 = vadd.f32 %v2297, %v2409
        %v2411 = vpop.f32.mrb[0].mxu0
        %v2412 = vadd.f32 %v2299, %v2411
        %v2413 = vpop.f32.mrb[0].mxu0
        %v2414 = vadd.f32 %v2301, %v2413
        %2415 = vdwg.mxu0
        %v2416 = vmax.f32 %v1660, %v1664
        %v2417 = vmax.f32 %v2416, %v1670
        %v2418 = vmax.f32 %v2417, %v1674
        %v2419 = vmax.f32 %v2418, %v1680
        %v2420 = vmax.f32 %v2419, %v1684
        %v2421 = vmax.f32 %v2420, %v1690
        %v2422 = vmax.f32 %v2421, %v1694
        %v2423 = vmax.f32 %v2422, %v1700
        %v2424 = vmax.f32 %v2423, %v1704
        %v2425 = vmax.f32 %v2424, %v1710
        %v2426 = vmax.f32 %v2425, %v1714
        %v2427 = vmax.f32 %v2426, %v1720
        %v2428 = vmax.f32 %v2427, %v1724
        %v2429 = vmax.f32 %v2428, %v1730
        %v2430 = vmax.f32 %v2429, %v1734
        %v2431 = vmax.f32 %v1662, %v1666
        %v2432 = vmax.f32 %v2431, %v1672
        %v2433 = vmax.f32 %v2432, %v1676
        %v2434 = vmax.f32 %v2433, %v1682
        %v2435 = vmax.f32 %v2434, %v1686
        %v2436 = vmax.f32 %v2435, %v1692
        %v2437 = vmax.f32 %v2436, %v1696
        %v2438 = vmax.f32 %v2437, %v1702
        %v2439 = vmax.f32 %v2438, %v1706
        %v2440 = vmax.f32 %v2439, %v1712
        %v2441 = vmax.f32 %v2440, %v1716
        %v2442 = vmax.f32 %v2441, %v1722
        %v2443 = vmax.f32 %v2442, %v1726
        %v2444 = vmax.f32 %v2443, %v1732
        %v2445 = vmax.f32 %v2444, %v1736
        %v2446 = vmax.f32 %v1886, %v1890
        %v2447 = vmax.f32 %v2446, %v1896
        %v2448 = vmax.f32 %v2447, %v1900
        %v2449 = vmax.f32 %v2448, %v1906
        %v2450 = vmax.f32 %v2449, %v1910
        %v2451 = vmax.f32 %v2450, %v1916
        %v2452 = vmax.f32 %v2451, %v1920
        %v2453 = vmax.f32 %v2452, %v1926
        %v2454 = vmax.f32 %v2453, %v1930
        %v2455 = vmax.f32 %v2454, %v1936
        %v2456 = vmax.f32 %v2455, %v1940
        %v2457 = vmax.f32 %v2456, %v1946
        %v2458 = vmax.f32 %v2457, %v1950
        %v2459 = vmax.f32 %v2458, %v1956
        %v2460 = vmax.f32 %v2459, %v1960
        %v2461 = vmax.f32 %v1888, %v1892
        %v2462 = vmax.f32 %v2461, %v1898
        %v2463 = vmax.f32 %v2462, %v1902
        %v2464 = vmax.f32 %v2463, %v1908
        %v2465 = vmax.f32 %v2464, %v1912
        %v2466 = vmax.f32 %v2465, %v1918
        %v2467 = vmax.f32 %v2466, %v1922
        %v2468 = vmax.f32 %v2467, %v1928
        %v2469 = vmax.f32 %v2468, %v1932
        %v2470 = vmax.f32 %v2469, %v1938
        %v2471 = vmax.f32 %v2470, %v1942
        %v2472 = vmax.f32 %v2471, %v1948
        %v2473 = vmax.f32 %v2472, %v1952
        %v2474 = vmax.f32 %v2473, %v1958
        %v2475 = vmax.f32 %v2474, %v1962
        %v2476 = vmax.f32 %v2112, %v2116
        %v2477 = vmax.f32 %v2476, %v2122
        %v2478 = vmax.f32 %v2477, %v2126
        %v2479 = vmax.f32 %v2478, %v2132
        %v2480 = vmax.f32 %v2479, %v2136
        %v2481 = vmax.f32 %v2480, %v2142
        %v2482 = vmax.f32 %v2481, %v2146
        %v2483 = vmax.f32 %v2482, %v2152
        %v2484 = vmax.f32 %v2483, %v2156
        %v2485 = vmax.f32 %v2484, %v2162
        %v2486 = vmax.f32 %v2485, %v2166
        %v2487 = vmax.f32 %v2486, %v2172
        %v2488 = vmax.f32 %v2487, %v2176
        %v2489 = vmax.f32 %v2488, %v2182
        %v2490 = vmax.f32 %v2489, %v2186
        %v2491 = vmax.f32 %v2114, %v2118
        %v2492 = vmax.f32 %v2491, %v2124
        %v2493 = vmax.f32 %v2492, %v2128
        %v2494 = vmax.f32 %v2493, %v2134
        %v2495 = vmax.f32 %v2494, %v2138
        %v2496 = vmax.f32 %v2495, %v2144
        %v2497 = vmax.f32 %v2496, %v2148
        %v2498 = vmax.f32 %v2497, %v2154
        %v2499 = vmax.f32 %v2498, %v2158
        %v2500 = vmax.f32 %v2499, %v2164
        %v2501 = vmax.f32 %v2500, %v2168
        %v2502 = vmax.f32 %v2501, %v2174
        %v2503 = vmax.f32 %v2502, %v2178
        %v2504 = vmax.f32 %v2503, %v2184
        %v2505 = vmax.f32 %v2504, %v2188
        %v2506 = vmax.f32 %v2338, %v2342
        %v2507 = vmax.f32 %v2506, %v2348
        %v2508 = vmax.f32 %v2507, %v2352
        %v2509 = vmax.f32 %v2508, %v2358
        %v2510 = vmax.f32 %v2509, %v2362
        %v2511 = vmax.f32 %v2510, %v2368
        %v2512 = vmax.f32 %v2511, %v2372
        %v2513 = vmax.f32 %v2512, %v2378
        %v2514 = vmax.f32 %v2513, %v2382
        %v2515 = vmax.f32 %v2514, %v2388
        %v2516 = vmax.f32 %v2515, %v2392
        %v2517 = vmax.f32 %v2516, %v2398
        %v2518 = vmax.f32 %v2517, %v2402
        %v2519 = vmax.f32 %v2518, %v2408
        %v2520 = vmax.f32 %v2519, %v2412
        %v2521 = vmax.f32 %v2340, %v2344
        %v2522 = vmax.f32 %v2521, %v2350
        %v2523 = vmax.f32 %v2522, %v2354
        %v2524 = vmax.f32 %v2523, %v2360
        %v2525 = vmax.f32 %v2524, %v2364
        %v2526 = vmax.f32 %v2525, %v2370
        %v2527 = vmax.f32 %v2526, %v2374
        %v2528 = vmax.f32 %v2527, %v2380
        %v2529 = vmax.f32 %v2528, %v2384
        %v2530 = vmax.f32 %v2529, %v2390
        %v2531 = vmax.f32 %v2530, %v2394
        %v2532 = vmax.f32 %v2531, %v2400
        %v2533 = vmax.f32 %v2532, %v2404
        %v2534 = vmax.f32 %v2533, %v2410
        %v2535 = vmax.f32 %v2534, %v2414
        %v2536 = vld [vmem:[%s3] ss:$4 sm:$0xff]
        %v2538 = vlaneseq
        %v2539 = vshrl.u32 %v2538, 7
        %v2540 = vsub.s32 0, %v2539
        %v2541 = vrot.slane %v2536, %v2540
        %v2542 = vlaneseq
        %v2543 = vshrl.u32 %v2542, 7
        %v2544 = vsub.s32 1, %v2543
        %v2545 = vrot.slane %v2536, %v2544
        %v2546 = vlaneseq
        %v2547 = vshrl.u32 %v2546, 7
        %v2548 = vsub.s32 2, %v2547
        %v2549 = vrot.slane %v2536, %v2548
        %v2550 = vlaneseq
        %v2551 = vshrl.u32 %v2550, 7
        %v2552 = vsub.s32 3, %v2551
        %v2553 = vrot.slane %v2536, %v2552
        %v2554 = vlaneseq
        %v2555 = vshrl.u32 %v2554, 7
        %v2556 = vsub.s32 4, %v2555
        %v2557 = vrot.slane %v2536, %v2556
        %v2558 = vlaneseq
        %v2559 = vshrl.u32 %v2558, 7
        %v2560 = vsub.s32 5, %v2559
        %v2561 = vrot.slane %v2536, %v2560
        %v2562 = vlaneseq
        %v2563 = vshrl.u32 %v2562, 7
        %v2564 = vsub.s32 6, %v2563
        %v2565 = vrot.slane %v2536, %v2564
        %v2566 = vlaneseq
        %v2567 = vshrl.u32 %v2566, 7
        %v2568 = vsub.s32 7, %v2567
        %v2569 = vrot.slane %v2536, %v2568
        %v2578 = vadd.f32 %v2430, %v2541
        %v2579 = vadd.f32 %v2445, %v2545
        %v2580 = vadd.f32 %v2460, %v2549
        %v2581 = vadd.f32 %v2475, %v2553
        %v2582 = vadd.f32 %v2490, %v2557
        %v2583 = vadd.f32 %v2505, %v2561
        %v2584 = vadd.f32 %v2520, %v2565
        %v2585 = vadd.f32 %v2535, %v2569
        %vm2586 = vcmp.ge.f32.partialorder %v2578, 0.0
        %vm2587 = vcmp.ge.f32.partialorder %v2579, 0.0
        %vm2588 = vcmp.ge.f32.partialorder %v2580, 0.0
        %vm2589 = vcmp.ge.f32.partialorder %v2581, 0.0
        %vm2590 = vcmp.ge.f32.partialorder %v2582, 0.0
        %vm2591 = vcmp.ge.f32.partialorder %v2583, 0.0
        %vm2592 = vcmp.ge.f32.partialorder %v2584, 0.0
        %vm2593 = vcmp.ge.f32.partialorder %v2585, 0.0
        %v2594 = vmul.f32 %v2578, 0.01
        %v2595 = vmul.f32 %v2579, 0.01
        %v2596 = vmul.f32 %v2580, 0.01
        %v2597 = vmul.f32 %v2581, 0.01
        %v2598 = vmul.f32 %v2582, 0.01
        %v2599 = vmul.f32 %v2583, 0.01
        %v2600 = vmul.f32 %v2584, 0.01
        %v2601 = vmul.f32 %v2585, 0.01
        %v2602 = vsel %vm2586, %v2578, %v2594
        %v2603 = vsel %vm2587, %v2579, %v2595
        %v2604 = vsel %vm2588, %v2580, %v2596
        %v2605 = vsel %vm2589, %v2581, %v2597
        %v2606 = vsel %vm2590, %v2582, %v2598
        %v2607 = vsel %vm2591, %v2583, %v2599
        %v2608 = vsel %vm2592, %v2584, %v2600
        %v2609 = vsel %vm2593, %v2585, %v2601
        %v2610 = vpack.c.bf16 %v2602, %v2602
        %v2611 = vpack.c.bf16 %v2603, %v2603
        %v2612 = vpack.c.bf16 %v2604, %v2604
        %v2613 = vpack.c.bf16 %v2605, %v2605
        %v2614 = vpack.c.bf16 %v2606, %v2606
        %v2615 = vpack.c.bf16 %v2607, %v2607
        %v2616 = vpack.c.bf16 %v2608, %v2608
        %v2617 = vpack.c.bf16 %v2609, %v2609
        %v2618 = vld [vmem:[%s428] sm:$0xff]
        %v2619 = vld [vmem:[%s428 + $0x8] sm:$0xff]
        %v2620 = vld [vmem:[%s428 + $0x10] sm:$0xff]
        %v2621 = vld [vmem:[%s428 + $0x18] sm:$0xff]
        %v2622 = vld [vmem:[%s4] sm:$0xff]
        %v2623 = vld [vmem:[%s4 + $0x8] sm:$0xff]
        %v2624 = vld [vmem:[%s4 + $0x10] sm:$0xff]
        %v2625 = vld [vmem:[%s4 + $0x18] sm:$0xff]
        %v2626 = vld [vmem:[%s4 + $0x20] sm:$0xff]
        %v2627 = vld [vmem:[%s4 + $0x28] sm:$0xff]
        %v2628 = vld [vmem:[%s4 + $0x30] sm:$0xff]
        %v2629 = vld [vmem:[%s4 + $0x38] sm:$0xff]
        %v2630 = vld [vmem:[%s4 + $0x40] sm:$0xff]
        %v2631 = vld [vmem:[%s4 + $0x48] sm:$0xff]
        %v2632 = vld [vmem:[%s4 + $0x50] sm:$0xff]
        %v2633 = vld [vmem:[%s4 + $0x58] sm:$0xff]
        %v2634 = vld [vmem:[%s4 + $0x60] sm:$0xff]
        %v2635 = vld [vmem:[%s4 + $0x68] sm:$0xff]
        %v2636 = vld [vmem:[%s4 + $0x70] sm:$0xff]
        %v2637 = vld [vmem:[%s4 + $0x78] sm:$0xff]
        %v2638 = vld [vmem:[%s4 + $0x80] sm:$0xff]
        %v2639 = vld [vmem:[%s4 + $0x88] sm:$0xff]
        %v2640 = vld [vmem:[%s4 + $0x90] sm:$0xff]
        %v2641 = vld [vmem:[%s4 + $0x98] sm:$0xff]
        %v2642 = vld [vmem:[%s4 + $0xa0] sm:$0xff]
        %v2643 = vld [vmem:[%s4 + $0xa8] sm:$0xff]
        %v2644 = vld [vmem:[%s4 + $0xb0] sm:$0xff]
        %v2645 = vld [vmem:[%s4 + $0xb8] sm:$0xff]
        %v2646 = vld [vmem:[%s4 + $0xc0] sm:$0xff]
        %v2647 = vld [vmem:[%s4 + $0xc8] sm:$0xff]
        %v2648 = vld [vmem:[%s4 + $0xd0] sm:$0xff]
        %v2649 = vld [vmem:[%s4 + $0xd8] sm:$0xff]
        %v2650 = vld [vmem:[%s4 + $0xe0] sm:$0xff]
        %v2651 = vld [vmem:[%s4 + $0xe8] sm:$0xff]
        %v2652 = vld [vmem:[%s4 + $0xf0] sm:$0xff]
        %v2653 = vld [vmem:[%s4 + $0xf8] sm:$0xff]
        %v2654 = vld [vmem:[%s4 + $0x100] sm:$0xff]
        %v2655 = vld [vmem:[%s4 + $0x108] sm:$0xff]
        %v2656 = vld [vmem:[%s4 + $0x110] sm:$0xff]
        %v2657 = vld [vmem:[%s4 + $0x118] sm:$0xff]
        %v2658 = vld [vmem:[%s4 + $0x120] sm:$0xff]
        %v2659 = vld [vmem:[%s4 + $0x128] sm:$0xff]
        %v2660 = vld [vmem:[%s4 + $0x130] sm:$0xff]
        %v2661 = vld [vmem:[%s4 + $0x138] sm:$0xff]
        %v2662 = vld [vmem:[%s4 + $0x140] sm:$0xff]
        %v2663 = vld [vmem:[%s4 + $0x148] sm:$0xff]
        %v2664 = vld [vmem:[%s4 + $0x150] sm:$0xff]
        %v2665 = vld [vmem:[%s4 + $0x158] sm:$0xff]
        %v2666 = vld [vmem:[%s4 + $0x160] sm:$0xff]
        %v2667 = vld [vmem:[%s4 + $0x168] sm:$0xff]
        %v2668 = vld [vmem:[%s4 + $0x170] sm:$0xff]
        %v2669 = vld [vmem:[%s4 + $0x178] sm:$0xff]
        %v2670 = vld [vmem:[%s4 + $0x180] sm:$0xff]
        %v2671 = vld [vmem:[%s4 + $0x188] sm:$0xff]
        %v2672 = vld [vmem:[%s4 + $0x190] sm:$0xff]
        %v2673 = vld [vmem:[%s4 + $0x198] sm:$0xff]
        %v2674 = vld [vmem:[%s4 + $0x1a0] sm:$0xff]
        %v2675 = vld [vmem:[%s4 + $0x1a8] sm:$0xff]
        %v2676 = vld [vmem:[%s4 + $0x1b0] sm:$0xff]
        %v2677 = vld [vmem:[%s4 + $0x1b8] sm:$0xff]
        %v2678 = vld [vmem:[%s4 + $0x1c0] sm:$0xff]
        %v2679 = vld [vmem:[%s4 + $0x1c8] sm:$0xff]
        %v2680 = vld [vmem:[%s4 + $0x1d0] sm:$0xff]
        %v2681 = vld [vmem:[%s4 + $0x1d8] sm:$0xff]
        %v2682 = vld [vmem:[%s4 + $0x1e0] sm:$0xff]
        %v2683 = vld [vmem:[%s4 + $0x1e8] sm:$0xff]
        %v2684 = vld [vmem:[%s4 + $0x1f0] sm:$0xff]
        %v2685 = vld [vmem:[%s4 + $0x1f8] sm:$0xff]
        %v2690 = vunpack.c.l.b16 %v2618
        %v2691 = vunpack.c.h.b16 %v2618
        %v2692 = vunpack.c.l.b16 %v2619
        %v2693 = vunpack.c.h.b16 %v2619
        %v2694 = vunpack.c.l.b16 %v2620
        %v2695 = vunpack.c.h.b16 %v2620
        %v2696 = vunpack.c.l.b16 %v2621
        %v2697 = vunpack.c.h.b16 %v2621
        %v2698 = vpack.c.b16 %v2694, %v2690
        %v2699 = vpack.c.b16 %v2695, %v2691
        %v2700 = vpack.c.b16 %v2696, %v2692
        %v2701 = vpack.c.b16 %v2697, %v2693
        %v2770 = vunpack.c.l.b16 %v2622
        %v2771 = vunpack.c.h.b16 %v2622
        %v2772 = vunpack.c.l.b16 %v2623
        %v2773 = vunpack.c.h.b16 %v2623
        %v2774 = vunpack.c.l.b16 %v2624
        %v2775 = vunpack.c.h.b16 %v2624
        %v2776 = vunpack.c.l.b16 %v2625
        %v2777 = vunpack.c.h.b16 %v2625
        %v2778 = vunpack.c.l.b16 %v2626
        %v2779 = vunpack.c.h.b16 %v2626
        %v2780 = vunpack.c.l.b16 %v2627
        %v2781 = vunpack.c.h.b16 %v2627
        %v2782 = vunpack.c.l.b16 %v2628
        %v2783 = vunpack.c.h.b16 %v2628
        %v2784 = vunpack.c.l.b16 %v2629
        %v2785 = vunpack.c.h.b16 %v2629
        %v2786 = vunpack.c.l.b16 %v2630
        %v2787 = vunpack.c.h.b16 %v2630
        %v2788 = vunpack.c.l.b16 %v2631
        %v2789 = vunpack.c.h.b16 %v2631
        %v2790 = vunpack.c.l.b16 %v2632
        %v2791 = vunpack.c.h.b16 %v2632
        %v2792 = vunpack.c.l.b16 %v2633
        %v2793 = vunpack.c.h.b16 %v2633
        %v2794 = vunpack.c.l.b16 %v2634
        %v2795 = vunpack.c.h.b16 %v2634
        %v2796 = vunpack.c.l.b16 %v2635
        %v2797 = vunpack.c.h.b16 %v2635
        %v2798 = vunpack.c.l.b16 %v2636
        %v2799 = vunpack.c.h.b16 %v2636
        %v2800 = vunpack.c.l.b16 %v2637
        %v2801 = vunpack.c.h.b16 %v2637
        %v2802 = vunpack.c.l.b16 %v2638
        %v2803 = vunpack.c.h.b16 %v2638
        %v2804 = vunpack.c.l.b16 %v2639
        %v2805 = vunpack.c.h.b16 %v2639
        %v2806 = vunpack.c.l.b16 %v2640
        %v2807 = vunpack.c.h.b16 %v2640
        %v2808 = vunpack.c.l.b16 %v2641
        %v2809 = vunpack.c.h.b16 %v2641
        %v2810 = vunpack.c.l.b16 %v2642
        %v2811 = vunpack.c.h.b16 %v2642
        %v2812 = vunpack.c.l.b16 %v2643
        %v2813 = vunpack.c.h.b16 %v2643
        %v2814 = vunpack.c.l.b16 %v2644
        %v2815 = vunpack.c.h.b16 %v2644
        %v2816 = vunpack.c.l.b16 %v2645
        %v2817 = vunpack.c.h.b16 %v2645
        %v2818 = vunpack.c.l.b16 %v2646
        %v2819 = vunpack.c.h.b16 %v2646
        %v2820 = vunpack.c.l.b16 %v2647
        %v2821 = vunpack.c.h.b16 %v2647
        %v2822 = vunpack.c.l.b16 %v2648
        %v2823 = vunpack.c.h.b16 %v2648
        %v2824 = vunpack.c.l.b16 %v2649
        %v2825 = vunpack.c.h.b16 %v2649
        %v2826 = vunpack.c.l.b16 %v2650
        %v2827 = vunpack.c.h.b16 %v2650
        %v2828 = vunpack.c.l.b16 %v2651
        %v2829 = vunpack.c.h.b16 %v2651
        %v2830 = vunpack.c.l.b16 %v2652
        %v2831 = vunpack.c.h.b16 %v2652
        %v2832 = vunpack.c.l.b16 %v2653
        %v2833 = vunpack.c.h.b16 %v2653
        %v2834 = vunpack.c.l.b16 %v2654
        %v2835 = vunpack.c.h.b16 %v2654
        %v2836 = vunpack.c.l.b16 %v2655
        %v2837 = vunpack.c.h.b16 %v2655
        %v2838 = vunpack.c.l.b16 %v2656
        %v2839 = vunpack.c.h.b16 %v2656
        %v2840 = vunpack.c.l.b16 %v2657
        %v2841 = vunpack.c.h.b16 %v2657
        %v2842 = vunpack.c.l.b16 %v2658
        %v2843 = vunpack.c.h.b16 %v2658
        %v2844 = vunpack.c.l.b16 %v2659
        %v2845 = vunpack.c.h.b16 %v2659
        %v2846 = vunpack.c.l.b16 %v2660
        %v2847 = vunpack.c.h.b16 %v2660
        %v2848 = vunpack.c.l.b16 %v2661
        %v2849 = vunpack.c.h.b16 %v2661
        %v2850 = vunpack.c.l.b16 %v2662
        %v2851 = vunpack.c.h.b16 %v2662
        %v2852 = vunpack.c.l.b16 %v2663
        %v2853 = vunpack.c.h.b16 %v2663
        %v2854 = vunpack.c.l.b16 %v2664
        %v2855 = vunpack.c.h.b16 %v2664
        %v2856 = vunpack.c.l.b16 %v2665
        %v2857 = vunpack.c.h.b16 %v2665
        %v2858 = vunpack.c.l.b16 %v2666
        %v2859 = vunpack.c.h.b16 %v2666
        %v2860 = vunpack.c.l.b16 %v2667
        %v2861 = vunpack.c.h.b16 %v2667
        %v2862 = vunpack.c.l.b16 %v2668
        %v2863 = vunpack.c.h.b16 %v2668
        %v2864 = vunpack.c.l.b16 %v2669
        %v2865 = vunpack.c.h.b16 %v2669
        %v2866 = vunpack.c.l.b16 %v2670
        %v2867 = vunpack.c.h.b16 %v2670
        %v2868 = vunpack.c.l.b16 %v2671
        %v2869 = vunpack.c.h.b16 %v2671
        %v2870 = vunpack.c.l.b16 %v2672
        %v2871 = vunpack.c.h.b16 %v2672
        %v2872 = vunpack.c.l.b16 %v2673
        %v2873 = vunpack.c.h.b16 %v2673
        %v2874 = vunpack.c.l.b16 %v2674
        %v2875 = vunpack.c.h.b16 %v2674
        %v2876 = vunpack.c.l.b16 %v2675
        %v2877 = vunpack.c.h.b16 %v2675
        %v2878 = vunpack.c.l.b16 %v2676
        %v2879 = vunpack.c.h.b16 %v2676
        %v2880 = vunpack.c.l.b16 %v2677
        %v2881 = vunpack.c.h.b16 %v2677
        %v2882 = vunpack.c.l.b16 %v2678
        %v2883 = vunpack.c.h.b16 %v2678
        %v2884 = vunpack.c.l.b16 %v2679
        %v2885 = vunpack.c.h.b16 %v2679
        %v2886 = vunpack.c.l.b16 %v2680
        %v2887 = vunpack.c.h.b16 %v2680
        %v2888 = vunpack.c.l.b16 %v2681
        %v2889 = vunpack.c.h.b16 %v2681
        %v2890 = vunpack.c.l.b16 %v2682
        %v2891 = vunpack.c.h.b16 %v2682
        %v2892 = vunpack.c.l.b16 %v2683
        %v2893 = vunpack.c.h.b16 %v2683
        %v2894 = vunpack.c.l.b16 %v2684
        %v2895 = vunpack.c.h.b16 %v2684
        %v2896 = vunpack.c.l.b16 %v2685
        %v2897 = vunpack.c.h.b16 %v2685
        %v2898 = vpack.c.b16 %v2772, %v2770
        %v2899 = vpack.c.b16 %v2773, %v2771
        %v2900 = vpack.c.b16 %v2776, %v2774
        %v2901 = vpack.c.b16 %v2777, %v2775
        %v2902 = vpack.c.b16 %v2780, %v2778
        %v2903 = vpack.c.b16 %v2781, %v2779
        %v2904 = vpack.c.b16 %v2784, %v2782
        %v2905 = vpack.c.b16 %v2785, %v2783
        %v2906 = vpack.c.b16 %v2788, %v2786
        %v2907 = vpack.c.b16 %v2789, %v2787
        %v2908 = vpack.c.b16 %v2792, %v2790
        %v2909 = vpack.c.b16 %v2793, %v2791
        %v2910 = vpack.c.b16 %v2796, %v2794
        %v2911 = vpack.c.b16 %v2797, %v2795
        %v2912 = vpack.c.b16 %v2800, %v2798
        %v2913 = vpack.c.b16 %v2801, %v2799
        %v2914 = vpack.c.b16 %v2804, %v2802
        %v2915 = vpack.c.b16 %v2805, %v2803
        %v2916 = vpack.c.b16 %v2808, %v2806
        %v2917 = vpack.c.b16 %v2809, %v2807
        %v2918 = vpack.c.b16 %v2812, %v2810
        %v2919 = vpack.c.b16 %v2813, %v2811
        %v2920 = vpack.c.b16 %v2816, %v2814
        %v2921 = vpack.c.b16 %v2817, %v2815
        %v2922 = vpack.c.b16 %v2820, %v2818
        %v2923 = vpack.c.b16 %v2821, %v2819
        %v2924 = vpack.c.b16 %v2824, %v2822
        %v2925 = vpack.c.b16 %v2825, %v2823
        %v2926 = vpack.c.b16 %v2828, %v2826
        %v2927 = vpack.c.b16 %v2829, %v2827
        %v2928 = vpack.c.b16 %v2832, %v2830
        %v2929 = vpack.c.b16 %v2833, %v2831
        %v2930 = vpack.c.b16 %v2836, %v2834
        %v2931 = vpack.c.b16 %v2837, %v2835
        %v2932 = vpack.c.b16 %v2840, %v2838
        %v2933 = vpack.c.b16 %v2841, %v2839
        %v2934 = vpack.c.b16 %v2844, %v2842
        %v2935 = vpack.c.b16 %v2845, %v2843
        %v2936 = vpack.c.b16 %v2848, %v2846
        %v2937 = vpack.c.b16 %v2849, %v2847
        %v2938 = vpack.c.b16 %v2852, %v2850
        %v2939 = vpack.c.b16 %v2853, %v2851
        %v2940 = vpack.c.b16 %v2856, %v2854
        %v2941 = vpack.c.b16 %v2857, %v2855
        %v2942 = vpack.c.b16 %v2860, %v2858
        %v2943 = vpack.c.b16 %v2861, %v2859
        %v2944 = vpack.c.b16 %v2864, %v2862
        %v2945 = vpack.c.b16 %v2865, %v2863
        %v2946 = vpack.c.b16 %v2868, %v2866
        %v2947 = vpack.c.b16 %v2869, %v2867
        %v2948 = vpack.c.b16 %v2872, %v2870
        %v2949 = vpack.c.b16 %v2873, %v2871
        %v2950 = vpack.c.b16 %v2876, %v2874
        %v2951 = vpack.c.b16 %v2877, %v2875
        %v2952 = vpack.c.b16 %v2880, %v2878
        %v2953 = vpack.c.b16 %v2881, %v2879
        %v2954 = vpack.c.b16 %v2884, %v2882
        %v2955 = vpack.c.b16 %v2885, %v2883
        %v2956 = vpack.c.b16 %v2888, %v2886
        %v2957 = vpack.c.b16 %v2889, %v2887
        %v2958 = vpack.c.b16 %v2892, %v2890
        %v2959 = vpack.c.b16 %v2893, %v2891
        %v2960 = vpack.c.b16 %v2896, %v2894
        %v2961 = vpack.c.b16 %v2897, %v2895
        %3026 = vmatprep.subr.bf16.mxu0 %v2899
        %3027 = vmatpush1.bf16.msra.mxu0 %v2898
        %3028 = vmatprep.subr.bf16.mxu0 %v2901
        %3029 = vmatpush1.bf16.msra.mxu0 %v2900
        %3030 = vmatprep.subr.bf16.mxu0 %v2903
        %3031 = vmatpush1.bf16.msra.mxu0 %v2902
        %3032 = vmatprep.subr.bf16.mxu0 %v2905
        %3033 = vmatpush1.bf16.msra.mxu0 %v2904
        %3034 = vmatprep.subr.bf16.mxu0 %v2907
        %3035 = vmatpush1.bf16.msra.mxu0 %v2906
        %3036 = vmatprep.subr.bf16.mxu0 %v2909
        %3037 = vmatpush1.bf16.msra.mxu0 %v2908
        %3038 = vmatprep.subr.bf16.mxu0 %v2911
        %3039 = vmatpush1.bf16.msra.mxu0 %v2910
        %3040 = vmatprep.subr.bf16.mxu0 %v2913
        %3041 = vmatpush1.bf16.msra.mxu0 %v2912
        %3042 = vmatprep.subr.bf16.mxu0 %v2915
        %3043 = vmatpush1.bf16.msra.mxu0 %v2914
        %3044 = vmatprep.subr.bf16.mxu0 %v2917
        %3045 = vmatpush1.bf16.msra.mxu0 %v2916
        %3046 = vmatprep.subr.bf16.mxu0 %v2919
        %3047 = vmatpush1.bf16.msra.mxu0 %v2918
        %3048 = vmatprep.subr.bf16.mxu0 %v2921
        %3049 = vmatpush1.bf16.msra.mxu0 %v2920
        %3050 = vmatprep.subr.bf16.mxu0 %v2923
        %3051 = vmatpush1.bf16.msra.mxu0 %v2922
        %3052 = vmatprep.subr.bf16.mxu0 %v2925
        %3053 = vmatpush1.bf16.msra.mxu0 %v2924
        %3054 = vmatprep.subr.bf16.mxu0 %v2927
        %3055 = vmatpush1.bf16.msra.mxu0 %v2926
        %3056 = vmatprep.subr.bf16.mxu0 %v2929
        %3057 = vmatpush1.bf16.msra.mxu0 %v2928
        %3058 = vmatprep.mubr.bf16.mxu0 %v2699
        %3059 = vmatmul.mubr.bf16.gmra.mrb[0].mxu0 %v2698
        %v3060 = vpop.f32.mrb[0].mxu0
        %v3061 = vadd.f32 0.0, %v3060
        %v3062 = vpop.f32.mrb[0].mxu0
        %v3063 = vadd.f32 0.0, %v3062
        %v3064 = vpop.f32.mrb[0].mxu0
        %v3065 = vadd.f32 0.0, %v3064
        %v3066 = vpop.f32.mrb[0].mxu0
        %v3067 = vadd.f32 0.0, %v3066
        %3068 = vdwg.mxu0
        %3069 = vmatprep.subr.bf16.mxu0 %v2931
        %3070 = vmatpush1.bf16.msra.mxu0 %v2930
        %3071 = vmatprep.subr.bf16.mxu0 %v2933
        %3072 = vmatpush1.bf16.msra.mxu0 %v2932
        %3073 = vmatprep.subr.bf16.mxu0 %v2935
        %3074 = vmatpush1.bf16.msra.mxu0 %v2934
        %3075 = vmatprep.subr.bf16.mxu0 %v2937
        %3076 = vmatpush1.bf16.msra.mxu0 %v2936
        %3077 = vmatprep.subr.bf16.mxu0 %v2939
        %3078 = vmatpush1.bf16.msra.mxu0 %v2938
        %3079 = vmatprep.subr.bf16.mxu0 %v2941
        %3080 = vmatpush1.bf16.msra.mxu0 %v2940
        %3081 = vmatprep.subr.bf16.mxu0 %v2943
        %3082 = vmatpush1.bf16.msra.mxu0 %v2942
        %3083 = vmatprep.subr.bf16.mxu0 %v2945
        %3084 = vmatpush1.bf16.msra.mxu0 %v2944
        %3085 = vmatprep.subr.bf16.mxu0 %v2947
        %3086 = vmatpush1.bf16.msra.mxu0 %v2946
        %3087 = vmatprep.subr.bf16.mxu0 %v2949
        %3088 = vmatpush1.bf16.msra.mxu0 %v2948
        %3089 = vmatprep.subr.bf16.mxu0 %v2951
        %3090 = vmatpush1.bf16.msra.mxu0 %v2950
        %3091 = vmatprep.subr.bf16.mxu0 %v2953
        %3092 = vmatpush1.bf16.msra.mxu0 %v2952
        %3093 = vmatprep.subr.bf16.mxu0 %v2955
        %3094 = vmatpush1.bf16.msra.mxu0 %v2954
        %3095 = vmatprep.subr.bf16.mxu0 %v2957
        %3096 = vmatpush1.bf16.msra.mxu0 %v2956
        %3097 = vmatprep.subr.bf16.mxu0 %v2959
        %3098 = vmatpush1.bf16.msra.mxu0 %v2958
        %3099 = vmatprep.subr.bf16.mxu0 %v2961
        %3100 = vmatpush1.bf16.msra.mxu0 %v2960
        %3101 = vmatprep.mubr.bf16.mxu0 %v2701
        %3102 = vmatmul.mubr.bf16.gmra.mrb[0].mxu0 %v2700
        %v3103 = vpop.f32.mrb[0].mxu0
        %v3104 = vadd.f32 %v3061, %v3103
        %v3105 = vpop.f32.mrb[0].mxu0
        %v3106 = vadd.f32 %v3063, %v3105
        %v3107 = vpop.f32.mrb[0].mxu0
        %v3108 = vadd.f32 %v3065, %v3107
        %v3109 = vpop.f32.mrb[0].mxu0
        %v3110 = vadd.f32 %v3067, %v3109
        %3111 = vdwg.mxu0
        %v3112 = vmax.f32 %v3104, %v3106
        %v3113 = vmax.f32 %v3108, %v3110
        %3116 = vrot.lane.b32.xlu0 %v3112, 64
        %v3117 = vpop.permute.xlu0 %3116
        %3118 = vrot.lane.b32.xlu0 %v3113, 64
        %v3119 = vpop.permute.xlu0 %3118
        %v3122 = vmax.f32 %v3112, %v3117
        %v3123 = vmax.f32 %v3113, %v3119
        %3126 = vrot.lane.b32.xlu0 %v3122, 96
        %v3127 = vpop.permute.xlu0 %3126
        %3128 = vrot.lane.b32.xlu0 %v3123, 96
        %v3129 = vpop.permute.xlu0 %3128
        %v3132 = vmax.f32 %v3122, %v3127
        %v3133 = vmax.f32 %v3123, %v3129
        %3136 = vrot.lane.b32.xlu0 %v3132, 112
        %v3137 = vpop.permute.xlu0 %3136
        %3138 = vrot.lane.b32.xlu0 %v3133, 112
        %v3139 = vpop.permute.xlu0 %3138
        %v3142 = vmax.f32 %v3132, %v3137
        %v3143 = vmax.f32 %v3133, %v3139
        %vm3144 = vcmp.ge.f32.partialorder %v3142, 0.0
        %vm3145 = vcmp.ge.f32.partialorder %v3143, 0.0
        %v3146 = vmul.f32 %v3142, 0.01
        %v3147 = vmul.f32 %v3143, 0.01
        %v3148 = vsel %vm3144, %v3142, %v3146
        %v3149 = vsel %vm3145, %v3143, %v3147
        %v3150 = vpack.c.bf16 %v3148, %v3148
        %v3151 = vpack.c.bf16 %v3149, %v3149
        %v3152 = vld [vmem:[%s5] sm:$0xf]
        %v3153 = vld [vmem:[%s5 + $0x4] sm:$0xf]
        %v3154 = vld [vmem:[%s5 + $0x8] sm:$0xf]
        %v3155 = vld [vmem:[%s5 + $0xc] sm:$0xf]
        %v3156 = vld [vmem:[%s5 + $0x10] sm:$0xf]
        %v3157 = vld [vmem:[%s5 + $0x14] sm:$0xf]
        %v3158 = vld [vmem:[%s5 + $0x18] sm:$0xf]
        %v3159 = vld [vmem:[%s5 + $0x1c] sm:$0xf]
        %v3160 = vld [vmem:[%s5 + $0x20] sm:$0xf]
        %v3161 = vld [vmem:[%s5 + $0x24] sm:$0xf]
        %v3162 = vld [vmem:[%s5 + $0x28] sm:$0xf]
        %v3163 = vld [vmem:[%s5 + $0x2c] sm:$0xf]
        %v3164 = vld [vmem:[%s5 + $0x30] sm:$0xf]
        %v3165 = vld [vmem:[%s5 + $0x34] sm:$0xf]
        %v3166 = vld [vmem:[%s5 + $0x38] sm:$0xf]
        %v3167 = vld [vmem:[%s5 + $0x3c] sm:$0xf]
        %v3168 = vld [vmem:[%s5 + $0x40] sm:$0xf]
        %v3169 = vld [vmem:[%s5 + $0x44] sm:$0xf]
        %v3170 = vld [vmem:[%s5 + $0x48] sm:$0xf]
        %v3171 = vld [vmem:[%s5 + $0x4c] sm:$0xf]
        %v3172 = vld [vmem:[%s5 + $0x50] sm:$0xf]
        %v3173 = vld [vmem:[%s5 + $0x54] sm:$0xf]
        %v3174 = vld [vmem:[%s5 + $0x58] sm:$0xf]
        %v3175 = vld [vmem:[%s5 + $0x5c] sm:$0xf]
        %v3176 = vld [vmem:[%s5 + $0x60] sm:$0xf]
        %v3177 = vld [vmem:[%s5 + $0x64] sm:$0xf]
        %v3178 = vld [vmem:[%s5 + $0x68] sm:$0xf]
        %v3179 = vld [vmem:[%s5 + $0x6c] sm:$0xf]
        %v3180 = vld [vmem:[%s5 + $0x70] sm:$0xf]
        %v3181 = vld [vmem:[%s5 + $0x74] sm:$0xf]
        %v3182 = vld [vmem:[%s5 + $0x78] sm:$0xf]
        %v3183 = vld [vmem:[%s5 + $0x7c] sm:$0xf]
        %v3184 = vld [vmem:[%s5 + $0x80] sm:$0xf]
        %v3185 = vld [vmem:[%s5 + $0x84] sm:$0xf]
        %v3186 = vld [vmem:[%s5 + $0x88] sm:$0xf]
        %v3187 = vld [vmem:[%s5 + $0x8c] sm:$0xf]
        %v3188 = vld [vmem:[%s5 + $0x90] sm:$0xf]
        %v3189 = vld [vmem:[%s5 + $0x94] sm:$0xf]
        %v3190 = vld [vmem:[%s5 + $0x98] sm:$0xf]
        %v3191 = vld [vmem:[%s5 + $0x9c] sm:$0xf]
        %v3192 = vld [vmem:[%s5 + $0xa0] sm:$0xf]
        %v3193 = vld [vmem:[%s5 + $0xa4] sm:$0xf]
        %v3194 = vld [vmem:[%s5 + $0xa8] sm:$0xf]
        %v3195 = vld [vmem:[%s5 + $0xac] sm:$0xf]
        %v3196 = vld [vmem:[%s5 + $0xb0] sm:$0xf]
        %v3197 = vld [vmem:[%s5 + $0xb4] sm:$0xf]
        %v3198 = vld [vmem:[%s5 + $0xb8] sm:$0xf]
        %v3199 = vld [vmem:[%s5 + $0xbc] sm:$0xf]
        %v3200 = vld [vmem:[%s5 + $0xc0] sm:$0xf]
        %v3201 = vld [vmem:[%s5 + $0xc4] sm:$0xf]
        %v3202 = vld [vmem:[%s5 + $0xc8] sm:$0xf]
        %v3203 = vld [vmem:[%s5 + $0xcc] sm:$0xf]
        %v3204 = vld [vmem:[%s5 + $0xd0] sm:$0xf]
        %v3205 = vld [vmem:[%s5 + $0xd4] sm:$0xf]
        %v3206 = vld [vmem:[%s5 + $0xd8] sm:$0xf]
        %v3207 = vld [vmem:[%s5 + $0xdc] sm:$0xf]
        %v3208 = vld [vmem:[%s5 + $0xe0] sm:$0xf]
        %v3209 = vld [vmem:[%s5 + $0xe4] sm:$0xf]
        %v3210 = vld [vmem:[%s5 + $0xe8] sm:$0xf]
        %v3211 = vld [vmem:[%s5 + $0xec] sm:$0xf]
        %v3212 = vld [vmem:[%s5 + $0xf0] sm:$0xf]
        %v3213 = vld [vmem:[%s5 + $0xf4] sm:$0xf]
        %v3214 = vld [vmem:[%s5 + $0xf8] sm:$0xf]
        %v3215 = vld [vmem:[%s5 + $0xfc] sm:$0xf]
        %v3216 = vld [vmem:[%s5 + $0x100] sm:$0xf]
        %v3217 = vld [vmem:[%s5 + $0x104] sm:$0xf]
        %v3218 = vld [vmem:[%s5 + $0x108] sm:$0xf]
        %v3219 = vld [vmem:[%s5 + $0x10c] sm:$0xf]
        %v3220 = vld [vmem:[%s5 + $0x110] sm:$0xf]
        %v3221 = vld [vmem:[%s5 + $0x114] sm:$0xf]
        %v3222 = vld [vmem:[%s5 + $0x118] sm:$0xf]
        %v3223 = vld [vmem:[%s5 + $0x11c] sm:$0xf]
        %v3224 = vld [vmem:[%s5 + $0x120] sm:$0xf]
        %v3225 = vld [vmem:[%s5 + $0x124] sm:$0xf]
        %v3226 = vld [vmem:[%s5 + $0x128] sm:$0xf]
        %v3227 = vld [vmem:[%s5 + $0x12c] sm:$0xf]
        %v3228 = vld [vmem:[%s5 + $0x130] sm:$0xf]
        %v3229 = vld [vmem:[%s5 + $0x134] sm:$0xf]
        %v3230 = vld [vmem:[%s5 + $0x138] sm:$0xf]
        %v3231 = vld [vmem:[%s5 + $0x13c] sm:$0xf]
        %v3232 = vld [vmem:[%s5 + $0x140] sm:$0xf]
        %v3233 = vld [vmem:[%s5 + $0x144] sm:$0xf]
        %v3234 = vld [vmem:[%s5 + $0x148] sm:$0xf]
        %v3235 = vld [vmem:[%s5 + $0x14c] sm:$0xf]
        %v3236 = vld [vmem:[%s5 + $0x150] sm:$0xf]
        %v3237 = vld [vmem:[%s5 + $0x154] sm:$0xf]
        %v3238 = vld [vmem:[%s5 + $0x158] sm:$0xf]
        %v3239 = vld [vmem:[%s5 + $0x15c] sm:$0xf]
        %v3240 = vld [vmem:[%s5 + $0x160] sm:$0xf]
        %v3241 = vld [vmem:[%s5 + $0x164] sm:$0xf]
        %v3242 = vld [vmem:[%s5 + $0x168] sm:$0xf]
        %v3243 = vld [vmem:[%s5 + $0x16c] sm:$0xf]
        %v3244 = vld [vmem:[%s5 + $0x170] sm:$0xf]
        %v3245 = vld [vmem:[%s5 + $0x174] sm:$0xf]
        %v3246 = vld [vmem:[%s5 + $0x178] sm:$0xf]
        %v3247 = vld [vmem:[%s5 + $0x17c] sm:$0xf]
        %v3248 = vld [vmem:[%s5 + $0x180] sm:$0xf]
        %v3249 = vld [vmem:[%s5 + $0x184] sm:$0xf]
        %v3250 = vld [vmem:[%s5 + $0x188] sm:$0xf]
        %v3251 = vld [vmem:[%s5 + $0x18c] sm:$0xf]
        %v3252 = vld [vmem:[%s5 + $0x190] sm:$0xf]
        %v3253 = vld [vmem:[%s5 + $0x194] sm:$0xf]
        %v3254 = vld [vmem:[%s5 + $0x198] sm:$0xf]
        %v3255 = vld [vmem:[%s5 + $0x19c] sm:$0xf]
        %v3256 = vld [vmem:[%s5 + $0x1a0] sm:$0xf]
        %v3257 = vld [vmem:[%s5 + $0x1a4] sm:$0xf]
        %v3258 = vld [vmem:[%s5 + $0x1a8] sm:$0xf]
        %v3259 = vld [vmem:[%s5 + $0x1ac] sm:$0xf]
        %v3260 = vld [vmem:[%s5 + $0x1b0] sm:$0xf]
        %v3261 = vld [vmem:[%s5 + $0x1b4] sm:$0xf]
        %v3262 = vld [vmem:[%s5 + $0x1b8] sm:$0xf]
        %v3263 = vld [vmem:[%s5 + $0x1bc] sm:$0xf]
        %v3264 = vld [vmem:[%s5 + $0x1c0] sm:$0xf]
        %v3265 = vld [vmem:[%s5 + $0x1c4] sm:$0xf]
        %v3266 = vld [vmem:[%s5 + $0x1c8] sm:$0xf]
        %v3267 = vld [vmem:[%s5 + $0x1cc] sm:$0xf]
        %v3268 = vld [vmem:[%s5 + $0x1d0] sm:$0xf]
        %v3269 = vld [vmem:[%s5 + $0x1d4] sm:$0xf]
        %v3270 = vld [vmem:[%s5 + $0x1d8] sm:$0xf]
        %v3271 = vld [vmem:[%s5 + $0x1dc] sm:$0xf]
        %v3272 = vld [vmem:[%s5 + $0x1e0] sm:$0xf]
        %v3273 = vld [vmem:[%s5 + $0x1e4] sm:$0xf]
        %v3274 = vld [vmem:[%s5 + $0x1e8] sm:$0xf]
        %v3275 = vld [vmem:[%s5 + $0x1ec] sm:$0xf]
        %v3276 = vld [vmem:[%s5 + $0x1f0] sm:$0xf]
        %v3277 = vld [vmem:[%s5 + $0x1f4] sm:$0xf]
        %v3278 = vld [vmem:[%s5 + $0x1f8] sm:$0xf]
        %v3279 = vld [vmem:[%s5 + $0x1fc] sm:$0xf]
        %v3280 = vld [vmem:[%s6] sm:$0xf]
        %v3281 = vld [vmem:[%s6 + $0x4] sm:$0xf]
        %v3284 = vunpack.c.l.b16 %v3280
        %v3285 = vunpack.c.l.b16 %v3281
        %v3286 = vpack.c.b16 %v3285, %v3284
        %vm3288 = vcmask 130048
        %v3290 = vsel %vm3288, %v3150, 0
        %3292 = vmatprep.subr.bf16.mxu0 0
        %3293 = vmatpush1.bf16.msra.mxu0 %v3286
        %3294 = vmatprep.subr.bf16.mxu0 0
        %3295 = vmatpush1.bf16.msra.mxu0 0
        %3296 = vmatprep.subr.bf16.mxu0 0
        %3297 = vmatpush1.bf16.msra.mxu0 0
        %3298 = vmatprep.subr.bf16.mxu0 0
        %3299 = vmatpush1.bf16.msra.mxu0 0
        %3300 = vmatprep.subr.bf16.mxu0 0
        %3301 = vmatpush1.bf16.msra.mxu0 0
        %3302 = vmatprep.subr.bf16.mxu0 0
        %3303 = vmatpush1.bf16.msra.mxu0 0
        %3304 = vmatprep.subr.bf16.mxu0 0
        %3305 = vmatpush1.bf16.msra.mxu0 0
        %3306 = vmatprep.subr.bf16.mxu0 0
        %3307 = vmatpush1.bf16.msra.mxu0 0
        %3308 = vmatprep.subr.bf16.mxu0 0
        %3309 = vmatpush1.bf16.msra.mxu0 0
        %3310 = vmatprep.subr.bf16.mxu0 0
        %3311 = vmatpush1.bf16.msra.mxu0 0
        %3312 = vmatprep.subr.bf16.mxu0 0
        %3313 = vmatpush1.bf16.msra.mxu0 0
        %3314 = vmatprep.subr.bf16.mxu0 0
        %3315 = vmatpush1.bf16.msra.mxu0 0
        %3316 = vmatprep.subr.bf16.mxu0 0
        %3317 = vmatpush1.bf16.msra.mxu0 0
        %3318 = vmatprep.subr.bf16.mxu0 0
        %3319 = vmatpush1.bf16.msra.mxu0 0
        %3320 = vmatprep.subr.bf16.mxu0 0
        %3321 = vmatpush1.bf16.msra.mxu0 0
        %3322 = vmatprep.subr.bf16.mxu0 0
        %3323 = vmatpush1.bf16.msra.mxu0 0
        %3324 = vmatprep.mubr.bf16.mxu0 0
        %3325 = vmatmul.mubr.bf16.gmra.mrb[0].mxu0 %v3290
        %v3326 = vpop.f32.mrb[0].mxu0
        %v3327 = vadd.f32 0.0, %v3326
        %v3328 = vpop.f32.mrb[0].mxu0
        %v3329 = vpop.f32.mrb[0].mxu0
        %v3330 = vpop.f32.mrb[0].mxu0
        %3331 = vdwg.mxu0
        %v3460 = vunpack.c.l.b16 %v3152
        %v3461 = vunpack.c.l.b16 %v3153
        %v3462 = vunpack.c.l.b16 %v3154
        %v3463 = vunpack.c.l.b16 %v3155
        %v3464 = vunpack.c.l.b16 %v3156
        %v3465 = vunpack.c.l.b16 %v3157
        %v3466 = vunpack.c.l.b16 %v3158
        %v3467 = vunpack.c.l.b16 %v3159
        %v3468 = vunpack.c.l.b16 %v3160
        %v3469 = vunpack.c.l.b16 %v3161
        %v3470 = vunpack.c.l.b16 %v3162
        %v3471 = vunpack.c.l.b16 %v3163
        %v3472 = vunpack.c.l.b16 %v3164
        %v3473 = vunpack.c.l.b16 %v3165
        %v3474 = vunpack.c.l.b16 %v3166
        %v3475 = vunpack.c.l.b16 %v3167
        %v3476 = vunpack.c.l.b16 %v3168
        %v3477 = vunpack.c.l.b16 %v3169
        %v3478 = vunpack.c.l.b16 %v3170
        %v3479 = vunpack.c.l.b16 %v3171
        %v3480 = vunpack.c.l.b16 %v3172
        %v3481 = vunpack.c.l.b16 %v3173
        %v3482 = vunpack.c.l.b16 %v3174
        %v3483 = vunpack.c.l.b16 %v3175
        %v3484 = vunpack.c.l.b16 %v3176
        %v3485 = vunpack.c.l.b16 %v3177
        %v3486 = vunpack.c.l.b16 %v3178
        %v3487 = vunpack.c.l.b16 %v3179
        %v3488 = vunpack.c.l.b16 %v3180
        %v3489 = vunpack.c.l.b16 %v3181
        %v3490 = vunpack.c.l.b16 %v3182
        %v3491 = vunpack.c.l.b16 %v3183
        %v3492 = vunpack.c.l.b16 %v3184
        %v3493 = vunpack.c.l.b16 %v3185
        %v3494 = vunpack.c.l.b16 %v3186
        %v3495 = vunpack.c.l.b16 %v3187
        %v3496 = vunpack.c.l.b16 %v3188
        %v3497 = vunpack.c.l.b16 %v3189
        %v3498 = vunpack.c.l.b16 %v3190
        %v3499 = vunpack.c.l.b16 %v3191
        %v3500 = vunpack.c.l.b16 %v3192
        %v3501 = vunpack.c.l.b16 %v3193
        %v3502 = vunpack.c.l.b16 %v3194
        %v3503 = vunpack.c.l.b16 %v3195
        %v3504 = vunpack.c.l.b16 %v3196
        %v3505 = vunpack.c.l.b16 %v3197
        %v3506 = vunpack.c.l.b16 %v3198
        %v3507 = vunpack.c.l.b16 %v3199
        %v3508 = vunpack.c.l.b16 %v3200
        %v3509 = vunpack.c.l.b16 %v3201
        %v3510 = vunpack.c.l.b16 %v3202
        %v3511 = vunpack.c.l.b16 %v3203
        %v3512 = vunpack.c.l.b16 %v3204
        %v3513 = vunpack.c.l.b16 %v3205
        %v3514 = vunpack.c.l.b16 %v3206
        %v3515 = vunpack.c.l.b16 %v3207
        %v3516 = vunpack.c.l.b16 %v3208
        %v3517 = vunpack.c.l.b16 %v3209
        %v3518 = vunpack.c.l.b16 %v3210
        %v3519 = vunpack.c.l.b16 %v3211
        %v3520 = vunpack.c.l.b16 %v3212
        %v3521 = vunpack.c.l.b16 %v3213
        %v3522 = vunpack.c.l.b16 %v3214
        %v3523 = vunpack.c.l.b16 %v3215
        %v3524 = vunpack.c.l.b16 %v3216
        %v3525 = vunpack.c.l.b16 %v3217
        %v3526 = vunpack.c.l.b16 %v3218
        %v3527 = vunpack.c.l.b16 %v3219
        %v3528 = vunpack.c.l.b16 %v3220
        %v3529 = vunpack.c.l.b16 %v3221
        %v3530 = vunpack.c.l.b16 %v3222
        %v3531 = vunpack.c.l.b16 %v3223
        %v3532 = vunpack.c.l.b16 %v3224
        %v3533 = vunpack.c.l.b16 %v3225
        %v3534 = vunpack.c.l.b16 %v3226
        %v3535 = vunpack.c.l.b16 %v3227
        %v3536 = vunpack.c.l.b16 %v3228
        %v3537 = vunpack.c.l.b16 %v3229
        %v3538 = vunpack.c.l.b16 %v3230
        %v3539 = vunpack.c.l.b16 %v3231
        %v3540 = vunpack.c.l.b16 %v3232
        %v3541 = vunpack.c.l.b16 %v3233
        %v3542 = vunpack.c.l.b16 %v3234
        %v3543 = vunpack.c.l.b16 %v3235
        %v3544 = vunpack.c.l.b16 %v3236
        %v3545 = vunpack.c.l.b16 %v3237
        %v3546 = vunpack.c.l.b16 %v3238
        %v3547 = vunpack.c.l.b16 %v3239
        %v3548 = vunpack.c.l.b16 %v3240
        %v3549 = vunpack.c.l.b16 %v3241
        %v3550 = vunpack.c.l.b16 %v3242
        %v3551 = vunpack.c.l.b16 %v3243
        %v3552 = vunpack.c.l.b16 %v3244
        %v3553 = vunpack.c.l.b16 %v3245
        %v3554 = vunpack.c.l.b16 %v3246
        %v3555 = vunpack.c.l.b16 %v3247
        %v3556 = vunpack.c.l.b16 %v3248
        %v3557 = vunpack.c.l.b16 %v3249
        %v3558 = vunpack.c.l.b16 %v3250
        %v3559 = vunpack.c.l.b16 %v3251
        %v3560 = vunpack.c.l.b16 %v3252
        %v3561 = vunpack.c.l.b16 %v3253
        %v3562 = vunpack.c.l.b16 %v3254
        %v3563 = vunpack.c.l.b16 %v3255
        %v3564 = vunpack.c.l.b16 %v3256
        %v3565 = vunpack.c.l.b16 %v3257
        %v3566 = vunpack.c.l.b16 %v3258
        %v3567 = vunpack.c.l.b16 %v3259
        %v3568 = vunpack.c.l.b16 %v3260
        %v3569 = vunpack.c.l.b16 %v3261
        %v3570 = vunpack.c.l.b16 %v3262
        %v3571 = vunpack.c.l.b16 %v3263
        %v3572 = vunpack.c.l.b16 %v3264
        %v3573 = vunpack.c.l.b16 %v3265
        %v3574 = vunpack.c.l.b16 %v3266
        %v3575 = vunpack.c.l.b16 %v3267
        %v3576 = vunpack.c.l.b16 %v3268
        %v3577 = vunpack.c.l.b16 %v3269
        %v3578 = vunpack.c.l.b16 %v3270
        %v3579 = vunpack.c.l.b16 %v3271
        %v3580 = vunpack.c.l.b16 %v3272
        %v3581 = vunpack.c.l.b16 %v3273
        %v3582 = vunpack.c.l.b16 %v3274
        %v3583 = vunpack.c.l.b16 %v3275
        %v3584 = vunpack.c.l.b16 %v3276
        %v3585 = vunpack.c.l.b16 %v3277
        %v3586 = vunpack.c.l.b16 %v3278
        %v3587 = vunpack.c.l.b16 %v3279
        %v3588 = vpack.c.b16 %v3461, %v3460
        %v3589 = vpack.c.b16 %v3463, %v3462
        %v3590 = vpack.c.b16 %v3465, %v3464
        %v3591 = vpack.c.b16 %v3467, %v3466
        %v3592 = vpack.c.b16 %v3469, %v3468
        %v3593 = vpack.c.b16 %v3471, %v3470
        %v3594 = vpack.c.b16 %v3473, %v3472
        %v3595 = vpack.c.b16 %v3475, %v3474
        %v3596 = vpack.c.b16 %v3477, %v3476
        %v3597 = vpack.c.b16 %v3479, %v3478
        %v3598 = vpack.c.b16 %v3481, %v3480
        %v3599 = vpack.c.b16 %v3483, %v3482
        %v3600 = vpack.c.b16 %v3485, %v3484
        %v3601 = vpack.c.b16 %v3487, %v3486
        %v3602 = vpack.c.b16 %v3489, %v3488
        %v3603 = vpack.c.b16 %v3491, %v3490
        %v3604 = vpack.c.b16 %v3493, %v3492
        %v3605 = vpack.c.b16 %v3495, %v3494
        %v3606 = vpack.c.b16 %v3497, %v3496
        %v3607 = vpack.c.b16 %v3499, %v3498
        %v3608 = vpack.c.b16 %v3501, %v3500
        %v3609 = vpack.c.b16 %v3503, %v3502
        %v3610 = vpack.c.b16 %v3505, %v3504
        %v3611 = vpack.c.b16 %v3507, %v3506
        %v3612 = vpack.c.b16 %v3509, %v3508
        %v3613 = vpack.c.b16 %v3511, %v3510
        %v3614 = vpack.c.b16 %v3513, %v3512
        %v3615 = vpack.c.b16 %v3515, %v3514
        %v3616 = vpack.c.b16 %v3517, %v3516
        %v3617 = vpack.c.b16 %v3519, %v3518
        %v3618 = vpack.c.b16 %v3521, %v3520
        %v3619 = vpack.c.b16 %v3523, %v3522
        %v3620 = vpack.c.b16 %v3525, %v3524
        %v3621 = vpack.c.b16 %v3527, %v3526
        %v3622 = vpack.c.b16 %v3529, %v3528
        %v3623 = vpack.c.b16 %v3531, %v3530
        %v3624 = vpack.c.b16 %v3533, %v3532
        %v3625 = vpack.c.b16 %v3535, %v3534
        %v3626 = vpack.c.b16 %v3537, %v3536
        %v3627 = vpack.c.b16 %v3539, %v3538
        %v3628 = vpack.c.b16 %v3541, %v3540
        %v3629 = vpack.c.b16 %v3543, %v3542
        %v3630 = vpack.c.b16 %v3545, %v3544
        %v3631 = vpack.c.b16 %v3547, %v3546
        %v3632 = vpack.c.b16 %v3549, %v3548
        %v3633 = vpack.c.b16 %v3551, %v3550
        %v3634 = vpack.c.b16 %v3553, %v3552
        %v3635 = vpack.c.b16 %v3555, %v3554
        %v3636 = vpack.c.b16 %v3557, %v3556
        %v3637 = vpack.c.b16 %v3559, %v3558
        %v3638 = vpack.c.b16 %v3561, %v3560
        %v3639 = vpack.c.b16 %v3563, %v3562
        %v3640 = vpack.c.b16 %v3565, %v3564
        %v3641 = vpack.c.b16 %v3567, %v3566
        %v3642 = vpack.c.b16 %v3569, %v3568
        %v3643 = vpack.c.b16 %v3571, %v3570
        %v3644 = vpack.c.b16 %v3573, %v3572
        %v3645 = vpack.c.b16 %v3575, %v3574
        %v3646 = vpack.c.b16 %v3577, %v3576
        %v3647 = vpack.c.b16 %v3579, %v3578
        %v3648 = vpack.c.b16 %v3581, %v3580
        %v3649 = vpack.c.b16 %v3583, %v3582
        %v3650 = vpack.c.b16 %v3585, %v3584
        %v3651 = vpack.c.b16 %v3587, %v3586
        %3716 = vmatprep.subr.bf16.mxu0 0
        %3717 = vmatpush1.bf16.msra.mxu0 %v3588
        %3718 = vmatprep.subr.bf16.mxu0 0
        %3719 = vmatpush1.bf16.msra.mxu0 %v3589
        %3720 = vmatprep.subr.bf16.mxu0 0
        %3721 = vmatpush1.bf16.msra.mxu0 %v3590
        %3722 = vmatprep.subr.bf16.mxu0 0
        %3723 = vmatpush1.bf16.msra.mxu0 %v3591
        %3724 = vmatprep.subr.bf16.mxu0 0
        %3725 = vmatpush1.bf16.msra.mxu0 %v3592
        %3726 = vmatprep.subr.bf16.mxu0 0
        %3727 = vmatpush1.bf16.msra.mxu0 %v3593
        %3728 = vmatprep.subr.bf16.mxu0 0
        %3729 = vmatpush1.bf16.msra.mxu0 %v3594
        %3730 = vmatprep.subr.bf16.mxu0 0
        %3731 = vmatpush1.bf16.msra.mxu0 %v3595
        %3732 = vmatprep.subr.bf16.mxu0 0
        %3733 = vmatpush1.bf16.msra.mxu0 %v3596
        %3734 = vmatprep.subr.bf16.mxu0 0
        %3735 = vmatpush1.bf16.msra.mxu0 %v3597
        %3736 = vmatprep.subr.bf16.mxu0 0
        %3737 = vmatpush1.bf16.msra.mxu0 %v3598
        %3738 = vmatprep.subr.bf16.mxu0 0
        %3739 = vmatpush1.bf16.msra.mxu0 %v3599
        %3740 = vmatprep.subr.bf16.mxu0 0
        %3741 = vmatpush1.bf16.msra.mxu0 %v3600
        %3742 = vmatprep.subr.bf16.mxu0 0
        %3743 = vmatpush1.bf16.msra.mxu0 %v3601
        %3744 = vmatprep.subr.bf16.mxu0 0
        %3745 = vmatpush1.bf16.msra.mxu0 %v3602
        %3746 = vmatprep.subr.bf16.mxu0 0
        %3747 = vmatpush1.bf16.msra.mxu0 %v3603
        %3748 = vmatprep.mubr.bf16.mxu0 %v2611
        %3749 = vmatmul.mubr.bf16.gmra.mrb[0].mxu0 %v2610
        %v3750 = vpop.f32.mrb[0].mxu0
        %v3751 = vadd.f32 %v3327, %v3750
        %v3752 = vpop.f32.mrb[0].mxu0
        %v3753 = vpop.f32.mrb[0].mxu0
        %v3754 = vpop.f32.mrb[0].mxu0
        %3755 = vdwg.mxu0
        %3756 = vmatprep.subr.bf16.mxu0 0
        %3757 = vmatpush1.bf16.msra.mxu0 %v3604
        %3758 = vmatprep.subr.bf16.mxu0 0
        %3759 = vmatpush1.bf16.msra.mxu0 %v3605
        %3760 = vmatprep.subr.bf16.mxu0 0
        %3761 = vmatpush1.bf16.msra.mxu0 %v3606
        %3762 = vmatprep.subr.bf16.mxu0 0
        %3763 = vmatpush1.bf16.msra.mxu0 %v3607
        %3764 = vmatprep.subr.bf16.mxu0 0
        %3765 = vmatpush1.bf16.msra.mxu0 %v3608
        %3766 = vmatprep.subr.bf16.mxu0 0
        %3767 = vmatpush1.bf16.msra.mxu0 %v3609
        %3768 = vmatprep.subr.bf16.mxu0 0
        %3769 = vmatpush1.bf16.msra.mxu0 %v3610
        %3770 = vmatprep.subr.bf16.mxu0 0
        %3771 = vmatpush1.bf16.msra.mxu0 %v3611
        %3772 = vmatprep.subr.bf16.mxu0 0
        %3773 = vmatpush1.bf16.msra.mxu0 %v3612
        %3774 = vmatprep.subr.bf16.mxu0 0
        %3775 = vmatpush1.bf16.msra.mxu0 %v3613
        %3776 = vmatprep.subr.bf16.mxu0 0
        %3777 = vmatpush1.bf16.msra.mxu0 %v3614
        %3778 = vmatprep.subr.bf16.mxu0 0
        %3779 = vmatpush1.bf16.msra.mxu0 %v3615
        %3780 = vmatprep.subr.bf16.mxu0 0
        %3781 = vmatpush1.bf16.msra.mxu0 %v3616
        %3782 = vmatprep.subr.bf16.mxu0 0
        %3783 = vmatpush1.bf16.msra.mxu0 %v3617
        %3784 = vmatprep.subr.bf16.mxu0 0
        %3785 = vmatpush1.bf16.msra.mxu0 %v3618
        %3786 = vmatprep.subr.bf16.mxu0 0
        %3787 = vmatpush1.bf16.msra.mxu0 %v3619
        %3788 = vmatprep.mubr.bf16.mxu0 %v2613
        %3789 = vmatmul.mubr.bf16.gmra.mrb[0].mxu0 %v2612
        %v3790 = vpop.f32.mrb[0].mxu0
        %v3791 = vadd.f32 %v3751, %v3790
        %v3792 = vpop.f32.mrb[0].mxu0
        %v3793 = vpop.f32.mrb[0].mxu0
        %v3794 = vpop.f32.mrb[0].mxu0
        %3795 = vdwg.mxu0
        %3796 = vmatprep.subr.bf16.mxu0 0
        %3797 = vmatpush1.bf16.msra.mxu0 %v3620
        %3798 = vmatprep.subr.bf16.mxu0 0
        %3799 = vmatpush1.bf16.msra.mxu0 %v3621
        %3800 = vmatprep.subr.bf16.mxu0 0
        %3801 = vmatpush1.bf16.msra.mxu0 %v3622
        %3802 = vmatprep.subr.bf16.mxu0 0
        %3803 = vmatpush1.bf16.msra.mxu0 %v3623
        %3804 = vmatprep.subr.bf16.mxu0 0
        %3805 = vmatpush1.bf16.msra.mxu0 %v3624
        %3806 = vmatprep.subr.bf16.mxu0 0
        %3807 = vmatpush1.bf16.msra.mxu0 %v3625
        %3808 = vmatprep.subr.bf16.mxu0 0
        %3809 = vmatpush1.bf16.msra.mxu0 %v3626
        %3810 = vmatprep.subr.bf16.mxu0 0
        %3811 = vmatpush1.bf16.msra.mxu0 %v3627
        %3812 = vmatprep.subr.bf16.mxu0 0
        %3813 = vmatpush1.bf16.msra.mxu0 %v3628
        %3814 = vmatprep.subr.bf16.mxu0 0
        %3815 = vmatpush1.bf16.msra.mxu0 %v3629
        %3816 = vmatprep.subr.bf16.mxu0 0
        %3817 = vmatpush1.bf16.msra.mxu0 %v3630
        %3818 = vmatprep.subr.bf16.mxu0 0
        %3819 = vmatpush1.bf16.msra.mxu0 %v3631
        %3820 = vmatprep.subr.bf16.mxu0 0
        %3821 = vmatpush1.bf16.msra.mxu0 %v3632
        %3822 = vmatprep.subr.bf16.mxu0 0
        %3823 = vmatpush1.bf16.msra.mxu0 %v3633
        %3824 = vmatprep.subr.bf16.mxu0 0
        %3825 = vmatpush1.bf16.msra.mxu0 %v3634
        %3826 = vmatprep.subr.bf16.mxu0 0
        %3827 = vmatpush1.bf16.msra.mxu0 %v3635
        %3828 = vmatprep.mubr.bf16.mxu0 %v2615
        %3829 = vmatmul.mubr.bf16.gmra.mrb[0].mxu0 %v2614
        %v3830 = vpop.f32.mrb[0].mxu0
        %v3831 = vadd.f32 %v3791, %v3830
        %v3832 = vpop.f32.mrb[0].mxu0
        %v3833 = vpop.f32.mrb[0].mxu0
        %v3834 = vpop.f32.mrb[0].mxu0
        %3835 = vdwg.mxu0
        %3836 = vmatprep.subr.bf16.mxu0 0
        %3837 = vmatpush1.bf16.msra.mxu0 %v3636
        %3838 = vmatprep.subr.bf16.mxu0 0
        %3839 = vmatpush1.bf16.msra.mxu0 %v3637
        %3840 = vmatprep.subr.bf16.mxu0 0
        %3841 = vmatpush1.bf16.msra.mxu0 %v3638
        %3842 = vmatprep.subr.bf16.mxu0 0
        %3843 = vmatpush1.bf16.msra.mxu0 %v3639
        %3844 = vmatprep.subr.bf16.mxu0 0
        %3845 = vmatpush1.bf16.msra.mxu0 %v3640
        %3846 = vmatprep.subr.bf16.mxu0 0
        %3847 = vmatpush1.bf16.msra.mxu0 %v3641
        %3848 = vmatprep.subr.bf16.mxu0 0
        %3849 = vmatpush1.bf16.msra.mxu0 %v3642
        %3850 = vmatprep.subr.bf16.mxu0 0
        %3851 = vmatpush1.bf16.msra.mxu0 %v3643
        %3852 = vmatprep.subr.bf16.mxu0 0
        %3853 = vmatpush1.bf16.msra.mxu0 %v3644
        %3854 = vmatprep.subr.bf16.mxu0 0
        %3855 = vmatpush1.bf16.msra.mxu0 %v3645
        %3856 = vmatprep.subr.bf16.mxu0 0
        %3857 = vmatpush1.bf16.msra.mxu0 %v3646
        %3858 = vmatprep.subr.bf16.mxu0 0
        %3859 = vmatpush1.bf16.msra.mxu0 %v3647
        %3860 = vmatprep.subr.bf16.mxu0 0
        %3861 = vmatpush1.bf16.msra.mxu0 %v3648
        %3862 = vmatprep.subr.bf16.mxu0 0
        %3863 = vmatpush1.bf16.msra.mxu0 %v3649
        %3864 = vmatprep.subr.bf16.mxu0 0
        %3865 = vmatpush1.bf16.msra.mxu0 %v3650
        %3866 = vmatprep.subr.bf16.mxu0 0
        %3867 = vmatpush1.bf16.msra.mxu0 %v3651
        %3868 = vmatprep.mubr.bf16.mxu0 %v2617
        %3869 = vmatmul.mubr.bf16.gmra.mrb[0].mxu0 %v2616
        %v3870 = vpop.f32.mrb[0].mxu0
        %v3871 = vadd.f32 %v3831, %v3870
        %v3872 = vpop.f32.mrb[0].mxu0
        %v3873 = vpop.f32.mrb[0].mxu0
        %v3874 = vpop.f32.mrb[0].mxu0
        %3875 = vdwg.mxu0
        %s3876 = scalar_lea.vmem %s6, 8
        %v3877 = vld [vmem:[%s3876] sm:$0xf]
        %v3878 = vld [vmem:[%s3876 + $0x4] sm:$0xf]
        %v3881 = vunpack.c.l.b16 %v3877
        %v3882 = vunpack.c.l.b16 %v3878
        %v3883 = vpack.c.b16 %v3882, %v3881
        %v3886 = vsel %vm3288, %v3151, 0
        %3888 = vmatprep.subr.bf16.mxu0 0
        %3889 = vmatpush1.bf16.msra.mxu0 %v3883
        %3890 = vmatprep.subr.bf16.mxu0 0
        %3891 = vmatpush1.bf16.msra.mxu0 0
        %3892 = vmatprep.subr.bf16.mxu0 0
        %3893 = vmatpush1.bf16.msra.mxu0 0
        %3894 = vmatprep.subr.bf16.mxu0 0
        %3895 = vmatpush1.bf16.msra.mxu0 0
        %3896 = vmatprep.subr.bf16.mxu0 0
        %3897 = vmatpush1.bf16.msra.mxu0 0
        %3898 = vmatprep.subr.bf16.mxu0 0
        %3899 = vmatpush1.bf16.msra.mxu0 0
        %3900 = vmatprep.subr.bf16.mxu0 0
        %3901 = vmatpush1.bf16.msra.mxu0 0
        %3902 = vmatprep.subr.bf16.mxu0 0
        %3903 = vmatpush1.bf16.msra.mxu0 0
        %3904 = vmatprep.subr.bf16.mxu0 0
        %3905 = vmatpush1.bf16.msra.mxu0 0
        %3906 = vmatprep.subr.bf16.mxu0 0
        %3907 = vmatpush1.bf16.msra.mxu0 0
        %3908 = vmatprep.subr.bf16.mxu0 0
        %3909 = vmatpush1.bf16.msra.mxu0 0
        %3910 = vmatprep.subr.bf16.mxu0 0
        %3911 = vmatpush1.bf16.msra.mxu0 0
        %3912 = vmatprep.subr.bf16.mxu0 0
        %3913 = vmatpush1.bf16.msra.mxu0 0
        %3914 = vmatprep.subr.bf16.mxu0 0
        %3915 = vmatpush1.bf16.msra.mxu0 0
        %3916 = vmatprep.subr.bf16.mxu0 0
        %3917 = vmatpush1.bf16.msra.mxu0 0
        %3918 = vmatprep.subr.bf16.mxu0 0
        %3919 = vmatpush1.bf16.msra.mxu0 0
        %3920 = vmatprep.mubr.bf16.mxu0 0
        %3921 = vmatmul.mubr.bf16.gmra.mrb[0].mxu0 %v3886
        %v3922 = vpop.f32.mrb[0].mxu0
        %v3923 = vadd.f32 0.0, %v3922
        %v3924 = vpop.f32.mrb[0].mxu0
        %v3925 = vpop.f32.mrb[0].mxu0
        %v3926 = vpop.f32.mrb[0].mxu0
        %3927 = vdwg.mxu0
        %v3928 = vadd.f32 %v3871, %v3923
        %v3929 = vld [vmem:[%s3 + $0x1] sm:$0x1]
        %v3930 = vlaneseq
        %v3931 = vshrl.u32 %v3930, 7
        %v3932 = vsub.s32 0, %v3931
        %v3933 = vrot.slane %v3929, %v3932
        %v3934 = vadd.f32 %v3928, %v3933
        %v3935 = vpack.c.bf16 %v3934, %v3934
        %v3936 = vld [vmem:[%s7] sm:$0xff]
        %v3937 = vld [vmem:[%s7 + $0x8] sm:$0xff]
        %v3938 = vld [vmem:[%s7 + $0x10] sm:$0xff]
        %v3939 = vld [vmem:[%s7 + $0x18] sm:$0xff]
        %v3940 = vld [vmem:[%s7 + $0x20] sm:$0xff]
        %v3941 = vld [vmem:[%s7 + $0x28] sm:$0xff]
        %v3942 = vld [vmem:[%s7 + $0x30] sm:$0xff]
        %v3943 = vld [vmem:[%s7 + $0x38] sm:$0xff]
        %v3944 = vld [vmem:[%s7 + $0x40] sm:$0xff]
        %v3945 = vld [vmem:[%s7 + $0x48] sm:$0xff]
        %v3946 = vld [vmem:[%s7 + $0x50] sm:$0xff]
        %v3947 = vld [vmem:[%s7 + $0x58] sm:$0xff]
        %v3948 = vld [vmem:[%s7 + $0x60] sm:$0xff]
        %v3949 = vld [vmem:[%s7 + $0x68] sm:$0xff]
        %v3950 = vld [vmem:[%s7 + $0x70] sm:$0xff]
        %v3951 = vld [vmem:[%s7 + $0x78] sm:$0xff]
        %v3952 = vld [vmem:[%s7 + $0x80] sm:$0xff]
        %v3953 = vld [vmem:[%s7 + $0x88] sm:$0xff]
        %v3954 = vld [vmem:[%s7 + $0x90] sm:$0xff]
        %v3955 = vld [vmem:[%s7 + $0x98] sm:$0xff]
        %v3956 = vld [vmem:[%s7 + $0xa0] sm:$0xff]
        %v3957 = vld [vmem:[%s7 + $0xa8] sm:$0xff]
        %v3958 = vld [vmem:[%s7 + $0xb0] sm:$0xff]
        %v3959 = vld [vmem:[%s7 + $0xb8] sm:$0xff]
        %v3960 = vld [vmem:[%s7 + $0xc0] sm:$0xff]
        %v3961 = vld [vmem:[%s7 + $0xc8] sm:$0xff]
        %v3962 = vld [vmem:[%s7 + $0xd0] sm:$0xff]
        %v3963 = vld [vmem:[%s7 + $0xd8] sm:$0xff]
        %v3964 = vld [vmem:[%s7 + $0xe0] sm:$0xff]
        %v3965 = vld [vmem:[%s7 + $0xe8] sm:$0xff]
        %v3966 = vld [vmem:[%s7 + $0xf0] sm:$0xff]
        %v3967 = vld [vmem:[%s7 + $0xf8] sm:$0xff]
        %s3968 = scalar_lea.vmem %s3, 2
        %v3969 = vld [vmem:[%s3968] ss:$4 sm:$0xf]
        %v3971 = vlaneseq
        %v3972 = vshrl.u32 %v3971, 7
        %v3973 = vsub.s32 0, %v3972
        %v3974 = vrot.slane %v3969, %v3973
        %v3975 = vlaneseq
        %v3976 = vshrl.u32 %v3975, 7
        %v3977 = vsub.s32 1, %v3976
        %v3978 = vrot.slane %v3969, %v3977
        %v3979 = vlaneseq
        %v3980 = vshrl.u32 %v3979, 7
        %v3981 = vsub.s32 2, %v3980
        %v3982 = vrot.slane %v3969, %v3981
        %v3983 = vlaneseq
        %v3984 = vshrl.u32 %v3983, 7
        %v3985 = vsub.s32 3, %v3984
        %v3986 = vrot.slane %v3969, %v3985
        %v4023 = vunpack.c.l.b16 %v3936
        %v4024 = vunpack.c.h.b16 %v3936
        %v4025 = vunpack.c.l.b16 %v3937
        %v4026 = vunpack.c.h.b16 %v3937
        %v4027 = vunpack.c.l.b16 %v3938
        %v4028 = vunpack.c.h.b16 %v3938
        %v4029 = vunpack.c.l.b16 %v3939
        %v4030 = vunpack.c.h.b16 %v3939
        %v4031 = vunpack.c.l.b16 %v3940
        %v4032 = vunpack.c.h.b16 %v3940
        %v4033 = vunpack.c.l.b16 %v3941
        %v4034 = vunpack.c.h.b16 %v3941
        %v4035 = vunpack.c.l.b16 %v3942
        %v4036 = vunpack.c.h.b16 %v3942
        %v4037 = vunpack.c.l.b16 %v3943
        %v4038 = vunpack.c.h.b16 %v3943
        %v4039 = vunpack.c.l.b16 %v3944
        %v4040 = vunpack.c.h.b16 %v3944
        %v4041 = vunpack.c.l.b16 %v3945
        %v4042 = vunpack.c.h.b16 %v3945
        %v4043 = vunpack.c.l.b16 %v3946
        %v4044 = vunpack.c.h.b16 %v3946
        %v4045 = vunpack.c.l.b16 %v3947
        %v4046 = vunpack.c.h.b16 %v3947
        %v4047 = vunpack.c.l.b16 %v3948
        %v4048 = vunpack.c.h.b16 %v3948
        %v4049 = vunpack.c.l.b16 %v3949
        %v4050 = vunpack.c.h.b16 %v3949
        %v4051 = vunpack.c.l.b16 %v3950
        %v4052 = vunpack.c.h.b16 %v3950
        %v4053 = vunpack.c.l.b16 %v3951
        %v4054 = vunpack.c.h.b16 %v3951
        %v4055 = vunpack.c.l.b16 %v3952
        %v4056 = vunpack.c.h.b16 %v3952
        %v4057 = vunpack.c.l.b16 %v3953
        %v4058 = vunpack.c.h.b16 %v3953
        %v4059 = vunpack.c.l.b16 %v3954
        %v4060 = vunpack.c.h.b16 %v3954
        %v4061 = vunpack.c.l.b16 %v3955
        %v4062 = vunpack.c.h.b16 %v3955
        %v4063 = vunpack.c.l.b16 %v3956
        %v4064 = vunpack.c.h.b16 %v3956
        %v4065 = vunpack.c.l.b16 %v3957
        %v4066 = vunpack.c.h.b16 %v3957
        %v4067 = vunpack.c.l.b16 %v3958
        %v4068 = vunpack.c.h.b16 %v3958
        %v4069 = vunpack.c.l.b16 %v3959
        %v4070 = vunpack.c.h.b16 %v3959
        %v4071 = vunpack.c.l.b16 %v3960
        %v4072 = vunpack.c.h.b16 %v3960
        %v4073 = vunpack.c.l.b16 %v3961
        %v4074 = vunpack.c.h.b16 %v3961
        %v4075 = vunpack.c.l.b16 %v3962
        %v4076 = vunpack.c.h.b16 %v3962
        %v4077 = vunpack.c.l.b16 %v3963
        %v4078 = vunpack.c.h.b16 %v3963
        %v4079 = vunpack.c.l.b16 %v3964
        %v4080 = vunpack.c.h.b16 %v3964
        %v4081 = vunpack.c.l.b16 %v3965
        %v4082 = vunpack.c.h.b16 %v3965
        %v4083 = vunpack.c.l.b16 %v3966
        %v4084 = vunpack.c.h.b16 %v3966
        %v4085 = vunpack.c.l.b16 %v3967
        %v4086 = vunpack.c.h.b16 %v3967
        %v4087 = vpack.c.b16 %v4027, %v4023
        %v4088 = vpack.c.b16 %v4028, %v4024
        %v4089 = vpack.c.b16 %v4029, %v4025
        %v4090 = vpack.c.b16 %v4030, %v4026
        %v4091 = vpack.c.b16 %v4035, %v4031
        %v4092 = vpack.c.b16 %v4036, %v4032
        %v4093 = vpack.c.b16 %v4037, %v4033
        %v4094 = vpack.c.b16 %v4038, %v4034
        %v4095 = vpack.c.b16 %v4043, %v4039
        %v4096 = vpack.c.b16 %v4044, %v4040
        %v4097 = vpack.c.b16 %v4045, %v4041
        %v4098 = vpack.c.b16 %v4046, %v4042
        %v4099 = vpack.c.b16 %v4051, %v4047
        %v4100 = vpack.c.b16 %v4052, %v4048
        %v4101 = vpack.c.b16 %v4053, %v4049
        %v4102 = vpack.c.b16 %v4054, %v4050
        %v4103 = vpack.c.b16 %v4059, %v4055
        %v4104 = vpack.c.b16 %v4060, %v4056
        %v4105 = vpack.c.b16 %v4061, %v4057
        %v4106 = vpack.c.b16 %v4062, %v4058
        %v4107 = vpack.c.b16 %v4067, %v4063
        %v4108 = vpack.c.b16 %v4068, %v4064
        %v4109 = vpack.c.b16 %v4069, %v4065
        %v4110 = vpack.c.b16 %v4070, %v4066
        %v4111 = vpack.c.b16 %v4075, %v4071
        %v4112 = vpack.c.b16 %v4076, %v4072
        %v4113 = vpack.c.b16 %v4077, %v4073
        %v4114 = vpack.c.b16 %v4078, %v4074
        %v4115 = vpack.c.b16 %v4083, %v4079
        %v4116 = vpack.c.b16 %v4084, %v4080
        %v4117 = vpack.c.b16 %v4085, %v4081
        %v4118 = vpack.c.b16 %v4086, %v4082
        %4151 = vmatprep.subr.bf16.mxu0 %v4088
        %4152 = vmatpush1.bf16.msra.mxu0 %v4087
        %4153 = vmatprep.subr.bf16.mxu0 %v4092
        %4154 = vmatpush1.bf16.msra.mxu0 %v4091
        %4155 = vmatprep.subr.bf16.mxu0 %v4096
        %4156 = vmatpush1.bf16.msra.mxu0 %v4095
        %4157 = vmatprep.subr.bf16.mxu0 %v4100
        %4158 = vmatpush1.bf16.msra.mxu0 %v4099
        %4159 = vmatprep.subr.bf16.mxu0 %v4104
        %4160 = vmatpush1.bf16.msra.mxu0 %v4103
        %4161 = vmatprep.subr.bf16.mxu0 %v4108
        %4162 = vmatpush1.bf16.msra.mxu0 %v4107
        %4163 = vmatprep.subr.bf16.mxu0 %v4112
        %4164 = vmatpush1.bf16.msra.mxu0 %v4111
        %4165 = vmatprep.subr.bf16.mxu0 %v4116
        %4166 = vmatpush1.bf16.msra.mxu0 %v4115
        %4167 = vmatprep.subr.bf16.mxu0 0
        %4168 = vmatpush1.bf16.msra.mxu0 0
        %4169 = vmatprep.subr.bf16.mxu0 0
        %4170 = vmatpush1.bf16.msra.mxu0 0
        %4171 = vmatprep.subr.bf16.mxu0 0
        %4172 = vmatpush1.bf16.msra.mxu0 0
        %4173 = vmatprep.subr.bf16.mxu0 0
        %4174 = vmatpush1.bf16.msra.mxu0 0
        %4175 = vmatprep.subr.bf16.mxu0 0
        %4176 = vmatpush1.bf16.msra.mxu0 0
        %4177 = vmatprep.subr.bf16.mxu0 0
        %4178 = vmatpush1.bf16.msra.mxu0 0
        %4179 = vmatprep.subr.bf16.mxu0 0
        %4180 = vmatpush1.bf16.msra.mxu0 0
        %4181 = vmatprep.subr.bf16.mxu0 0
        %4182 = vmatpush1.bf16.msra.mxu0 0
        %4183 = vmatprep.mubr.bf16.mxu0 0
        %4184 = vmatmul.mubr.bf16.gmra.mrb[0].mxu0 %v3935
        %v4185 = vpop.f32.mrb[0].mxu0
        %v4186 = vadd.f32 %v3974, %v4185
        %v4187 = vpop.f32.mrb[0].mxu0
        %v4188 = vadd.f32 %v3978, %v4187
        %v4189 = vpop.f32.mrb[0].mxu0
        %v4190 = vpop.f32.mrb[0].mxu0
        %4191 = vdwg.mxu0
        %4192 = vmatprep.subr.bf16.mxu0 %v4090
        %4193 = vmatpush1.bf16.msra.mxu0 %v4089
        %4194 = vmatprep.subr.bf16.mxu0 %v4094
        %4195 = vmatpush1.bf16.msra.mxu0 %v4093
        %4196 = vmatprep.subr.bf16.mxu0 %v4098
        %4197 = vmatpush1.bf16.msra.mxu0 %v4097
        %4198 = vmatprep.subr.bf16.mxu0 %v4102
        %4199 = vmatpush1.bf16.msra.mxu0 %v4101
        %4200 = vmatprep.subr.bf16.mxu0 %v4106
        %4201 = vmatpush1.bf16.msra.mxu0 %v4105
        %4202 = vmatprep.subr.bf16.mxu0 %v4110
        %4203 = vmatpush1.bf16.msra.mxu0 %v4109
        %4204 = vmatprep.subr.bf16.mxu0 %v4114
        %4205 = vmatpush1.bf16.msra.mxu0 %v4113
        %4206 = vmatprep.subr.bf16.mxu0 %v4118
        %4207 = vmatpush1.bf16.msra.mxu0 %v4117
        %4208 = vmatprep.subr.bf16.mxu0 0
        %4209 = vmatpush1.bf16.msra.mxu0 0
        %4210 = vmatprep.subr.bf16.mxu0 0
        %4211 = vmatpush1.bf16.msra.mxu0 0
        %4212 = vmatprep.subr.bf16.mxu0 0
        %4213 = vmatpush1.bf16.msra.mxu0 0
        %4214 = vmatprep.subr.bf16.mxu0 0
        %4215 = vmatpush1.bf16.msra.mxu0 0
        %4216 = vmatprep.subr.bf16.mxu0 0
        %4217 = vmatpush1.bf16.msra.mxu0 0
        %4218 = vmatprep.subr.bf16.mxu0 0
        %4219 = vmatpush1.bf16.msra.mxu0 0
        %4220 = vmatprep.subr.bf16.mxu0 0
        %4221 = vmatpush1.bf16.msra.mxu0 0
        %4222 = vmatprep.subr.bf16.mxu0 0
        %4223 = vmatpush1.bf16.msra.mxu0 0
        %4224 = vmatprep.mubr.bf16.mxu0 0
        %4225 = vmatmul.mubr.bf16.gmra.mrb[0].mxu0 %v3935
        %v4226 = vpop.f32.mrb[0].mxu0
        %v4227 = vadd.f32 %v3982, %v4226
        %v4228 = vpop.f32.mrb[0].mxu0
        %v4229 = vadd.f32 %v3986, %v4228
        %v4230 = vpop.f32.mrb[0].mxu0
        %v4231 = vpop.f32.mrb[0].mxu0
        %4232 = vdwg.mxu0
        %vm4233 = vcmp.ge.f32.partialorder %v4186, 0.0
        %vm4234 = vcmp.ge.f32.partialorder %v4188, 0.0
        %vm4235 = vcmp.ge.f32.partialorder %v4227, 0.0
        %vm4236 = vcmp.ge.f32.partialorder %v4229, 0.0
        %v4237 = vmul.f32 %v4186, 0.01
        %v4238 = vmul.f32 %v4188, 0.01
        %v4239 = vmul.f32 %v4227, 0.01
        %v4240 = vmul.f32 %v4229, 0.01
        %v4241 = vsel %vm4233, %v4186, %v4237
        %v4242 = vsel %vm4234, %v4188, %v4238
        %v4243 = vsel %vm4235, %v4227, %v4239
        %v4244 = vsel %vm4236, %v4229, %v4240
        %v4245 = vpack.c.bf16 %v4241, %v4241
        %v4246 = vpack.c.bf16 %v4242, %v4242
        %v4247 = vpack.c.bf16 %v4243, %v4243
        %v4248 = vpack.c.bf16 %v4244, %v4244
        %v4249 = vld [vmem:[%s8] sm:$0xff]
        %v4250 = vld [vmem:[%s8 + $0x8] sm:$0xff]
        %v4251 = vld [vmem:[%s8 + $0x10] sm:$0xff]
        %v4252 = vld [vmem:[%s8 + $0x18] sm:$0xff]
        %v4253 = vld [vmem:[%s8 + $0x20] sm:$0xff]
        %v4254 = vld [vmem:[%s8 + $0x28] sm:$0xff]
        %v4255 = vld [vmem:[%s8 + $0x30] sm:$0xff]
        %v4256 = vld [vmem:[%s8 + $0x38] sm:$0xff]
        %v4257 = vld [vmem:[%s8 + $0x40] sm:$0xff]
        %v4258 = vld [vmem:[%s8 + $0x48] sm:$0xff]
        %v4259 = vld [vmem:[%s8 + $0x50] sm:$0xff]
        %v4260 = vld [vmem:[%s8 + $0x58] sm:$0xff]
        %v4261 = vld [vmem:[%s8 + $0x60] sm:$0xff]
        %v4262 = vld [vmem:[%s8 + $0x68] sm:$0xff]
        %v4263 = vld [vmem:[%s8 + $0x70] sm:$0xff]
        %v4264 = vld [vmem:[%s8 + $0x78] sm:$0xff]
        %v4265 = vld [vmem:[%s8 + $0x80] sm:$0xff]
        %v4266 = vld [vmem:[%s8 + $0x88] sm:$0xff]
        %v4267 = vld [vmem:[%s8 + $0x90] sm:$0xff]
        %v4268 = vld [vmem:[%s8 + $0x98] sm:$0xff]
        %v4269 = vld [vmem:[%s8 + $0xa0] sm:$0xff]
        %v4270 = vld [vmem:[%s8 + $0xa8] sm:$0xff]
        %v4271 = vld [vmem:[%s8 + $0xb0] sm:$0xff]
        %v4272 = vld [vmem:[%s8 + $0xb8] sm:$0xff]
        %v4273 = vld [vmem:[%s8 + $0xc0] sm:$0xff]
        %v4274 = vld [vmem:[%s8 + $0xc8] sm:$0xff]
        %v4275 = vld [vmem:[%s8 + $0xd0] sm:$0xff]
        %v4276 = vld [vmem:[%s8 + $0xd8] sm:$0xff]
        %v4277 = vld [vmem:[%s8 + $0xe0] sm:$0xff]
        %v4278 = vld [vmem:[%s8 + $0xe8] sm:$0xff]
        %v4279 = vld [vmem:[%s8 + $0xf0] sm:$0xff]
        %v4280 = vld [vmem:[%s8 + $0xf8] sm:$0xff]
        %v4281 = vld [vmem:[%s8 + $0x100] sm:$0xff]
        %v4282 = vld [vmem:[%s8 + $0x108] sm:$0xff]
        %v4283 = vld [vmem:[%s8 + $0x110] sm:$0xff]
        %v4284 = vld [vmem:[%s8 + $0x118] sm:$0xff]
        %v4285 = vld [vmem:[%s8 + $0x120] sm:$0xff]
        %v4286 = vld [vmem:[%s8 + $0x128] sm:$0xff]
        %v4287 = vld [vmem:[%s8 + $0x130] sm:$0xff]
        %v4288 = vld [vmem:[%s8 + $0x138] sm:$0xff]
        %v4289 = vld [vmem:[%s8 + $0x140] sm:$0xff]
        %v4290 = vld [vmem:[%s8 + $0x148] sm:$0xff]
        %v4291 = vld [vmem:[%s8 + $0x150] sm:$0xff]
        %v4292 = vld [vmem:[%s8 + $0x158] sm:$0xff]
        %v4293 = vld [vmem:[%s8 + $0x160] sm:$0xff]
        %v4294 = vld [vmem:[%s8 + $0x168] sm:$0xff]
        %v4295 = vld [vmem:[%s8 + $0x170] sm:$0xff]
        %v4296 = vld [vmem:[%s8 + $0x178] sm:$0xff]
        %v4297 = vld [vmem:[%s8 + $0x180] sm:$0xff]
        %v4298 = vld [vmem:[%s8 + $0x188] sm:$0xff]
        %v4299 = vld [vmem:[%s8 + $0x190] sm:$0xff]
        %v4300 = vld [vmem:[%s8 + $0x198] sm:$0xff]
        %v4301 = vld [vmem:[%s8 + $0x1a0] sm:$0xff]
        %v4302 = vld [vmem:[%s8 + $0x1a8] sm:$0xff]
        %v4303 = vld [vmem:[%s8 + $0x1b0] sm:$0xff]
        %v4304 = vld [vmem:[%s8 + $0x1b8] sm:$0xff]
        %v4305 = vld [vmem:[%s8 + $0x1c0] sm:$0xff]
        %v4306 = vld [vmem:[%s8 + $0x1c8] sm:$0xff]
        %v4307 = vld [vmem:[%s8 + $0x1d0] sm:$0xff]
        %v4308 = vld [vmem:[%s8 + $0x1d8] sm:$0xff]
        %v4309 = vld [vmem:[%s8 + $0x1e0] sm:$0xff]
        %v4310 = vld [vmem:[%s8 + $0x1e8] sm:$0xff]
        %v4311 = vld [vmem:[%s8 + $0x1f0] sm:$0xff]
        %v4312 = vld [vmem:[%s8 + $0x1f8] sm:$0xff]
        %v4313 = vld [vmem:[%s8 + $0x200] sm:$0xff]
        %v4314 = vld [vmem:[%s8 + $0x208] sm:$0xff]
        %v4315 = vld [vmem:[%s8 + $0x210] sm:$0xff]
        %v4316 = vld [vmem:[%s8 + $0x218] sm:$0xff]
        %v4317 = vld [vmem:[%s8 + $0x220] sm:$0xff]
        %v4318 = vld [vmem:[%s8 + $0x228] sm:$0xff]
        %v4319 = vld [vmem:[%s8 + $0x230] sm:$0xff]
        %v4320 = vld [vmem:[%s8 + $0x238] sm:$0xff]
        %v4321 = vld [vmem:[%s8 + $0x240] sm:$0xff]
        %v4322 = vld [vmem:[%s8 + $0x248] sm:$0xff]
        %v4323 = vld [vmem:[%s8 + $0x250] sm:$0xff]
        %v4324 = vld [vmem:[%s8 + $0x258] sm:$0xff]
        %v4325 = vld [vmem:[%s8 + $0x260] sm:$0xff]
        %v4326 = vld [vmem:[%s8 + $0x268] sm:$0xff]
        %v4327 = vld [vmem:[%s8 + $0x270] sm:$0xff]
        %v4328 = vld [vmem:[%s8 + $0x278] sm:$0xff]
        %v4329 = vld [vmem:[%s8 + $0x280] sm:$0xff]
        %v4330 = vld [vmem:[%s8 + $0x288] sm:$0xff]
        %v4331 = vld [vmem:[%s8 + $0x290] sm:$0xff]
        %v4332 = vld [vmem:[%s8 + $0x298] sm:$0xff]
        %v4333 = vld [vmem:[%s8 + $0x2a0] sm:$0xff]
        %v4334 = vld [vmem:[%s8 + $0x2a8] sm:$0xff]
        %v4335 = vld [vmem:[%s8 + $0x2b0] sm:$0xff]
        %v4336 = vld [vmem:[%s8 + $0x2b8] sm:$0xff]
        %v4337 = vld [vmem:[%s8 + $0x2c0] sm:$0xff]
        %v4338 = vld [vmem:[%s8 + $0x2c8] sm:$0xff]
        %v4339 = vld [vmem:[%s8 + $0x2d0] sm:$0xff]
        %v4340 = vld [vmem:[%s8 + $0x2d8] sm:$0xff]
        %v4341 = vld [vmem:[%s8 + $0x2e0] sm:$0xff]
        %v4342 = vld [vmem:[%s8 + $0x2e8] sm:$0xff]
        %v4343 = vld [vmem:[%s8 + $0x2f0] sm:$0xff]
        %v4344 = vld [vmem:[%s8 + $0x2f8] sm:$0xff]
        %v4345 = vld [vmem:[%s8 + $0x300] sm:$0xff]
        %v4346 = vld [vmem:[%s8 + $0x308] sm:$0xff]
        %v4347 = vld [vmem:[%s8 + $0x310] sm:$0xff]
        %v4348 = vld [vmem:[%s8 + $0x318] sm:$0xff]
        %v4349 = vld [vmem:[%s8 + $0x320] sm:$0xff]
        %v4350 = vld [vmem:[%s8 + $0x328] sm:$0xff]
        %v4351 = vld [vmem:[%s8 + $0x330] sm:$0xff]
        %v4352 = vld [vmem:[%s8 + $0x338] sm:$0xff]
        %v4353 = vld [vmem:[%s8 + $0x340] sm:$0xff]
        %v4354 = vld [vmem:[%s8 + $0x348] sm:$0xff]
        %v4355 = vld [vmem:[%s8 + $0x350] sm:$0xff]
        %v4356 = vld [vmem:[%s8 + $0x358] sm:$0xff]
        %v4357 = vld [vmem:[%s8 + $0x360] sm:$0xff]
        %v4358 = vld [vmem:[%s8 + $0x368] sm:$0xff]
        %v4359 = vld [vmem:[%s8 + $0x370] sm:$0xff]
        %v4360 = vld [vmem:[%s8 + $0x378] sm:$0xff]
        %v4361 = vld [vmem:[%s8 + $0x380] sm:$0xff]
        %v4362 = vld [vmem:[%s8 + $0x388] sm:$0xff]
        %v4363 = vld [vmem:[%s8 + $0x390] sm:$0xff]
        %v4364 = vld [vmem:[%s8 + $0x398] sm:$0xff]
        %v4365 = vld [vmem:[%s8 + $0x3a0] sm:$0xff]
        %v4366 = vld [vmem:[%s8 + $0x3a8] sm:$0xff]
        %v4367 = vld [vmem:[%s8 + $0x3b0] sm:$0xff]
        %v4368 = vld [vmem:[%s8 + $0x3b8] sm:$0xff]
        %v4369 = vld [vmem:[%s8 + $0x3c0] sm:$0xff]
        %v4370 = vld [vmem:[%s8 + $0x3c8] sm:$0xff]
        %v4371 = vld [vmem:[%s8 + $0x3d0] sm:$0xff]
        %v4372 = vld [vmem:[%s8 + $0x3d8] sm:$0xff]
        %v4373 = vld [vmem:[%s8 + $0x3e0] sm:$0xff]
        %v4374 = vld [vmem:[%s8 + $0x3e8] sm:$0xff]
        %v4375 = vld [vmem:[%s8 + $0x3f0] sm:$0xff]
        %v4376 = vld [vmem:[%s8 + $0x3f8] sm:$0xff]
        %s4377 = scalar_lea.vmem %s3, 3
        %v4378 = vld [vmem:[%s4377] ss:$4 sm:$0xf]
        %v4380 = vlaneseq
        %v4381 = vshrl.u32 %v4380, 7
        %v4382 = vsub.s32 0, %v4381
        %v4383 = vrot.slane %v4378, %v4382
        %v4384 = vlaneseq
        %v4385 = vshrl.u32 %v4384, 7
        %v4386 = vsub.s32 1, %v4385
        %v4387 = vrot.slane %v4378, %v4386
        %v4388 = vlaneseq
        %v4389 = vshrl.u32 %v4388, 7
        %v4390 = vsub.s32 2, %v4389
        %v4391 = vrot.slane %v4378, %v4390
        %v4392 = vlaneseq
        %v4393 = vshrl.u32 %v4392, 7
        %v4394 = vsub.s32 3, %v4393
        %v4395 = vrot.slane %v4378, %v4394
        %v4528 = vunpack.c.l.b16 %v4249
        %v4529 = vunpack.c.h.b16 %v4249
        %v4530 = vunpack.c.l.b16 %v4250
        %v4531 = vunpack.c.h.b16 %v4250
        %v4532 = vunpack.c.l.b16 %v4251
        %v4533 = vunpack.c.h.b16 %v4251
        %v4534 = vunpack.c.l.b16 %v4252
        %v4535 = vunpack.c.h.b16 %v4252
        %v4536 = vunpack.c.l.b16 %v4253
        %v4537 = vunpack.c.h.b16 %v4253
        %v4538 = vunpack.c.l.b16 %v4254
        %v4539 = vunpack.c.h.b16 %v4254
        %v4540 = vunpack.c.l.b16 %v4255
        %v4541 = vunpack.c.h.b16 %v4255
        %v4542 = vunpack.c.l.b16 %v4256
        %v4543 = vunpack.c.h.b16 %v4256
        %v4544 = vunpack.c.l.b16 %v4257
        %v4545 = vunpack.c.h.b16 %v4257
        %v4546 = vunpack.c.l.b16 %v4258
        %v4547 = vunpack.c.h.b16 %v4258
        %v4548 = vunpack.c.l.b16 %v4259
        %v4549 = vunpack.c.h.b16 %v4259
        %v4550 = vunpack.c.l.b16 %v4260
        %v4551 = vunpack.c.h.b16 %v4260
        %v4552 = vunpack.c.l.b16 %v4261
        %v4553 = vunpack.c.h.b16 %v4261
        %v4554 = vunpack.c.l.b16 %v4262
        %v4555 = vunpack.c.h.b16 %v4262
        %v4556 = vunpack.c.l.b16 %v4263
        %v4557 = vunpack.c.h.b16 %v4263
        %v4558 = vunpack.c.l.b16 %v4264
        %v4559 = vunpack.c.h.b16 %v4264
        %v4560 = vunpack.c.l.b16 %v4265
        %v4561 = vunpack.c.h.b16 %v4265
        %v4562 = vunpack.c.l.b16 %v4266
        %v4563 = vunpack.c.h.b16 %v4266
        %v4564 = vunpack.c.l.b16 %v4267
        %v4565 = vunpack.c.h.b16 %v4267
        %v4566 = vunpack.c.l.b16 %v4268
        %v4567 = vunpack.c.h.b16 %v4268
        %v4568 = vunpack.c.l.b16 %v4269
        %v4569 = vunpack.c.h.b16 %v4269
        %v4570 = vunpack.c.l.b16 %v4270
        %v4571 = vunpack.c.h.b16 %v4270
        %v4572 = vunpack.c.l.b16 %v4271
        %v4573 = vunpack.c.h.b16 %v4271
        %v4574 = vunpack.c.l.b16 %v4272
        %v4575 = vunpack.c.h.b16 %v4272
        %v4576 = vunpack.c.l.b16 %v4273
        %v4577 = vunpack.c.h.b16 %v4273
        %v4578 = vunpack.c.l.b16 %v4274
        %v4579 = vunpack.c.h.b16 %v4274
        %v4580 = vunpack.c.l.b16 %v4275
        %v4581 = vunpack.c.h.b16 %v4275
        %v4582 = vunpack.c.l.b16 %v4276
        %v4583 = vunpack.c.h.b16 %v4276
        %v4584 = vunpack.c.l.b16 %v4277
        %v4585 = vunpack.c.h.b16 %v4277
        %v4586 = vunpack.c.l.b16 %v4278
        %v4587 = vunpack.c.h.b16 %v4278
        %v4588 = vunpack.c.l.b16 %v4279
        %v4589 = vunpack.c.h.b16 %v4279
        %v4590 = vunpack.c.l.b16 %v4280
        %v4591 = vunpack.c.h.b16 %v4280
        %v4592 = vunpack.c.l.b16 %v4281
        %v4593 = vunpack.c.h.b16 %v4281
        %v4594 = vunpack.c.l.b16 %v4282
        %v4595 = vunpack.c.h.b16 %v4282
        %v4596 = vunpack.c.l.b16 %v4283
        %v4597 = vunpack.c.h.b16 %v4283
        %v4598 = vunpack.c.l.b16 %v4284
        %v4599 = vunpack.c.h.b16 %v4284
        %v4600 = vunpack.c.l.b16 %v4285
        %v4601 = vunpack.c.h.b16 %v4285
        %v4602 = vunpack.c.l.b16 %v4286
        %v4603 = vunpack.c.h.b16 %v4286
        %v4604 = vunpack.c.l.b16 %v4287
        %v4605 = vunpack.c.h.b16 %v4287
        %v4606 = vunpack.c.l.b16 %v4288
        %v4607 = vunpack.c.h.b16 %v4288
        %v4608 = vunpack.c.l.b16 %v4289
        %v4609 = vunpack.c.h.b16 %v4289
        %v4610 = vunpack.c.l.b16 %v4290
        %v4611 = vunpack.c.h.b16 %v4290
        %v4612 = vunpack.c.l.b16 %v4291
        %v4613 = vunpack.c.h.b16 %v4291
        %v4614 = vunpack.c.l.b16 %v4292
        %v4615 = vunpack.c.h.b16 %v4292
        %v4616 = vunpack.c.l.b16 %v4293
        %v4617 = vunpack.c.h.b16 %v4293
        %v4618 = vunpack.c.l.b16 %v4294
        %v4619 = vunpack.c.h.b16 %v4294
        %v4620 = vunpack.c.l.b16 %v4295
        %v4621 = vunpack.c.h.b16 %v4295
        %v4622 = vunpack.c.l.b16 %v4296
        %v4623 = vunpack.c.h.b16 %v4296
        %v4624 = vunpack.c.l.b16 %v4297
        %v4625 = vunpack.c.h.b16 %v4297
        %v4626 = vunpack.c.l.b16 %v4298
        %v4627 = vunpack.c.h.b16 %v4298
        %v4628 = vunpack.c.l.b16 %v4299
        %v4629 = vunpack.c.h.b16 %v4299
        %v4630 = vunpack.c.l.b16 %v4300
        %v4631 = vunpack.c.h.b16 %v4300
        %v4632 = vunpack.c.l.b16 %v4301
        %v4633 = vunpack.c.h.b16 %v4301
        %v4634 = vunpack.c.l.b16 %v4302
        %v4635 = vunpack.c.h.b16 %v4302
        %v4636 = vunpack.c.l.b16 %v4303
        %v4637 = vunpack.c.h.b16 %v4303
        %v4638 = vunpack.c.l.b16 %v4304
        %v4639 = vunpack.c.h.b16 %v4304
        %v4640 = vunpack.c.l.b16 %v4305
        %v4641 = vunpack.c.h.b16 %v4305
        %v4642 = vunpack.c.l.b16 %v4306
        %v4643 = vunpack.c.h.b16 %v4306
        %v4644 = vunpack.c.l.b16 %v4307
        %v4645 = vunpack.c.h.b16 %v4307
        %v4646 = vunpack.c.l.b16 %v4308
        %v4647 = vunpack.c.h.b16 %v4308
        %v4648 = vunpack.c.l.b16 %v4309
        %v4649 = vunpack.c.h.b16 %v4309
        %v4650 = vunpack.c.l.b16 %v4310
        %v4651 = vunpack.c.h.b16 %v4310
        %v4652 = vunpack.c.l.b16 %v4311
        %v4653 = vunpack.c.h.b16 %v4311
        %v4654 = vunpack.c.l.b16 %v4312
        %v4655 = vunpack.c.h.b16 %v4312
        %v4656 = vunpack.c.l.b16 %v4313
        %v4657 = vunpack.c.h.b16 %v4313
        %v4658 = vunpack.c.l.b16 %v4314
        %v4659 = vunpack.c.h.b16 %v4314
        %v4660 = vunpack.c.l.b16 %v4315
        %v4661 = vunpack.c.h.b16 %v4315
        %v4662 = vunpack.c.l.b16 %v4316
        %v4663 = vunpack.c.h.b16 %v4316
        %v4664 = vunpack.c.l.b16 %v4317
        %v4665 = vunpack.c.h.b16 %v4317
        %v4666 = vunpack.c.l.b16 %v4318
        %v4667 = vunpack.c.h.b16 %v4318
        %v4668 = vunpack.c.l.b16 %v4319
        %v4669 = vunpack.c.h.b16 %v4319
        %v4670 = vunpack.c.l.b16 %v4320
        %v4671 = vunpack.c.h.b16 %v4320
        %v4672 = vunpack.c.l.b16 %v4321
        %v4673 = vunpack.c.h.b16 %v4321
        %v4674 = vunpack.c.l.b16 %v4322
        %v4675 = vunpack.c.h.b16 %v4322
        %v4676 = vunpack.c.l.b16 %v4323
        %v4677 = vunpack.c.h.b16 %v4323
        %v4678 = vunpack.c.l.b16 %v4324
        %v4679 = vunpack.c.h.b16 %v4324
        %v4680 = vunpack.c.l.b16 %v4325
        %v4681 = vunpack.c.h.b16 %v4325
        %v4682 = vunpack.c.l.b16 %v4326
        %v4683 = vunpack.c.h.b16 %v4326
        %v4684 = vunpack.c.l.b16 %v4327
        %v4685 = vunpack.c.h.b16 %v4327
        %v4686 = vunpack.c.l.b16 %v4328
        %v4687 = vunpack.c.h.b16 %v4328
        %v4688 = vunpack.c.l.b16 %v4329
        %v4689 = vunpack.c.h.b16 %v4329
        %v4690 = vunpack.c.l.b16 %v4330
        %v4691 = vunpack.c.h.b16 %v4330
        %v4692 = vunpack.c.l.b16 %v4331
        %v4693 = vunpack.c.h.b16 %v4331
        %v4694 = vunpack.c.l.b16 %v4332
        %v4695 = vunpack.c.h.b16 %v4332
        %v4696 = vunpack.c.l.b16 %v4333
        %v4697 = vunpack.c.h.b16 %v4333
        %v4698 = vunpack.c.l.b16 %v4334
        %v4699 = vunpack.c.h.b16 %v4334
        %v4700 = vunpack.c.l.b16 %v4335
        %v4701 = vunpack.c.h.b16 %v4335
        %v4702 = vunpack.c.l.b16 %v4336
        %v4703 = vunpack.c.h.b16 %v4336
        %v4704 = vunpack.c.l.b16 %v4337
        %v4705 = vunpack.c.h.b16 %v4337
        %v4706 = vunpack.c.l.b16 %v4338
        %v4707 = vunpack.c.h.b16 %v4338
        %v4708 = vunpack.c.l.b16 %v4339
        %v4709 = vunpack.c.h.b16 %v4339
        %v4710 = vunpack.c.l.b16 %v4340
        %v4711 = vunpack.c.h.b16 %v4340
        %v4712 = vunpack.c.l.b16 %v4341
        %v4713 = vunpack.c.h.b16 %v4341
        %v4714 = vunpack.c.l.b16 %v4342
        %v4715 = vunpack.c.h.b16 %v4342
        %v4716 = vunpack.c.l.b16 %v4343
        %v4717 = vunpack.c.h.b16 %v4343
        %v4718 = vunpack.c.l.b16 %v4344
        %v4719 = vunpack.c.h.b16 %v4344
        %v4720 = vunpack.c.l.b16 %v4345
        %v4721 = vunpack.c.h.b16 %v4345
        %v4722 = vunpack.c.l.b16 %v4346
        %v4723 = vunpack.c.h.b16 %v4346
        %v4724 = vunpack.c.l.b16 %v4347
        %v4725 = vunpack.c.h.b16 %v4347
        %v4726 = vunpack.c.l.b16 %v4348
        %v4727 = vunpack.c.h.b16 %v4348
        %v4728 = vunpack.c.l.b16 %v4349
        %v4729 = vunpack.c.h.b16 %v4349
        %v4730 = vunpack.c.l.b16 %v4350
        %v4731 = vunpack.c.h.b16 %v4350
        %v4732 = vunpack.c.l.b16 %v4351
        %v4733 = vunpack.c.h.b16 %v4351
        %v4734 = vunpack.c.l.b16 %v4352
        %v4735 = vunpack.c.h.b16 %v4352
        %v4736 = vunpack.c.l.b16 %v4353
        %v4737 = vunpack.c.h.b16 %v4353
        %v4738 = vunpack.c.l.b16 %v4354
        %v4739 = vunpack.c.h.b16 %v4354
        %v4740 = vunpack.c.l.b16 %v4355
        %v4741 = vunpack.c.h.b16 %v4355
        %v4742 = vunpack.c.l.b16 %v4356
        %v4743 = vunpack.c.h.b16 %v4356
        %v4744 = vunpack.c.l.b16 %v4357
        %v4745 = vunpack.c.h.b16 %v4357
        %v4746 = vunpack.c.l.b16 %v4358
        %v4747 = vunpack.c.h.b16 %v4358
        %v4748 = vunpack.c.l.b16 %v4359
        %v4749 = vunpack.c.h.b16 %v4359
        %v4750 = vunpack.c.l.b16 %v4360
        %v4751 = vunpack.c.h.b16 %v4360
        %v4752 = vunpack.c.l.b16 %v4361
        %v4753 = vunpack.c.h.b16 %v4361
        %v4754 = vunpack.c.l.b16 %v4362
        %v4755 = vunpack.c.h.b16 %v4362
        %v4756 = vunpack.c.l.b16 %v4363
        %v4757 = vunpack.c.h.b16 %v4363
        %v4758 = vunpack.c.l.b16 %v4364
        %v4759 = vunpack.c.h.b16 %v4364
        %v4760 = vunpack.c.l.b16 %v4365
        %v4761 = vunpack.c.h.b16 %v4365
        %v4762 = vunpack.c.l.b16 %v4366
        %v4763 = vunpack.c.h.b16 %v4366
        %v4764 = vunpack.c.l.b16 %v4367
        %v4765 = vunpack.c.h.b16 %v4367
        %v4766 = vunpack.c.l.b16 %v4368
        %v4767 = vunpack.c.h.b16 %v4368
        %v4768 = vunpack.c.l.b16 %v4369
        %v4769 = vunpack.c.h.b16 %v4369
        %v4770 = vunpack.c.l.b16 %v4370
        %v4771 = vunpack.c.h.b16 %v4370
        %v4772 = vunpack.c.l.b16 %v4371
        %v4773 = vunpack.c.h.b16 %v4371
        %v4774 = vunpack.c.l.b16 %v4372
        %v4775 = vunpack.c.h.b16 %v4372
        %v4776 = vunpack.c.l.b16 %v4373
        %v4777 = vunpack.c.h.b16 %v4373
        %v4778 = vunpack.c.l.b16 %v4374
        %v4779 = vunpack.c.h.b16 %v4374
        %v4780 = vunpack.c.l.b16 %v4375
        %v4781 = vunpack.c.h.b16 %v4375
        %v4782 = vunpack.c.l.b16 %v4376
        %v4783 = vunpack.c.h.b16 %v4376
        %v4784 = vpack.c.b16 %v4532, %v4528
        %v4785 = vpack.c.b16 %v4533, %v4529
        %v4786 = vpack.c.b16 %v4534, %v4530
        %v4787 = vpack.c.b16 %v4535, %v4531
        %v4788 = vpack.c.b16 %v4540, %v4536
        %v4789 = vpack.c.b16 %v4541, %v4537
        %v4790 = vpack.c.b16 %v4542, %v4538
        %v4791 = vpack.c.b16 %v4543, %v4539
        %v4792 = vpack.c.b16 %v4548, %v4544
        %v4793 = vpack.c.b16 %v4549, %v4545
        %v4794 = vpack.c.b16 %v4550, %v4546
        %v4795 = vpack.c.b16 %v4551, %v4547
        %v4796 = vpack.c.b16 %v4556, %v4552
        %v4797 = vpack.c.b16 %v4557, %v4553
        %v4798 = vpack.c.b16 %v4558, %v4554
        %v4799 = vpack.c.b16 %v4559, %v4555
        %v4800 = vpack.c.b16 %v4564, %v4560
        %v4801 = vpack.c.b16 %v4565, %v4561
        %v4802 = vpack.c.b16 %v4566, %v4562
        %v4803 = vpack.c.b16 %v4567, %v4563
        %v4804 = vpack.c.b16 %v4572, %v4568
        %v4805 = vpack.c.b16 %v4573, %v4569
        %v4806 = vpack.c.b16 %v4574, %v4570
        %v4807 = vpack.c.b16 %v4575, %v4571
        %v4808 = vpack.c.b16 %v4580, %v4576
        %v4809 = vpack.c.b16 %v4581, %v4577
        %v4810 = vpack.c.b16 %v4582, %v4578
        %v4811 = vpack.c.b16 %v4583, %v4579
        %v4812 = vpack.c.b16 %v4588, %v4584
        %v4813 = vpack.c.b16 %v4589, %v4585
        %v4814 = vpack.c.b16 %v4590, %v4586
        %v4815 = vpack.c.b16 %v4591, %v4587
        %v4816 = vpack.c.b16 %v4596, %v4592
        %v4817 = vpack.c.b16 %v4597, %v4593
        %v4818 = vpack.c.b16 %v4598, %v4594
        %v4819 = vpack.c.b16 %v4599, %v4595
        %v4820 = vpack.c.b16 %v4604, %v4600
        %v4821 = vpack.c.b16 %v4605, %v4601
        %v4822 = vpack.c.b16 %v4606, %v4602
        %v4823 = vpack.c.b16 %v4607, %v4603
        %v4824 = vpack.c.b16 %v4612, %v4608
        %v4825 = vpack.c.b16 %v4613, %v4609
        %v4826 = vpack.c.b16 %v4614, %v4610
        %v4827 = vpack.c.b16 %v4615, %v4611
        %v4828 = vpack.c.b16 %v4620, %v4616
        %v4829 = vpack.c.b16 %v4621, %v4617
        %v4830 = vpack.c.b16 %v4622, %v4618
        %v4831 = vpack.c.b16 %v4623, %v4619
        %v4832 = vpack.c.b16 %v4628, %v4624
        %v4833 = vpack.c.b16 %v4629, %v4625
        %v4834 = vpack.c.b16 %v4630, %v4626
        %v4835 = vpack.c.b16 %v4631, %v4627
        %v4836 = vpack.c.b16 %v4636, %v4632
        %v4837 = vpack.c.b16 %v4637, %v4633
        %v4838 = vpack.c.b16 %v4638, %v4634
        %v4839 = vpack.c.b16 %v4639, %v4635
        %v4840 = vpack.c.b16 %v4644, %v4640
        %v4841 = vpack.c.b16 %v4645, %v4641
        %v4842 = vpack.c.b16 %v4646, %v4642
        %v4843 = vpack.c.b16 %v4647, %v4643
        %v4844 = vpack.c.b16 %v4652, %v4648
        %v4845 = vpack.c.b16 %v4653, %v4649
        %v4846 = vpack.c.b16 %v4654, %v4650
        %v4847 = vpack.c.b16 %v4655, %v4651
        %v4848 = vpack.c.b16 %v4660, %v4656
        %v4849 = vpack.c.b16 %v4661, %v4657
        %v4850 = vpack.c.b16 %v4662, %v4658
        %v4851 = vpack.c.b16 %v4663, %v4659
        %v4852 = vpack.c.b16 %v4668, %v4664
        %v4853 = vpack.c.b16 %v4669, %v4665
        %v4854 = vpack.c.b16 %v4670, %v4666
        %v4855 = vpack.c.b16 %v4671, %v4667
        %v4856 = vpack.c.b16 %v4676, %v4672
        %v4857 = vpack.c.b16 %v4677, %v4673
        %v4858 = vpack.c.b16 %v4678, %v4674
        %v4859 = vpack.c.b16 %v4679, %v4675
        %v4860 = vpack.c.b16 %v4684, %v4680
        %v4861 = vpack.c.b16 %v4685, %v4681
        %v4862 = vpack.c.b16 %v4686, %v4682
        %v4863 = vpack.c.b16 %v4687, %v4683
        %v4864 = vpack.c.b16 %v4692, %v4688
        %v4865 = vpack.c.b16 %v4693, %v4689
        %v4866 = vpack.c.b16 %v4694, %v4690
        %v4867 = vpack.c.b16 %v4695, %v4691
        %v4868 = vpack.c.b16 %v4700, %v4696
        %v4869 = vpack.c.b16 %v4701, %v4697
        %v4870 = vpack.c.b16 %v4702, %v4698
        %v4871 = vpack.c.b16 %v4703, %v4699
        %v4872 = vpack.c.b16 %v4708, %v4704
        %v4873 = vpack.c.b16 %v4709, %v4705
        %v4874 = vpack.c.b16 %v4710, %v4706
        %v4875 = vpack.c.b16 %v4711, %v4707
        %v4876 = vpack.c.b16 %v4716, %v4712
        %v4877 = vpack.c.b16 %v4717, %v4713
        %v4878 = vpack.c.b16 %v4718, %v4714
        %v4879 = vpack.c.b16 %v4719, %v4715
        %v4880 = vpack.c.b16 %v4724, %v4720
        %v4881 = vpack.c.b16 %v4725, %v4721
        %v4882 = vpack.c.b16 %v4726, %v4722
        %v4883 = vpack.c.b16 %v4727, %v4723
        %v4884 = vpack.c.b16 %v4732, %v4728
        %v4885 = vpack.c.b16 %v4733, %v4729
        %v4886 = vpack.c.b16 %v4734, %v4730
        %v4887 = vpack.c.b16 %v4735, %v4731
        %v4888 = vpack.c.b16 %v4740, %v4736
        %v4889 = vpack.c.b16 %v4741, %v4737
        %v4890 = vpack.c.b16 %v4742, %v4738
        %v4891 = vpack.c.b16 %v4743, %v4739
        %v4892 = vpack.c.b16 %v4748, %v4744
        %v4893 = vpack.c.b16 %v4749, %v4745
        %v4894 = vpack.c.b16 %v4750, %v4746
        %v4895 = vpack.c.b16 %v4751, %v4747
        %v4896 = vpack.c.b16 %v4756, %v4752
        %v4897 = vpack.c.b16 %v4757, %v4753
        %v4898 = vpack.c.b16 %v4758, %v4754
        %v4899 = vpack.c.b16 %v4759, %v4755
        %v4900 = vpack.c.b16 %v4764, %v4760
        %v4901 = vpack.c.b16 %v4765, %v4761
        %v4902 = vpack.c.b16 %v4766, %v4762
        %v4903 = vpack.c.b16 %v4767, %v4763
        %v4904 = vpack.c.b16 %v4772, %v4768
        %v4905 = vpack.c.b16 %v4773, %v4769
        %v4906 = vpack.c.b16 %v4774, %v4770
        %v4907 = vpack.c.b16 %v4775, %v4771
        %v4908 = vpack.c.b16 %v4780, %v4776
        %v4909 = vpack.c.b16 %v4781, %v4777
        %v4910 = vpack.c.b16 %v4782, %v4778
        %v4911 = vpack.c.b16 %v4783, %v4779
        %5040 = vmatprep.subr.bf16.mxu0 %v4785
        %5041 = vmatpush1.bf16.msra.mxu0 %v4784
        %5042 = vmatprep.subr.bf16.mxu0 %v4789
        %5043 = vmatpush1.bf16.msra.mxu0 %v4788
        %5044 = vmatprep.subr.bf16.mxu0 %v4793
        %5045 = vmatpush1.bf16.msra.mxu0 %v4792
        %5046 = vmatprep.subr.bf16.mxu0 %v4797
        %5047 = vmatpush1.bf16.msra.mxu0 %v4796
        %5048 = vmatprep.subr.bf16.mxu0 %v4801
        %5049 = vmatpush1.bf16.msra.mxu0 %v4800
        %5050 = vmatprep.subr.bf16.mxu0 %v4805
        %5051 = vmatpush1.bf16.msra.mxu0 %v4804
        %5052 = vmatprep.subr.bf16.mxu0 %v4809
        %5053 = vmatpush1.bf16.msra.mxu0 %v4808
        %5054 = vmatprep.subr.bf16.mxu0 %v4813
        %5055 = vmatpush1.bf16.msra.mxu0 %v4812
        %5056 = vmatprep.subr.bf16.mxu0 %v4817
        %5057 = vmatpush1.bf16.msra.mxu0 %v4816
        %5058 = vmatprep.subr.bf16.mxu0 %v4821
        %5059 = vmatpush1.bf16.msra.mxu0 %v4820
        %5060 = vmatprep.subr.bf16.mxu0 %v4825
        %5061 = vmatpush1.bf16.msra.mxu0 %v4824
        %5062 = vmatprep.subr.bf16.mxu0 %v4829
        %5063 = vmatpush1.bf16.msra.mxu0 %v4828
        %5064 = vmatprep.subr.bf16.mxu0 %v4833
        %5065 = vmatpush1.bf16.msra.mxu0 %v4832
        %5066 = vmatprep.subr.bf16.mxu0 %v4837
        %5067 = vmatpush1.bf16.msra.mxu0 %v4836
        %5068 = vmatprep.subr.bf16.mxu0 %v4841
        %5069 = vmatpush1.bf16.msra.mxu0 %v4840
        %5070 = vmatprep.subr.bf16.mxu0 %v4845
        %5071 = vmatpush1.bf16.msra.mxu0 %v4844
        %5072 = vmatprep.mubr.bf16.mxu0 %v4246
        %5073 = vmatmul.mubr.bf16.gmra.mrb[0].mxu0 %v4245
        %v5074 = vpop.f32.mrb[0].mxu0
        %v5075 = vadd.f32 %v4383, %v5074
        %v5076 = vpop.f32.mrb[0].mxu0
        %v5077 = vadd.f32 %v4387, %v5076
        %v5078 = vpop.f32.mrb[0].mxu0
        %v5079 = vpop.f32.mrb[0].mxu0
        %5080 = vdwg.mxu0
        %5081 = vmatprep.subr.bf16.mxu0 %v4849
        %5082 = vmatpush1.bf16.msra.mxu0 %v4848
        %5083 = vmatprep.subr.bf16.mxu0 %v4853
        %5084 = vmatpush1.bf16.msra.mxu0 %v4852
        %5085 = vmatprep.subr.bf16.mxu0 %v4857
        %5086 = vmatpush1.bf16.msra.mxu0 %v4856
        %5087 = vmatprep.subr.bf16.mxu0 %v4861
        %5088 = vmatpush1.bf16.msra.mxu0 %v4860
        %5089 = vmatprep.subr.bf16.mxu0 %v4865
        %5090 = vmatpush1.bf16.msra.mxu0 %v4864
        %5091 = vmatprep.subr.bf16.mxu0 %v4869
        %5092 = vmatpush1.bf16.msra.mxu0 %v4868
        %5093 = vmatprep.subr.bf16.mxu0 %v4873
        %5094 = vmatpush1.bf16.msra.mxu0 %v4872
        %5095 = vmatprep.subr.bf16.mxu0 %v4877
        %5096 = vmatpush1.bf16.msra.mxu0 %v4876
        %5097 = vmatprep.subr.bf16.mxu0 %v4881
        %5098 = vmatpush1.bf16.msra.mxu0 %v4880
        %5099 = vmatprep.subr.bf16.mxu0 %v4885
        %5100 = vmatpush1.bf16.msra.mxu0 %v4884
        %5101 = vmatprep.subr.bf16.mxu0 %v4889
        %5102 = vmatpush1.bf16.msra.mxu0 %v4888
        %5103 = vmatprep.subr.bf16.mxu0 %v4893
        %5104 = vmatpush1.bf16.msra.mxu0 %v4892
        %5105 = vmatprep.subr.bf16.mxu0 %v4897
        %5106 = vmatpush1.bf16.msra.mxu0 %v4896
        %5107 = vmatprep.subr.bf16.mxu0 %v4901
        %5108 = vmatpush1.bf16.msra.mxu0 %v4900
        %5109 = vmatprep.subr.bf16.mxu0 %v4905
        %5110 = vmatpush1.bf16.msra.mxu0 %v4904
        %5111 = vmatprep.subr.bf16.mxu0 %v4909
        %5112 = vmatpush1.bf16.msra.mxu0 %v4908
        %5113 = vmatprep.mubr.bf16.mxu0 %v4248
        %5114 = vmatmul.mubr.bf16.gmra.mrb[0].mxu0 %v4247
        %v5115 = vpop.f32.mrb[0].mxu0
        %v5116 = vadd.f32 %v5075, %v5115
        %v5117 = vpop.f32.mrb[0].mxu0
        %v5118 = vadd.f32 %v5077, %v5117
        %v5119 = vpop.f32.mrb[0].mxu0
        %v5120 = vpop.f32.mrb[0].mxu0
        %5121 = vdwg.mxu0
        %5122 = vmatprep.subr.bf16.mxu0 %v4787
        %5123 = vmatpush1.bf16.msra.mxu0 %v4786
        %5124 = vmatprep.subr.bf16.mxu0 %v4791
        %5125 = vmatpush1.bf16.msra.mxu0 %v4790
        %5126 = vmatprep.subr.bf16.mxu0 %v4795
        %5127 = vmatpush1.bf16.msra.mxu0 %v4794
        %5128 = vmatprep.subr.bf16.mxu0 %v4799
        %5129 = vmatpush1.bf16.msra.mxu0 %v4798
        %5130 = vmatprep.subr.bf16.mxu0 %v4803
        %5131 = vmatpush1.bf16.msra.mxu0 %v4802
        %5132 = vmatprep.subr.bf16.mxu0 %v4807
        %5133 = vmatpush1.bf16.msra.mxu0 %v4806
        %5134 = vmatprep.subr.bf16.mxu0 %v4811
        %5135 = vmatpush1.bf16.msra.mxu0 %v4810
        %5136 = vmatprep.subr.bf16.mxu0 %v4815
        %5137 = vmatpush1.bf16.msra.mxu0 %v4814
        %5138 = vmatprep.subr.bf16.mxu0 %v4819
        %5139 = vmatpush1.bf16.msra.mxu0 %v4818
        %5140 = vmatprep.subr.bf16.mxu0 %v4823
        %5141 = vmatpush1.bf16.msra.mxu0 %v4822
        %5142 = vmatprep.subr.bf16.mxu0 %v4827
        %5143 = vmatpush1.bf16.msra.mxu0 %v4826
        %5144 = vmatprep.subr.bf16.mxu0 %v4831
        %5145 = vmatpush1.bf16.msra.mxu0 %v4830
        %5146 = vmatprep.subr.bf16.mxu0 %v4835
        %5147 = vmatpush1.bf16.msra.mxu0 %v4834
        %5148 = vmatprep.subr.bf16.mxu0 %v4839
        %5149 = vmatpush1.bf16.msra.mxu0 %v4838
        %5150 = vmatprep.subr.bf16.mxu0 %v4843
        %5151 = vmatpush1.bf16.msra.mxu0 %v4842
        %5152 = vmatprep.subr.bf16.mxu0 %v4847
        %5153 = vmatpush1.bf16.msra.mxu0 %v4846
        %5154 = vmatprep.mubr.bf16.mxu0 %v4246
        %5155 = vmatmul.mubr.bf16.gmra.mrb[0].mxu0 %v4245
        %v5156 = vpop.f32.mrb[0].mxu0
        %v5157 = vadd.f32 %v4391, %v5156
        %v5158 = vpop.f32.mrb[0].mxu0
        %v5159 = vadd.f32 %v4395, %v5158
        %v5160 = vpop.f32.mrb[0].mxu0
        %v5161 = vpop.f32.mrb[0].mxu0
        %5162 = vdwg.mxu0
        %5163 = vmatprep.subr.bf16.mxu0 %v4851
        %5164 = vmatpush1.bf16.msra.mxu0 %v4850
        %5165 = vmatprep.subr.bf16.mxu0 %v4855
        %5166 = vmatpush1.bf16.msra.mxu0 %v4854
        %5167 = vmatprep.subr.bf16.mxu0 %v4859
        %5168 = vmatpush1.bf16.msra.mxu0 %v4858
        %5169 = vmatprep.subr.bf16.mxu0 %v4863
        %5170 = vmatpush1.bf16.msra.mxu0 %v4862
        %5171 = vmatprep.subr.bf16.mxu0 %v4867
        %5172 = vmatpush1.bf16.msra.mxu0 %v4866
        %5173 = vmatprep.subr.bf16.mxu0 %v4871
        %5174 = vmatpush1.bf16.msra.mxu0 %v4870
        %5175 = vmatprep.subr.bf16.mxu0 %v4875
        %5176 = vmatpush1.bf16.msra.mxu0 %v4874
        %5177 = vmatprep.subr.bf16.mxu0 %v4879
        %5178 = vmatpush1.bf16.msra.mxu0 %v4878
        %5179 = vmatprep.subr.bf16.mxu0 %v4883
        %5180 = vmatpush1.bf16.msra.mxu0 %v4882
        %5181 = vmatprep.subr.bf16.mxu0 %v4887
        %5182 = vmatpush1.bf16.msra.mxu0 %v4886
        %5183 = vmatprep.subr.bf16.mxu0 %v4891
        %5184 = vmatpush1.bf16.msra.mxu0 %v4890
        %5185 = vmatprep.subr.bf16.mxu0 %v4895
        %5186 = vmatpush1.bf16.msra.mxu0 %v4894
        %5187 = vmatprep.subr.bf16.mxu0 %v4899
        %5188 = vmatpush1.bf16.msra.mxu0 %v4898
        %5189 = vmatprep.subr.bf16.mxu0 %v4903
        %5190 = vmatpush1.bf16.msra.mxu0 %v4902
        %5191 = vmatprep.subr.bf16.mxu0 %v4907
        %5192 = vmatpush1.bf16.msra.mxu0 %v4906
        %5193 = vmatprep.subr.bf16.mxu0 %v4911
        %5194 = vmatpush1.bf16.msra.mxu0 %v4910
        %5195 = vmatprep.mubr.bf16.mxu0 %v4248
        %5196 = vmatmul.mubr.bf16.gmra.mrb[0].mxu0 %v4247
        %v5197 = vpop.f32.mrb[0].mxu0
        %v5198 = vadd.f32 %v5157, %v5197
        %v5199 = vpop.f32.mrb[0].mxu0
        %v5200 = vadd.f32 %v5159, %v5199
        %v5201 = vpop.f32.mrb[0].mxu0
        %v5202 = vpop.f32.mrb[0].mxu0
        %5203 = vdwg.mxu0
        %v5204 = vand.u32 2147483647, %v5116
        %v5205 = vand.u32 2147483647, %v5118
        %v5206 = vsub.f32 0.0, %v5204
        %v5207 = vsub.f32 0.0, %v5205
        %v5208 = vmul.f32 %v5206, 1.442695
        %v5209 = vpow.pop %v5208
        %v5210 = vmul.f32 %v5207, 1.442695
        %v5211 = vpow.pop %v5210
        %v5212 = vand.u32 2147483647, %v5198
        %vm5213 = vcmp.le.f32.partialorder %v5212, 0.7853982
        %vm5214 = vcmp.lt.s32.totalorder %v5198, 0
        %v5215 = vand.u32 %v5198, 2139095040
        %v5216 = vshrl.u32 %v5215, 23
        %v5217 = vsub.s32 %v5216, 127
        %v5218 = vand.u32 2147483647, %v5198
        %v5219 = vand.u32 %v5218, 8388607
        %v5220 = vor.u32 %v5219, 8388608
        %v5221 = vsub.s32 0, %v5220
        %v5222 = vadd.s32 %v5217, 1
        %vm5223 = vcmp.gt.s32.totalorder %v5222, 0
        %v5224 = vsel %vm5223, %v5222, 0
        %v5225 = vshrl.u32 %v5224, 5
        %v5226 = vand.u32 %v5224, 31
        %v5227 = vsub.s32 32, %v5226
        %v5228 = vshrl.u32 683565275, %v5227
        %v5229 = vshll.u32 683565275, %v5226
        %v5230 = vshrl.u32 2475754826, %v5227
        %v5231 = vor.u32 %v5229, %v5230
        %v5232 = vshll.u32 2475754826, %v5226
        %v5233 = vshrl.u32 2131351028, %v5227
        %v5234 = vor.u32 %v5232, %v5233
        %v5235 = vshll.u32 2131351028, %v5226
        %v5236 = vshrl.u32 2102212464, %v5227
        %v5237 = vor.u32 %v5235, %v5236
        %v5238 = vshll.u32 2102212464, %v5226
        %v5239 = vshrl.u32 920167782, %v5227
        %v5240 = vor.u32 %v5238, %v5239
        %v5241 = vshll.u32 920167782, %v5226
        %v5242 = vshrl.u32 1326507024, %v5227
        %v5243 = vor.u32 %v5241, %v5242
        %vm5244 = vcmp.lt.s32.totalorder %v5225, 1
        %vm5245 = vcmp.lt.s32.totalorder %v5225, 2
        %vm5246 = vcmp.lt.s32.totalorder %v5225, 3
        %vm5247 = vcmp.lt.s32.totalorder %v5225, 4
        %v5248 = vsel %vm5244, %v5228, %v5231
        %v5249 = vsel %vm5247, %v5237, 2102212464
        %v5250 = vsel %vm5246, %v5234, %v5249
        %v5251 = vsel %vm5245, %v5248, %v5250
        %v5252 = vsel %vm5244, %v5231, %v5234
        %v5253 = vsel %vm5247, %v5240, 920167782
        %v5254 = vsel %vm5246, %v5237, %v5253
        %v5255 = vsel %vm5245, %v5252, %v5254
        %v5256 = vsel %vm5244, %v5234, %v5237
        %v5257 = vsel %vm5247, %v5243, 1326507024
        %v5258 = vsel %vm5246, %v5240, %v5257
        %v5259 = vsel %vm5245, %v5256, %v5258
        %v5260 = vshll.u32 %v5220, 8
        %v5261 = vmul.u32.u64.compose %v5260, %v5259
        %v5262 = vextract.low.u32 %v5261
        %v5263 = vextract.high.u32 %v5261
        %v5264 = vmul.u32.u64.compose %v5260, %v5255
        %v5265 = vextract.low.u32 %v5264
        %v5266 = vextract.high.u32 %v5264
        %v5267 = vmul.u32 %v5260, %v5251
        %v5268 = vadd.s32 %v5263, %v5265
        %vm5269 = vc.u32 %v5263, %v5265
        %v5270 = vadd.s32 %v5266, 1
        %v5271 = vsel %vm5269, %v5270, %v5266
        %v5272 = vadd.s32 %v5267, %v5271
        %v5273 = vadd.s32 %v5272, 536870912
        %v5274 = vshrl.u32 %v5273, 30
        %v5275 = vshll.u32 %v5274, 30
        %v5276 = vsub.s32 %v5272, %v5275
        %vm5277 = vcmp.lt.s32.totalorder %v5276, 0
        %v5278 = vsub.s32 0, %v5276
        %v5279 = vsel %vm5277, %v5278, %v5276
        %v5280 = vclz %v5279
        %v5281 = vsub.s32 %v5280, 2
        %vm5282 = vcmp.gt.s32.totalorder 0, %v5281
        %v5283 = vsel %vm5282, 0, %v5281
        %v5284 = vsub.s32 32, %v5283
        %v5285 = vshll.u32 %v5276, %v5283
        %v5286 = vshrl.u32 %v5268, %v5284
        %v5287 = vor.u32 %v5285, %v5286
        %v5288 = vsub.s32 4294967266, %v5283
        %v5289 = vadd.s32 %v5288, 127
        %v5290 = vshll.u32 %v5289, 23
        %v5291 = vor.u32 4788187, %v5290
        %v5292 = vand.u32 2147483647, %v5291
        %v5294 = vcvt.s32.f32 %v5287
        %v5295 = vmul.f32 %v5294, %v5292
        %v5296 = vxor.u32 %v5295, 2147483648
        %v5297 = vsel %vm5214, %v5296, %v5295
        %v5298 = vsub.s32 4, %v5274
        %v5299 = vsel %vm5214, %v5298, %v5274
        %v5300 = vsel %vm5213, %v5198, %v5297
        %v5301 = vsel %vm5213, 0, %v5299
        %v5302 = vcosq.f32.pop %v5300
        %v5303 = vsinq.f32.pop %v5300
        %vm5304 = vweird.f32 %v5198
        %v5305 = vand.u32 %v5301, 3
        %vm5306 = vcmp.lt.s32.totalorder %v5305, 2
        %vm5307 = vcmp.eq.s32.totalorder %v5305, 0
        %v5308 = vxor.u32 %v5303, 2147483648
        %v5309 = vsel %vm5307, %v5302, %v5308
        %vm5310 = vcmp.eq.s32.totalorder %v5305, 2
        %v5311 = vxor.u32 %v5302, 2147483648
        %v5312 = vsel %vm5310, %v5311, %v5303
        %v5313 = vsel %vm5306, %v5309, %v5312
        %v5314 = vsel %vm5304, nan, %v5313
        %v5315 = vand.u32 2147483647, %v5200
        %vm5316 = vcmp.le.f32.partialorder %v5315, 0.7853982
        %vm5317 = vcmp.lt.s32.totalorder %v5200, 0
        %v5318 = vand.u32 %v5200, 2139095040
        %v5319 = vshrl.u32 %v5318, 23
        %v5320 = vsub.s32 %v5319, 127
        %v5321 = vand.u32 2147483647, %v5200
        %v5322 = vand.u32 %v5321, 8388607
        %v5323 = vor.u32 %v5322, 8388608
        %v5324 = vsub.s32 0, %v5323
        %v5325 = vadd.s32 %v5320, 1
        %vm5326 = vcmp.gt.s32.totalorder %v5325, 0
        %v5327 = vsel %vm5326, %v5325, 0
        %v5328 = vshrl.u32 %v5327, 5
        %v5329 = vand.u32 %v5327, 31
        %v5330 = vsub.s32 32, %v5329
        %v5331 = vshrl.u32 683565275, %v5330
        %v5332 = vshll.u32 683565275, %v5329
        %v5333 = vshrl.u32 2475754826, %v5330
        %v5334 = vor.u32 %v5332, %v5333
        %v5335 = vshll.u32 2475754826, %v5329
        %v5336 = vshrl.u32 2131351028, %v5330
        %v5337 = vor.u32 %v5335, %v5336
        %v5338 = vshll.u32 2131351028, %v5329
        %v5339 = vshrl.u32 2102212464, %v5330
        %v5340 = vor.u32 %v5338, %v5339
        %v5341 = vshll.u32 2102212464, %v5329
        %v5342 = vshrl.u32 920167782, %v5330
        %v5343 = vor.u32 %v5341, %v5342
        %v5344 = vshll.u32 920167782, %v5329
        %v5345 = vshrl.u32 1326507024, %v5330
        %v5346 = vor.u32 %v5344, %v5345
        %vm5347 = vcmp.lt.s32.totalorder %v5328, 1
        %vm5348 = vcmp.lt.s32.totalorder %v5328, 2
        %vm5349 = vcmp.lt.s32.totalorder %v5328, 3
        %vm5350 = vcmp.lt.s32.totalorder %v5328, 4
        %v5351 = vsel %vm5347, %v5331, %v5334
        %v5352 = vsel %vm5350, %v5340, 2102212464
        %v5353 = vsel %vm5349, %v5337, %v5352
        %v5354 = vsel %vm5348, %v5351, %v5353
        %v5355 = vsel %vm5347, %v5334, %v5337
        %v5356 = vsel %vm5350, %v5343, 920167782
        %v5357 = vsel %vm5349, %v5340, %v5356
        %v5358 = vsel %vm5348, %v5355, %v5357
        %v5359 = vsel %vm5347, %v5337, %v5340
        %v5360 = vsel %vm5350, %v5346, 1326507024
        %v5361 = vsel %vm5349, %v5343, %v5360
        %v5362 = vsel %vm5348, %v5359, %v5361
        %v5363 = vshll.u32 %v5323, 8
        %v5364 = vmul.u32.u64.compose %v5363, %v5362
        %v5365 = vextract.low.u32 %v5364
        %v5366 = vextract.high.u32 %v5364
        %v5367 = vmul.u32.u64.compose %v5363, %v5358
        %v5368 = vextract.low.u32 %v5367
        %v5369 = vextract.high.u32 %v5367
        %v5370 = vmul.u32 %v5363, %v5354
        %v5371 = vadd.s32 %v5366, %v5368
        %vm5372 = vc.u32 %v5366, %v5368
        %v5373 = vadd.s32 %v5369, 1
        %v5374 = vsel %vm5372, %v5373, %v5369
        %v5375 = vadd.s32 %v5370, %v5374
        %v5376 = vadd.s32 %v5375, 536870912
        %v5377 = vshrl.u32 %v5376, 30
        %v5378 = vshll.u32 %v5377, 30
        %v5379 = vsub.s32 %v5375, %v5378
        %vm5380 = vcmp.lt.s32.totalorder %v5379, 0
        %v5381 = vsub.s32 0, %v5379
        %v5382 = vsel %vm5380, %v5381, %v5379
        %v5383 = vclz %v5382
        %v5384 = vsub.s32 %v5383, 2
        %vm5385 = vcmp.gt.s32.totalorder 0, %v5384
        %v5386 = vsel %vm5385, 0, %v5384
        %v5387 = vsub.s32 32, %v5386
        %v5388 = vshll.u32 %v5379, %v5386
        %v5389 = vshrl.u32 %v5371, %v5387
        %v5390 = vor.u32 %v5388, %v5389
        %v5391 = vsub.s32 4294967266, %v5386
        %v5392 = vadd.s32 %v5391, 127
        %v5393 = vshll.u32 %v5392, 23
        %v5394 = vor.u32 4788187, %v5393
        %v5395 = vand.u32 2147483647, %v5394
        %v5397 = vcvt.s32.f32 %v5390
        %v5398 = vmul.f32 %v5397, %v5395
        %v5399 = vxor.u32 %v5398, 2147483648
        %v5400 = vsel %vm5317, %v5399, %v5398
        %v5401 = vsub.s32 4, %v5377
        %v5402 = vsel %vm5317, %v5401, %v5377
        %v5403 = vsel %vm5316, %v5200, %v5400
        %v5404 = vsel %vm5316, 0, %v5402
        %v5405 = vcosq.f32.pop %v5403
        %v5406 = vsinq.f32.pop %v5403
        %vm5407 = vweird.f32 %v5200
        %v5408 = vand.u32 %v5404, 3
        %vm5409 = vcmp.lt.s32.totalorder %v5408, 2
        %vm5410 = vcmp.eq.s32.totalorder %v5408, 0
        %v5411 = vxor.u32 %v5406, 2147483648
        %v5412 = vsel %vm5410, %v5405, %v5411
        %vm5413 = vcmp.eq.s32.totalorder %v5408, 2
        %v5414 = vxor.u32 %v5405, 2147483648
        %v5415 = vsel %vm5413, %v5414, %v5406
        %v5416 = vsel %vm5409, %v5412, %v5415
        %v5417 = vsel %vm5407, nan, %v5416
        %v5418 = vand.u32 2147483647, %v5198
        %vm5419 = vcmp.le.f32.partialorder %v5418, 0.7853982
        %vm5420 = vcmp.lt.s32.totalorder %v5198, 0
        %v5421 = vand.u32 %v5198, 2139095040
        %v5422 = vshrl.u32 %v5421, 23
        %v5423 = vsub.s32 %v5422, 127
        %v5424 = vand.u32 2147483647, %v5198
        %v5425 = vand.u32 %v5424, 8388607
        %v5426 = vor.u32 %v5425, 8388608
        %v5427 = vsub.s32 0, %v5426
        %v5428 = vadd.s32 %v5423, 1
        %vm5429 = vcmp.gt.s32.totalorder %v5428, 0
        %v5430 = vsel %vm5429, %v5428, 0
        %v5431 = vshrl.u32 %v5430, 5
        %v5432 = vand.u32 %v5430, 31
        %v5433 = vsub.s32 32, %v5432
        %v5434 = vshrl.u32 683565275, %v5433
        %v5435 = vshll.u32 683565275, %v5432
        %v5436 = vshrl.u32 2475754826, %v5433
        %v5437 = vor.u32 %v5435, %v5436
        %v5438 = vshll.u32 2475754826, %v5432
        %v5439 = vshrl.u32 2131351028, %v5433
        %v5440 = vor.u32 %v5438, %v5439
        %v5441 = vshll.u32 2131351028, %v5432
        %v5442 = vshrl.u32 2102212464, %v5433
        %v5443 = vor.u32 %v5441, %v5442
        %v5444 = vshll.u32 2102212464, %v5432
        %v5445 = vshrl.u32 920167782, %v5433
        %v5446 = vor.u32 %v5444, %v5445
        %v5447 = vshll.u32 920167782, %v5432
        %v5448 = vshrl.u32 1326507024, %v5433
        %v5449 = vor.u32 %v5447, %v5448
        %vm5450 = vcmp.lt.s32.totalorder %v5431, 1
        %vm5451 = vcmp.lt.s32.totalorder %v5431, 2
        %vm5452 = vcmp.lt.s32.totalorder %v5431, 3
        %vm5453 = vcmp.lt.s32.totalorder %v5431, 4
        %v5454 = vsel %vm5450, %v5434, %v5437
        %v5455 = vsel %vm5453, %v5443, 2102212464
        %v5456 = vsel %vm5452, %v5440, %v5455
        %v5457 = vsel %vm5451, %v5454, %v5456
        %v5458 = vsel %vm5450, %v5437, %v5440
        %v5459 = vsel %vm5453, %v5446, 920167782
        %v5460 = vsel %vm5452, %v5443, %v5459
        %v5461 = vsel %vm5451, %v5458, %v5460
        %v5462 = vsel %vm5450, %v5440, %v5443
        %v5463 = vsel %vm5453, %v5449, 1326507024
        %v5464 = vsel %vm5452, %v5446, %v5463
        %v5465 = vsel %vm5451, %v5462, %v5464
        %v5466 = vshll.u32 %v5426, 8
        %v5467 = vmul.u32.u64.compose %v5466, %v5465
        %v5468 = vextract.low.u32 %v5467
        %v5469 = vextract.high.u32 %v5467
        %v5470 = vmul.u32.u64.compose %v5466, %v5461
        %v5471 = vextract.low.u32 %v5470
        %v5472 = vextract.high.u32 %v5470
        %v5473 = vmul.u32 %v5466, %v5457
        %v5474 = vadd.s32 %v5469, %v5471
        %vm5475 = vc.u32 %v5469, %v5471
        %v5476 = vadd.s32 %v5472, 1
        %v5477 = vsel %vm5475, %v5476, %v5472
        %v5478 = vadd.s32 %v5473, %v5477
        %v5479 = vadd.s32 %v5478, 536870912
        %v5480 = vshrl.u32 %v5479, 30
        %v5481 = vshll.u32 %v5480, 30
        %v5482 = vsub.s32 %v5478, %v5481
        %vm5483 = vcmp.lt.s32.totalorder %v5482, 0
        %v5484 = vsub.s32 0, %v5482
        %v5485 = vsel %vm5483, %v5484, %v5482
        %v5486 = vclz %v5485
        %v5487 = vsub.s32 %v5486, 2
        %vm5488 = vcmp.gt.s32.totalorder 0, %v5487
        %v5489 = vsel %vm5488, 0, %v5487
        %v5490 = vsub.s32 32, %v5489
        %v5491 = vshll.u32 %v5482, %v5489
        %v5492 = vshrl.u32 %v5474, %v5490
        %v5493 = vor.u32 %v5491, %v5492
        %v5494 = vsub.s32 4294967266, %v5489
        %v5495 = vadd.s32 %v5494, 127
        %v5496 = vshll.u32 %v5495, 23
        %v5497 = vor.u32 4788187, %v5496
        %v5498 = vand.u32 2147483647, %v5497
        %v5500 = vcvt.s32.f32 %v5493
        %v5501 = vmul.f32 %v5500, %v5498
        %v5502 = vxor.u32 %v5501, 2147483648
        %v5503 = vsel %vm5420, %v5502, %v5501
        %v5504 = vsub.s32 4, %v5480
        %v5505 = vsel %vm5420, %v5504, %v5480
        %v5506 = vsel %vm5419, %v5198, %v5503
        %v5507 = vsel %vm5419, 0, %v5505
        %v5508 = vcosq.f32.pop %v5506
        %v5509 = vsinq.f32.pop %v5506
        %vm5510 = vweird.f32 %v5198
        %v5511 = vadd.s32 %v5507, 3
        %v5512 = vand.u32 %v5511, 3
        %vm5513 = vcmp.lt.s32.totalorder %v5512, 2
        %vm5514 = vcmp.eq.s32.totalorder %v5512, 0
        %v5515 = vxor.u32 %v5509, 2147483648
        %v5516 = vsel %vm5514, %v5508, %v5515
        %vm5517 = vcmp.eq.s32.totalorder %v5512, 2
        %v5518 = vxor.u32 %v5508, 2147483648
        %v5519 = vsel %vm5517, %v5518, %v5509
        %v5520 = vsel %vm5513, %v5516, %v5519
        %v5521 = vsel %vm5510, nan, %v5520
        %v5522 = vand.u32 2147483647, %v5200
        %vm5523 = vcmp.le.f32.partialorder %v5522, 0.7853982
        %vm5524 = vcmp.lt.s32.totalorder %v5200, 0
        %v5525 = vand.u32 %v5200, 2139095040
        %v5526 = vshrl.u32 %v5525, 23
        %v5527 = vsub.s32 %v5526, 127
        %v5528 = vand.u32 2147483647, %v5200
        %v5529 = vand.u32 %v5528, 8388607
        %v5530 = vor.u32 %v5529, 8388608
        %v5531 = vsub.s32 0, %v5530
        %v5532 = vadd.s32 %v5527, 1
        %vm5533 = vcmp.gt.s32.totalorder %v5532, 0
        %v5534 = vsel %vm5533, %v5532, 0
        %v5535 = vshrl.u32 %v5534, 5
        %v5536 = vand.u32 %v5534, 31
        %v5537 = vsub.s32 32, %v5536
        %v5538 = vshrl.u32 683565275, %v5537
        %v5539 = vshll.u32 683565275, %v5536
        %v5540 = vshrl.u32 2475754826, %v5537
        %v5541 = vor.u32 %v5539, %v5540
        %v5542 = vshll.u32 2475754826, %v5536
        %v5543 = vshrl.u32 2131351028, %v5537
        %v5544 = vor.u32 %v5542, %v5543
        %v5545 = vshll.u32 2131351028, %v5536
        %v5546 = vshrl.u32 2102212464, %v5537
        %v5547 = vor.u32 %v5545, %v5546
        %v5548 = vshll.u32 2102212464, %v5536
        %v5549 = vshrl.u32 920167782, %v5537
        %v5550 = vor.u32 %v5548, %v5549
        %v5551 = vshll.u32 920167782, %v5536
        %v5552 = vshrl.u32 1326507024, %v5537
        %v5553 = vor.u32 %v5551, %v5552
        %vm5554 = vcmp.lt.s32.totalorder %v5535, 1
        %vm5555 = vcmp.lt.s32.totalorder %v5535, 2
        %vm5556 = vcmp.lt.s32.totalorder %v5535, 3
        %vm5557 = vcmp.lt.s32.totalorder %v5535, 4
        %v5558 = vsel %vm5554, %v5538, %v5541
        %v5559 = vsel %vm5557, %v5547, 2102212464
        %v5560 = vsel %vm5556, %v5544, %v5559
        %v5561 = vsel %vm5555, %v5558, %v5560
        %v5562 = vsel %vm5554, %v5541, %v5544
        %v5563 = vsel %vm5557, %v5550, 920167782
        %v5564 = vsel %vm5556, %v5547, %v5563
        %v5565 = vsel %vm5555, %v5562, %v5564
        %v5566 = vsel %vm5554, %v5544, %v5547
        %v5567 = vsel %vm5557, %v5553, 1326507024
        %v5568 = vsel %vm5556, %v5550, %v5567
        %v5569 = vsel %vm5555, %v5566, %v5568
        %v5570 = vshll.u32 %v5530, 8
        %v5571 = vmul.u32.u64.compose %v5570, %v5569
        %v5572 = vextract.low.u32 %v5571
        %v5573 = vextract.high.u32 %v5571
        %v5574 = vmul.u32.u64.compose %v5570, %v5565
        %v5575 = vextract.low.u32 %v5574
        %v5576 = vextract.high.u32 %v5574
        %v5577 = vmul.u32 %v5570, %v5561
        %v5578 = vadd.s32 %v5573, %v5575
        %vm5579 = vc.u32 %v5573, %v5575
        %v5580 = vadd.s32 %v5576, 1
        %v5581 = vsel %vm5579, %v5580, %v5576
        %v5582 = vadd.s32 %v5577, %v5581
        %v5583 = vadd.s32 %v5582, 536870912
        %v5584 = vshrl.u32 %v5583, 30
        %v5585 = vshll.u32 %v5584, 30
        %v5586 = vsub.s32 %v5582, %v5585
        %vm5587 = vcmp.lt.s32.totalorder %v5586, 0
        %v5588 = vsub.s32 0, %v5586
        %v5589 = vsel %vm5587, %v5588, %v5586
        %v5590 = vclz %v5589
        %v5591 = vsub.s32 %v5590, 2
        %vm5592 = vcmp.gt.s32.totalorder 0, %v5591
        %v5593 = vsel %vm5592, 0, %v5591
        %v5594 = vsub.s32 32, %v5593
        %v5595 = vshll.u32 %v5586, %v5593
        %v5596 = vshrl.u32 %v5578, %v5594
        %v5597 = vor.u32 %v5595, %v5596
        %v5598 = vsub.s32 4294967266, %v5593
        %v5599 = vadd.s32 %v5598, 127
        %v5600 = vshll.u32 %v5599, 23
        %v5601 = vor.u32 4788187, %v5600
        %v5602 = vand.u32 2147483647, %v5601
        %v5604 = vcvt.s32.f32 %v5597
        %v5605 = vmul.f32 %v5604, %v5602
        %v5606 = vxor.u32 %v5605, 2147483648
        %v5607 = vsel %vm5524, %v5606, %v5605
        %v5608 = vsub.s32 4, %v5584
        %v5609 = vsel %vm5524, %v5608, %v5584
        %v5610 = vsel %vm5523, %v5200, %v5607
        %v5611 = vsel %vm5523, 0, %v5609
        %v5612 = vcosq.f32.pop %v5610
        %v5613 = vsinq.f32.pop %v5610
        %vm5614 = vweird.f32 %v5200
        %v5615 = vadd.s32 %v5611, 3
        %v5616 = vand.u32 %v5615, 3
        %vm5617 = vcmp.lt.s32.totalorder %v5616, 2
        %vm5618 = vcmp.eq.s32.totalorder %v5616, 0
        %v5619 = vxor.u32 %v5613, 2147483648
        %v5620 = vsel %vm5618, %v5612, %v5619
        %vm5621 = vcmp.eq.s32.totalorder %v5616, 2
        %v5622 = vxor.u32 %v5612, 2147483648
        %v5623 = vsel %vm5621, %v5622, %v5613
        %v5624 = vsel %vm5617, %v5620, %v5623
        %v5625 = vsel %vm5614, nan, %v5624
        %v5626 = vmul.f32 %v5209, 2.0
        %v5627 = vmul.f32 %v5211, 2.0
        %v5628 = vmul.f32 %v5626, %v5314
        %v5629 = vmul.f32 %v5627, %v5417
        %v5630 = vadd.f32 %v5628, 1.0
        %v5631 = vadd.f32 %v5629, 1.0
        %v5632 = vmul.f32 %v5209, %v5209
        %v5633 = vmul.f32 %v5211, %v5211
        %v5634 = vadd.f32 %v5630, %v5632
        %v5635 = vadd.f32 %v5631, %v5633
        %v5636 = vrcp.pop %v5634
        %v5637 = vmul.f32 1.0, %v5636
        %v5638 = vrcp.pop %v5635
        %v5639 = vmul.f32 1.0, %v5638
        %vm5640 = vcmp.ge.f32.partialorder %v5116, 0.0
        %vm5641 = vcmp.ge.f32.partialorder %v5118, 0.0
        %v5642 = vmul.f32 %v5209, %v5314
        %v5643 = vmul.f32 %v5211, %v5417
        %v5644 = vadd.f32 %v5642, 1.0
        %v5645 = vadd.f32 %v5643, 1.0
        %v5646 = vadd.f32 %v5314, %v5209
        %v5647 = vadd.f32 %v5417, %v5211
        %v5648 = vmul.f32 %v5209, %v5646
        %v5649 = vmul.f32 %v5211, %v5647
        %v5650 = vsel %vm5640, %v5644, %v5648
        %v5651 = vsel %vm5641, %v5645, %v5649
        %v5652 = vmul.f32 %v5650, %v5637
        %v5653 = vmul.f32 %v5651, %v5639
        %5654 = vst [vmem:[%s469] sm:$0xff] %v5652
        %5655 = vst [vmem:[%s469 + $0x8] sm:$0xff] %v5653
        %v5656 = vmul.f32 %v5209, %v5521
        %v5657 = vmul.f32 %v5211, %v5625
        %v5658 = vmul.f32 %v5656, %v5637
        %v5659 = vmul.f32 %v5657, %v5639
        %5660 = vst [vmem:[%s469 + $0x10] sm:$0xff] %v5658
        %5661 = vst [vmem:[%s469 + $0x18] sm:$0xff] %v5659
        %p5662 = scmp.lt.s32.totalorder %s20, 1
        %s5663 = scalar_select %p5662, %s20, 1
        %s5664 = smul.addr %s5663, 4
        %s5665 = smul.addr %s5664, 8
        %s5666 = scalar_lea.vmem %s9, %s5665
        // Predicated region
        $region106: #{hybrid_autoencoder_forward.1} parent=96 // pred_check
          %p5667 = pneg %p237
        $region107: #{hybrid_autoencoder_forward.1} parent=96 // pred_check_branch
          %5669 = sbr.rel (%p5667) target = $region109
        $region108: #{hybrid_autoencoder_forward.1} parent=96 // pred_region
          _
        $region109: #{hybrid_autoencoder_forward.1} parent=96 // pred_fallthru
          _
      $region97: #{hybrid_autoencoder_forward.1} parent=5 // pred_fallthru
        _
      %p5670 = scmp.le.s32.totalorder 2, %s15
      // Predicated region
      $region110: #{hybrid_autoencoder_forward.1} parent=5 // pred_check
        %p5671 = pneg %p5670
      $region111: #{hybrid_autoencoder_forward.1} parent=5 // pred_check_branch
        %5673 = sbr.rel (%p5671) target = $region113
      $region112: #{hybrid_autoencoder_forward.1} parent=5 // pred_region
        %s5674 = ssub.s32 %s15, 2
        // Predicated region
        $region114: #{hybrid_autoencoder_forward.1} parent=112 // pred_check
          %p5675 = pneg %p243
        $region115: #{hybrid_autoencoder_forward.1} parent=112 // pred_check_branch
          %5677 = sbr.rel (%p5675) target = $region117
        $region116: #{hybrid_autoencoder_forward.1} parent=112 // pred_region
          %p5678 = scmp.lt.s32.totalorder %s21, 1
          %s5679 = scalar_select %p5678, %s21, 1
          %s5680 = smul.addr %s5679, 4
          %s5681 = smul.addr %s5680, 8
          %s5682 = scalar_lea.vmem %s9, %s5681
        $region117: #{hybrid_autoencoder_forward.1} parent=112 // pred_fallthru
          _
      $region113: #{hybrid_autoencoder_forward.1} parent=5 // pred_fallthru
        _
    $region6: #{hybrid_autoencoder_forward.1} parent=1 // loop_footer
      %s19 = sadd.s32 1, %s15
    $region7: #{hybrid_autoencoder_forward.1} parent=1 // loop_footer_branch
      %14 = sbr.rel target = $region3
    $region8: #{hybrid_autoencoder_forward.1} parent=1 // loop_exit
      _

</llo_original>
